<compile_context>
chip_gen: v5e
topology: v5e:2x2
jax: 0.10.0
libtpu: 0.0.40
codegen_flags: <defaults>
</compile_context>

<pallas_src>
import functools

import jax
import jax.numpy as jnp
import numpy as np
from jax.experimental import pallas as pl
from jax.experimental.pallas import tpu as pltpu


def _hw_connection_kernel(x1_ref, x2_ref, w_ref, b_ref,
                          out_ref, tsum_ref, csum_ref,
                          xpad_ref, *, H, W, C, skip_sum_1, normal):
    # Fused output-channel count of the conv ([trans | carry] or just trans).
    C2 = C if skip_sum_1 else 2 * C

    # Build the zero-padded input_1 tile in VMEM (padding=1 "same" conv).
    # Halo stays zero; interior is the current batch element.
    xpad_ref[...] = jnp.zeros((H + 2, W + 2, C), xpad_ref.dtype)
    xpad_ref[1:H + 1, 1:W + 1, :] = x1_ref[0]

    # 3x3 conv as 9 shifted (H*W, C) x (C, C2) matmuls against the fused
    # weight, accumulating in f32 on the MXU.
    # TODO(synk): for tiny C an im2col (H*W, 9C) x (9C, C2) single matmul would
    # further raise MXU k-utilization.
    acc = jnp.zeros((H * W, C2), jnp.float32)
    for dy in range(3):
        for dx in range(3):
            win = xpad_ref[dy:dy + H, dx:dx + W, :].reshape(H * W, C)
            acc = acc + jnp.dot(win.astype(jnp.float32), w_ref[dy, dx],
                                preferred_element_type=jnp.float32)

    # One sigmoid covers both gates.
    gates = jax.nn.sigmoid(acc + b_ref[...])
    trans_gate = gates[:, :C]
    if skip_sum_1:
        carry_gate = 1.0 - trans_gate
    else:
        carry_gate = gates[:, C:]

    if normal:
        # torch.stack([t, c], dim=4).norm(p=2, dim=4) normalization, via rsqrt.
        inv = jax.lax.rsqrt(trans_gate * trans_gate + carry_gate * carry_gate)
        trans_gate = trans_gate * inv
        carry_gate = carry_gate * inv

    x1 = x1_ref[0].reshape(H * W, C).astype(jnp.float32)
    x2 = x2_ref[0].reshape(H * W, C).astype(jnp.float32)
    out = x2 * trans_gate + x1 * carry_gate

    out_ref[0] = out.reshape(H, W, C).astype(out_ref.dtype)
    # Per-batch partial sums of the gates (H*W reduced in-kernel); the tiny
    # final N*C reduction -> mean happens in the wrapper.
    tsum_ref[0] = jnp.sum(trans_gate, axis=0, keepdims=True)
    csum_ref[0] = jnp.sum(carry_gate, axis=0, keepdims=True)


def hw_connection(x1_nchw, x2_nchw, w_trans, b_trans, w_carry=None,
                  b_carry=None, *, skip_sum_1=False, normal=False,
                  subtract_mean=False):
    """Pallas implementation of HW_connection.forward (subtract_mean=False)."""
    if subtract_mean:
        # TODO(synk): subtract_mean needs BatchNorm2d running-mean state (a
        # stateful running statistic); refuse rather than silently diverge.
        raise NotImplementedError("subtract_mean=True is not supported")

    N, C, H, W = x1_nchw.shape
    # Layout glue: NCHW (PyTorch) -> NHWC for the kernel.
    x1 = jnp.transpose(x1_nchw, (0, 2, 3, 1))
    x2 = jnp.transpose(x2_nchw, (0, 2, 3, 1))

    # Fuse trans/carry conv parameters along cout so both gates ride on one
    # matmul per shift (the MXU N-dim is mostly padding at small C anyway).
    if skip_sum_1:
        w_cat, b_cat = w_trans, b_trans                      # (3,3,C,C), (1,C)
    else:
        w_cat = jnp.concatenate([w_trans, w_carry], axis=-1)  # (3,3,C,2C)
        b_cat = jnp.concatenate([b_trans, b_carry], axis=-1)  # (1,2C)
    C2 = w_cat.shape[-1]

    kernel = functools.partial(_hw_connection_kernel, H=H, W=W, C=C,
                               skip_sum_1=skip_sum_1, normal=normal)

    out_shape = (
        jax.ShapeDtypeStruct((N, H, W, C), x1.dtype),   # gated output (NHWC)
        jax.ShapeDtypeStruct((N, 1, C), jnp.float32),   # per-batch sum(trans)
        jax.ShapeDtypeStruct((N, 1, C), jnp.float32),   # per-batch sum(carry)
    )

    grid_spec = pltpu.PrefetchScalarGridSpec(
        num_scalar_prefetch=0,
        grid=(N,),
        in_specs=[
            pl.BlockSpec((1, H, W, C), lambda n: (n, 0, 0, 0)),   # input_1
            pl.BlockSpec((1, H, W, C), lambda n: (n, 0, 0, 0)),   # input_2
            pl.BlockSpec((3, 3, C, C2), lambda n: (0, 0, 0, 0)),  # fused weight
            pl.BlockSpec((1, C2), lambda n: (0, 0)),              # fused bias
        ],
        out_specs=[
            pl.BlockSpec((1, H, W, C), lambda n: (n, 0, 0, 0)),
            pl.BlockSpec((1, 1, C), lambda n: (n, 0, 0)),
            pl.BlockSpec((1, 1, C), lambda n: (n, 0, 0)),
        ],
        scratch_shapes=[
            pltpu.VMEM((H + 2, W + 2, C), x1.dtype),   # zero-padded x1 tile
        ],
    )

    out_nhwc, tsum, csum = pl.pallas_call(
        kernel,
        out_shape=out_shape,
        grid_spec=grid_spec,
        compiler_params=pltpu.CompilerParams(
            dimension_semantics=("parallel",)),
    )(x1, x2, w_cat, b_cat)

    denom = jnp.float32(N * H * W * C)
    trans_mean = jnp.sum(tsum) / denom
    carry_mean = jnp.sum(csum) / denom
    out_nchw = jnp.transpose(out_nhwc, (0, 3, 1, 2))
    return out_nchw, trans_mean, carry_mean


def _reference(x1_nchw, x2_nchw, w_trans, b_trans, w_carry, b_carry):
    """Pure-JAX reference (same semantics as the PyTorch module, defaults)."""
    x1 = jnp.transpose(x1_nchw, (0, 2, 3, 1))
    x2 = jnp.transpose(x2_nchw, (0, 2, 3, 1))

    def conv(x, w):
        return jax.lax.conv_general_dilated(
            x, w, window_strides=(1, 1), padding="SAME",
            dimension_numbers=("NHWC", "HWIO", "NHWC"))

    tg = jax.nn.sigmoid(conv(x1, w_trans) + b_trans)
    cg = jax.nn.sigmoid(conv(x1, w_carry) + b_carry)
    out = x2 * tg + x1 * cg
    return jnp.transpose(out, (0, 3, 1, 2)), jnp.mean(tg), jnp.mean(cg)


if __name__ == "__main__":
    # Small shapes consistent with the module: N=2, planes=8, H=W=16.
    N, C, H, W = 2, 8, 16, 16
    trans_gate_bias = 0.0
    carry_gate_bias = 0.0

    key = jax.random.PRNGKey(0)
    k1, k2, k3, k4 = jax.random.split(key, 4)
    x1 = jax.random.normal(k1, (N, C, H, W), jnp.float32)   # input_1 (NCHW)
    x2 = jax.random.normal(k2, (N, C, H, W), jnp.float32)   # input_2 (NCHW)

    # Deterministic conv parameters. Weights stored directly in HWIO layout
    # (PyTorch OIHW weight w_t[o, i, kh, kw] corresponds to w[kh, kw, i, o]).
    w_trans = 0.1 * jax.random.normal(k3, (3, 3, C, C), jnp.float32)
    w_carry = 0.1 * jax.random.normal(k4, (3, 3, C, C), jnp.float32)
    b_trans = jnp.full((1, C), trans_gate_bias, jnp.float32)
    b_carry = jnp.full((1, C), carry_gate_bias, jnp.float32)

    out, t_mean, c_mean = hw_connection(x1, x2, w_trans, b_trans,
                                        w_carry, b_carry)
    out = jax.block_until_ready(out)
    t_mean = jax.block_until_ready(t_mean)
    c_mean = jax.block_until_ready(c_mean)

    ref_out, ref_t, ref_c = _reference(x1, x2, w_trans, b_trans,
                                       w_carry, b_carry)
    np.testing.assert_allclose(np.asarray(out), np.asarray(ref_out),
                               rtol=1e-4, atol=1e-4)
    np.testing.assert_allclose(float(t_mean), float(ref_t), rtol=1e-4, atol=1e-5)
    np.testing.assert_allclose(float(c_mean), float(ref_c), rtol=1e-4, atol=1e-5)

    print("KERNEL_OK")
</pallas_src>

<mosaic_0001>
module attributes {stable_mosaic.version = 11 : i64} {
  func.func @_hw_connection_kernel(%arg0: i32, %arg1: memref<1x16x16x8xf32, #tpu.memory_space<vmem>>, %arg2: memref<1x16x16x8xf32, #tpu.memory_space<vmem>>, %arg3: memref<3x3x8x16xf32, #tpu.memory_space<vmem>>, %arg4: memref<1x16xf32, #tpu.memory_space<vmem>>, %arg5: memref<1x16x16x8xf32, #tpu.memory_space<vmem>>, %arg6: memref<1x1x8xf32, #tpu.memory_space<vmem>>, %arg7: memref<1x1x8xf32, #tpu.memory_space<vmem>>, %arg8: memref<18x18x8xf32, #tpu.memory_space<vmem>>) attributes {dimension_semantics = [#tpu.dimension_semantics<parallel>], iteration_bounds = array<i64: 2>, scalar_prefetch = 0 : i64, scratch_operands = 1 : i64, tpu.core_type = #tpu.core_type<tc>, window_params = [{transform_indices = @transform_0, window_bounds = array<i64: 1, 16, 16, 8>}, {transform_indices = @transform_1, window_bounds = array<i64: 1, 16, 16, 8>}, {pipeline_mode = #tpu.pipeline_mode<synchronous>, transform_indices = @transform_2, window_bounds = array<i64: 3, 3, 8, 16>}, {pipeline_mode = #tpu.pipeline_mode<synchronous>, transform_indices = @transform_3, window_bounds = array<i64: 1, 16>}, {transform_indices = @transform_4, window_bounds = array<i64: 1, 16, 16, 8>}, {transform_indices = @transform_5, window_bounds = array<i64: 1, 1, 8>}, {transform_indices = @transform_6, window_bounds = array<i64: 1, 1, 8>}]} {
    %cst = arith.constant 0.000000e+00 : f32
    %0 = vector.broadcast %cst : f32 to vector<18x18x8xf32>
    %c0 = arith.constant 0 : index
    %c0_0 = arith.constant 0 : index
    %c0_1 = arith.constant 0 : index
    %1 = vector.load %arg8[%c0, %c0_0, %c0_1] : memref<18x18x8xf32, #tpu.memory_space<vmem>>, vector<18x18x8xf32>
    tpu.vector_store %arg8[%c0, %c0_0, %c0_1], %0 {strides = array<i32>} : memref<18x18x8xf32, #tpu.memory_space<vmem>>, vector<18x18x8xf32>,
    %c0_2 = arith.constant 0 : index
    %c0_3 = arith.constant 0 : index
    %c0_4 = arith.constant 0 : index
    %c0_5 = arith.constant 0 : index
    %2 = vector.load %arg1[%c0_2, %c0_3, %c0_4, %c0_5] : memref<1x16x16x8xf32, #tpu.memory_space<vmem>>, vector<1x16x16x8xf32>
    %3 = vector.shape_cast %2 : vector<1x16x16x8xf32> to vector<16x16x8xf32>
    %c1 = arith.constant 1 : index
    %c1_6 = arith.constant 1 : index
    %c0_7 = arith.constant 0 : index
    %4 = vector.load %arg8[%c1, %c1_6, %c0_7] : memref<18x18x8xf32, #tpu.memory_space<vmem>>, vector<16x16x8xf32>
    tpu.vector_store %arg8[%c1, %c1_6, %c0_7], %3 {strides = array<i32>} : memref<18x18x8xf32, #tpu.memory_space<vmem>>, vector<16x16x8xf32>,
    %cst_8 = arith.constant 0.000000e+00 : f32
    %5 = vector.broadcast %cst_8 : f32 to vector<256x16xf32>
    %c0_9 = arith.constant 0 : index
    %c0_10 = arith.constant 0 : index
    %c0_11 = arith.constant 0 : index
    %6 = vector.load %arg8[%c0_9, %c0_10, %c0_11] : memref<18x18x8xf32, #tpu.memory_space<vmem>>, vector<16x16x8xf32>
    %7 = vector.shape_cast %6 : vector<16x16x8xf32> to vector<256x8xf32>
    %c0_12 = arith.constant 0 : index
    %c0_13 = arith.constant 0 : index
    %c0_14 = arith.constant 0 : index
    %c0_15 = arith.constant 0 : index
    %8 = vector.load %arg3[%c0_12, %c0_13, %c0_14, %c0_15] : memref<3x3x8x16xf32, #tpu.memory_space<vmem>>, vector<1x1x8x16xf32>
    %9 = vector.shape_cast %8 : vector<1x1x8x16xf32> to vector<8x16xf32>
    %cst_16 = arith.constant dense<0.000000e+00> : vector<256x16xf32>
    %10 = tpu.matmul %7, %9, %cst_16 {dimension_numbers = #tpu.dot_dimension_numbers<[1], [0], [0], [1], [0, 0, 1, 1], [], []>} : vector<256x8xf32>, vector<8x16xf32>, vector<256x16xf32> -> vector<256x16xf32>
    %11 = arith.addf %5, %10 : vector<256x16xf32>
    %c0_17 = arith.constant 0 : index
    %c1_18 = arith.constant 1 : index
    %c0_19 = arith.constant 0 : index
    %12 = vector.load %arg8[%c0_17, %c1_18, %c0_19] : memref<18x18x8xf32, #tpu.memory_space<vmem>>, vector<16x16x8xf32>
    %13 = vector.shape_cast %12 : vector<16x16x8xf32> to vector<256x8xf32>
    %c0_20 = arith.constant 0 : index
    %c1_21 = arith.constant 1 : index
    %c0_22 = arith.constant 0 : index
    %c0_23 = arith.constant 0 : index
    %14 = vector.load %arg3[%c0_20, %c1_21, %c0_22, %c0_23] : memref<3x3x8x16xf32, #tpu.memory_space<vmem>>, vector<1x1x8x16xf32>
    %15 = vector.shape_cast %14 : vector<1x1x8x16xf32> to vector<8x16xf32>
    %cst_24 = arith.constant dense<0.000000e+00> : vector<256x16xf32>
    %16 = tpu.matmul %13, %15, %cst_24 {dimension_numbers = #tpu.dot_dimension_numbers<[1], [0], [0], [1], [0, 0, 1, 1], [], []>} : vector<256x8xf32>, vector<8x16xf32>, vector<256x16xf32> -> vector<256x16xf32>
    %17 = arith.addf %11, %16 : vector<256x16xf32>
    %c0_25 = arith.constant 0 : index
    %c2 = arith.constant 2 : index
    %c0_26 = arith.constant 0 : index
    %18 = vector.load %arg8[%c0_25, %c2, %c0_26] : memref<18x18x8xf32, #tpu.memory_space<vmem>>, vector<16x16x8xf32>
    %19 = vector.shape_cast %18 : vector<16x16x8xf32> to vector<256x8xf32>
    %c0_27 = arith.constant 0 : index
    %c2_28 = arith.constant 2 : index
    %c0_29 = arith.constant 0 : index
    %c0_30 = arith.constant 0 : index
    %20 = vector.load %arg3[%c0_27, %c2_28, %c0_29, %c0_30] : memref<3x3x8x16xf32, #tpu.memory_space<vmem>>, vector<1x1x8x16xf32>
    %21 = vector.shape_cast %20 : vector<1x1x8x16xf32> to vector<8x16xf32>
    %cst_31 = arith.constant dense<0.000000e+00> : vector<256x16xf32>
    %22 = tpu.matmul %19, %21, %cst_31 {dimension_numbers = #tpu.dot_dimension_numbers<[1], [0], [0], [1], [0, 0, 1, 1], [], []>} : vector<256x8xf32>, vector<8x16xf32>, vector<256x16xf32> -> vector<256x16xf32>
    %23 = arith.addf %17, %22 : vector<256x16xf32>
    %c1_32 = arith.constant 1 : index
    %c0_33 = arith.constant 0 : index
    %c0_34 = arith.constant 0 : index
    %24 = vector.load %arg8[%c1_32, %c0_33, %c0_34] : memref<18x18x8xf32, #tpu.memory_space<vmem>>, vector<16x16x8xf32>
    %25 = vector.shape_cast %24 : vector<16x16x8xf32> to vector<256x8xf32>
    %c1_35 = arith.constant 1 : index
    %c0_36 = arith.constant 0 : index
    %c0_37 = arith.constant 0 : index
    %c0_38 = arith.constant 0 : index
    %26 = vector.load %arg3[%c1_35, %c0_36, %c0_37, %c0_38] : memref<3x3x8x16xf32, #tpu.memory_space<vmem>>, vector<1x1x8x16xf32>
    %27 = vector.shape_cast %26 : vector<1x1x8x16xf32> to vector<8x16xf32>
    %cst_39 = arith.constant dense<0.000000e+00> : vector<256x16xf32>
    %28 = tpu.matmul %25, %27, %cst_39 {dimension_numbers = #tpu.dot_dimension_numbers<[1], [0], [0], [1], [0, 0, 1, 1], [], []>} : vector<256x8xf32>, vector<8x16xf32>, vector<256x16xf32> -> vector<256x16xf32>
    %29 = arith.addf %23, %28 : vector<256x16xf32>
    %c1_40 = arith.constant 1 : index
    %c1_41 = arith.constant 1 : index
    %c0_42 = arith.constant 0 : index
    %30 = vector.load %arg8[%c1_40, %c1_41, %c0_42] : memref<18x18x8xf32, #tpu.memory_space<vmem>>, vector<16x16x8xf32>
    %31 = vector.shape_cast %30 : vector<16x16x8xf32> to vector<256x8xf32>
    %c1_43 = arith.constant 1 : index
    %c1_44 = arith.constant 1 : index
    %c0_45 = arith.constant 0 : index
    %c0_46 = arith.constant 0 : index
    %32 = vector.load %arg3[%c1_43, %c1_44, %c0_45, %c0_46] : memref<3x3x8x16xf32, #tpu.memory_space<vmem>>, vector<1x1x8x16xf32>
    %33 = vector.shape_cast %32 : vector<1x1x8x16xf32> to vector<8x16xf32>
    %cst_47 = arith.constant dense<0.000000e+00> : vector<256x16xf32>
    %34 = tpu.matmul %31, %33, %cst_47 {dimension_numbers = #tpu.dot_dimension_numbers<[1], [0], [0], [1], [0, 0, 1, 1], [], []>} : vector<256x8xf32>, vector<8x16xf32>, vector<256x16xf32> -> vector<256x16xf32>
    %35 = arith.addf %29, %34 : vector<256x16xf32>
    %c1_48 = arith.constant 1 : index
    %c2_49 = arith.constant 2 : index
    %c0_50 = arith.constant 0 : index
    %36 = vector.load %arg8[%c1_48, %c2_49, %c0_50] : memref<18x18x8xf32, #tpu.memory_space<vmem>>, vector<16x16x8xf32>
    %37 = vector.shape_cast %36 : vector<16x16x8xf32> to vector<256x8xf32>
    %c1_51 = arith.constant 1 : index
    %c2_52 = arith.constant 2 : index
    %c0_53 = arith.constant 0 : index
    %c0_54 = arith.constant 0 : index
    %38 = vector.load %arg3[%c1_51, %c2_52, %c0_53, %c0_54] : memref<3x3x8x16xf32, #tpu.memory_space<vmem>>, vector<1x1x8x16xf32>
    %39 = vector.shape_cast %38 : vector<1x1x8x16xf32> to vector<8x16xf32>
    %cst_55 = arith.constant dense<0.000000e+00> : vector<256x16xf32>
    %40 = tpu.matmul %37, %39, %cst_55 {dimension_numbers = #tpu.dot_dimension_numbers<[1], [0], [0], [1], [0, 0, 1, 1], [], []>} : vector<256x8xf32>, vector<8x16xf32>, vector<256x16xf32> -> vector<256x16xf32>
    %41 = arith.addf %35, %40 : vector<256x16xf32>
    %c2_56 = arith.constant 2 : index
    %c0_57 = arith.constant 0 : index
    %c0_58 = arith.constant 0 : index
    %42 = vector.load %arg8[%c2_56, %c0_57, %c0_58] : memref<18x18x8xf32, #tpu.memory_space<vmem>>, vector<16x16x8xf32>
    %43 = vector.shape_cast %42 : vector<16x16x8xf32> to vector<256x8xf32>
    %c2_59 = arith.constant 2 : index
    %c0_60 = arith.constant 0 : index
    %c0_61 = arith.constant 0 : index
    %c0_62 = arith.constant 0 : index
    %44 = vector.load %arg3[%c2_59, %c0_60, %c0_61, %c0_62] : memref<3x3x8x16xf32, #tpu.memory_space<vmem>>, vector<1x1x8x16xf32>
    %45 = vector.shape_cast %44 : vector<1x1x8x16xf32> to vector<8x16xf32>
    %cst_63 = arith.constant dense<0.000000e+00> : vector<256x16xf32>
    %46 = tpu.matmul %43, %45, %cst_63 {dimension_numbers = #tpu.dot_dimension_numbers<[1], [0], [0], [1], [0, 0, 1, 1], [], []>} : vector<256x8xf32>, vector<8x16xf32>, vector<256x16xf32> -> vector<256x16xf32>
    %47 = arith.addf %41, %46 : vector<256x16xf32>
    %c2_64 = arith.constant 2 : index
    %c1_65 = arith.constant 1 : index
    %c0_66 = arith.constant 0 : index
    %48 = vector.load %arg8[%c2_64, %c1_65, %c0_66] : memref<18x18x8xf32, #tpu.memory_space<vmem>>, vector<16x16x8xf32>
    %49 = vector.shape_cast %48 : vector<16x16x8xf32> to vector<256x8xf32>
    %c2_67 = arith.constant 2 : index
    %c1_68 = arith.constant 1 : index
    %c0_69 = arith.constant 0 : index
    %c0_70 = arith.constant 0 : index
    %50 = vector.load %arg3[%c2_67, %c1_68, %c0_69, %c0_70] : memref<3x3x8x16xf32, #tpu.memory_space<vmem>>, vector<1x1x8x16xf32>
    %51 = vector.shape_cast %50 : vector<1x1x8x16xf32> to vector<8x16xf32>
    %cst_71 = arith.constant dense<0.000000e+00> : vector<256x16xf32>
    %52 = tpu.matmul %49, %51, %cst_71 {dimension_numbers = #tpu.dot_dimension_numbers<[1], [0], [0], [1], [0, 0, 1, 1], [], []>} : vector<256x8xf32>, vector<8x16xf32>, vector<256x16xf32> -> vector<256x16xf32>
    %53 = arith.addf %47, %52 : vector<256x16xf32>
    %c2_72 = arith.constant 2 : index
    %c2_73 = arith.constant 2 : index
    %c0_74 = arith.constant 0 : index
    %54 = vector.load %arg8[%c2_72, %c2_73, %c0_74] : memref<18x18x8xf32, #tpu.memory_space<vmem>>, vector<16x16x8xf32>
    %55 = vector.shape_cast %54 : vector<16x16x8xf32> to vector<256x8xf32>
    %c2_75 = arith.constant 2 : index
    %c2_76 = arith.constant 2 : index
    %c0_77 = arith.constant 0 : index
    %c0_78 = arith.constant 0 : index
    %56 = vector.load %arg3[%c2_75, %c2_76, %c0_77, %c0_78] : memref<3x3x8x16xf32, #tpu.memory_space<vmem>>, vector<1x1x8x16xf32>
    %57 = vector.shape_cast %56 : vector<1x1x8x16xf32> to vector<8x16xf32>
    %cst_79 = arith.constant dense<0.000000e+00> : vector<256x16xf32>
    %58 = tpu.matmul %55, %57, %cst_79 {dimension_numbers = #tpu.dot_dimension_numbers<[1], [0], [0], [1], [0, 0, 1, 1], [], []>} : vector<256x8xf32>, vector<8x16xf32>, vector<256x16xf32> -> vector<256x16xf32>
    %59 = arith.addf %53, %58 : vector<256x16xf32>
    %c0_80 = arith.constant 0 : index
    %c0_81 = arith.constant 0 : index
    %60 = vector.load %arg4[%c0_80, %c0_81] : memref<1x16xf32, #tpu.memory_space<vmem>>, vector<1x16xf32>
    %61 = vector.broadcast %60 : vector<1x16xf32> to vector<256x16xf32>
    %62 = arith.addf %59, %61 : vector<256x16xf32>
    %63 = arith.negf %62 : vector<256x16xf32>
    %64 = math.exp %63 : vector<256x16xf32>
    %cst_82 = arith.constant 1.000000e+00 : f32
    %65 = vector.broadcast %cst_82 : f32 to vector<256x16xf32>
    %66 = arith.addf %65, %64 : vector<256x16xf32>
    %67 = arith.divf %65, %66 : vector<256x16xf32>
    %68 = vector.extract_strided_slice %67 {offsets = [0, 0], sizes = [256, 8], strides = [1, 1]} : vector<256x16xf32> to vector<256x8xf32>
    %69 = vector.extract_strided_slice %67 {offsets = [0, 8], sizes = [256, 8], strides = [1, 1]} : vector<256x16xf32> to vector<256x8xf32>
    %c0_83 = arith.constant 0 : index
    %c0_84 = arith.constant 0 : index
    %c0_85 = arith.constant 0 : index
    %c0_86 = arith.constant 0 : index
    %70 = vector.load %arg1[%c0_83, %c0_84, %c0_85, %c0_86] : memref<1x16x16x8xf32, #tpu.memory_space<vmem>>, vector<1x16x16x8xf32>
    %71 = vector.shape_cast %70 : vector<1x16x16x8xf32> to vector<16x16x8xf32>
    %72 = vector.shape_cast %71 : vector<16x16x8xf32> to vector<256x8xf32>
    %c0_87 = arith.constant 0 : index
    %c0_88 = arith.constant 0 : index
    %c0_89 = arith.constant 0 : index
    %c0_90 = arith.constant 0 : index
    %73 = vector.load %arg2[%c0_87, %c0_88, %c0_89, %c0_90] : memref<1x16x16x8xf32, #tpu.memory_space<vmem>>, vector<1x16x16x8xf32>
    %74 = vector.shape_cast %73 : vector<1x16x16x8xf32> to vector<16x16x8xf32>
    %75 = vector.shape_cast %74 : vector<16x16x8xf32> to vector<256x8xf32>
    %76 = arith.mulf %75, %68 : vector<256x8xf32>
    %77 = arith.mulf %72, %69 : vector<256x8xf32>
    %78 = arith.addf %76, %77 : vector<256x8xf32>
    %79 = vector.shape_cast %78 : vector<256x8xf32> to vector<16x16x8xf32>
    %c0_91 = arith.constant 0 : index
    %c0_92 = arith.constant 0 : index
    %c0_93 = arith.constant 0 : index
    %c0_94 = arith.constant 0 : index
    %80 = vector.load %arg5[%c0_91, %c0_92, %c0_93, %c0_94] : memref<1x16x16x8xf32, #tpu.memory_space<vmem>>, vector<1x16x16x8xf32>
    %81 = vector.shape_cast %80 : vector<1x16x16x8xf32> to vector<16x16x8xf32>
    %82 = vector.shape_cast %79 : vector<16x16x8xf32> to vector<1x16x16x8xf32>
    tpu.vector_store %arg5[%c0_91, %c0_92, %c0_93, %c0_94], %82 {strides = array<i32>} : memref<1x16x16x8xf32, #tpu.memory_space<vmem>>, vector<1x16x16x8xf32>,
    %cst_95 = arith.constant dense<0.000000e+00> : vector<8xf32>
    %83 = vector.multi_reduction <add>, %68, %cst_95 [0] : vector<256x8xf32> to vector<8xf32>
    %84 = vector.shape_cast %83 : vector<8xf32> to vector<1x8xf32>
    %c0_96 = arith.constant 0 : index
    %c0_97 = arith.constant 0 : index
    %c0_98 = arith.constant 0 : index
    %85 = vector.load %arg6[%c0_96, %c0_97, %c0_98] : memref<1x1x8xf32, #tpu.memory_space<vmem>>, vector<1x1x8xf32>
    %86 = vector.shape_cast %85 : vector<1x1x8xf32> to vector<1x8xf32>
    %87 = vector.shape_cast %84 : vector<1x8xf32> to vector<1x1x8xf32>
    tpu.vector_store %arg6[%c0_96, %c0_97, %c0_98], %87 {strides = array<i32>} : memref<1x1x8xf32, #tpu.memory_space<vmem>>, vector<1x1x8xf32>,
    %cst_99 = arith.constant dense<0.000000e+00> : vector<8xf32>
    %88 = vector.multi_reduction <add>, %69, %cst_99 [0] : vector<256x8xf32> to vector<8xf32>
    %89 = vector.shape_cast %88 : vector<8xf32> to vector<1x8xf32>
    %c0_100 = arith.constant 0 : index
    %c0_101 = arith.constant 0 : index
    %c0_102 = arith.constant 0 : index
    %90 = vector.load %arg7[%c0_100, %c0_101, %c0_102] : memref<1x1x8xf32, #tpu.memory_space<vmem>>, vector<1x1x8xf32>
    %91 = vector.shape_cast %90 : vector<1x1x8xf32> to vector<1x8xf32>
    %92 = vector.shape_cast %89 : vector<1x8xf32> to vector<1x1x8xf32>
    tpu.vector_store %arg7[%c0_100, %c0_101, %c0_102], %92 {strides = array<i32>} : memref<1x1x8xf32, #tpu.memory_space<vmem>>, vector<1x1x8xf32>,
    return
  }
  func.func @transform_0(%arg0: i32) -> (i32, i32, i32, i32) {
    %c0_i32 = arith.constant 0 : i32
    %c0_i32_0 = arith.constant 0 : i32
    %c0_i32_1 = arith.constant 0 : i32
    %c0_i32_2 = arith.constant 0 : i32
    return %arg0, %c0_i32, %c0_i32_0, %c0_i32_1 : i32, i32, i32, i32
  }
  func.func @transform_1(%arg0: i32) -> (i32, i32, i32, i32) {
    %c0_i32 = arith.constant 0 : i32
    %c0_i32_0 = arith.constant 0 : i32
    %c0_i32_1 = arith.constant 0 : i32
    %c0_i32_2 = arith.constant 0 : i32
    return %arg0, %c0_i32, %c0_i32_0, %c0_i32_1 : i32, i32, i32, i32
  }
  func.func @transform_2(%arg0: i32) -> (i32, i32, i32, i32) {
    %c0_i32 = arith.constant 0 : i32
    %c0_i32_0 = arith.constant 0 : i32
    %c0_i32_1 = arith.constant 0 : i32
    %c0_i32_2 = arith.constant 0 : i32
    %c0_i32_3 = arith.constant 0 : i32
    return %c0_i32, %c0_i32_0, %c0_i32_1, %c0_i32_2 : i32, i32, i32, i32
  }
  func.func @transform_3(%arg0: i32) -> (i32, i32) {
    %c0_i32 = arith.constant 0 : i32
    %c0_i32_0 = arith.constant 0 : i32
    %c0_i32_1 = arith.constant 0 : i32
    return %c0_i32, %c0_i32_0 : i32, i32
  }
  func.func @transform_4(%arg0: i32) -> (i32, i32, i32, i32) {
    %c0_i32 = arith.constant 0 : i32
    %c0_i32_0 = arith.constant 0 : i32
    %c0_i32_1 = arith.constant 0 : i32
    %c0_i32_2 = arith.constant 0 : i32
    return %arg0, %c0_i32, %c0_i32_0, %c0_i32_1 : i32, i32, i32, i32
  }
  func.func @transform_5(%arg0: i32) -> (i32, i32, i32) {
    %c0_i32 = arith.constant 0 : i32
    %c0_i32_0 = arith.constant 0 : i32
    %c0_i32_1 = arith.constant 0 : i32
    return %arg0, %c0_i32, %c0_i32_0 : i32, i32, i32
  }
  func.func @transform_6(%arg0: i32) -> (i32, i32, i32) {
    %c0_i32 = arith.constant 0 : i32
    %c0_i32_0 = arith.constant 0 : i32
    %c0_i32_1 = arith.constant 0 : i32
    return %arg0, %c0_i32, %c0_i32_0 : i32, i32, i32
  }
}

</mosaic_0001>

<llo_original>
// kernel: tpu_custom_call.1
$region0: #{tpu_custom_call.1}
  #allocation0 [shape = 'u32[]', space=smem, size = 0x4, offset = 0x4, fixed_abs, tag = 'smem constant byte address 0x4 - core index']
  #allocation1 [shape = 'u32[72,128]{1,0:T(1,128)}', space=vmem, size = 0x9000, scoped, tag = 'internal scratch']
  #allocation2 [shape = 'f32[18,18,8]{2,1,0:T(8,128)}', space=vmem, size = 0x36000, scoped, tag = 'scratch operand']
  %s0 = inlined_call_operand.vmem [shape: f32[2,16,16,8], index: 0, kind: input, shape index: {}]
  %s1 = inlined_call_operand.vmem [shape: f32[2,16,16,8], index: 1, kind: input, shape index: {}]
  %s2 = inlined_call_operand.vmem [shape: f32[3,3,8,16], index: 2, kind: input, shape index: {}]
  %s3 = inlined_call_operand.vmem [shape: f32[1,16], index: 3, kind: input, shape index: {}]
  %s4 = inlined_call_operand.vmem [shape: f32[2,16,16,8], index: 4, kind: output, shape index: {0}]
  %s5 = inlined_call_operand.hbm [shape: f32[2,1,8], index: 5, kind: output, shape index: {1}]
  %s6 = inlined_call_operand.hbm [shape: f32[2,1,8], index: 6, kind: output, shape index: {2}]
  %7 = xla_tuple %s4, %s5, %s6
  %s8 = sld [smem:[#allocation0]]
  $region65: #{tpu_custom_call.1} parent=0
    _
  %s10 = ssub.s32 1, %s8
  %s11 = scalar_select 0, %s10, %s8
  $region1: #{tpu_custom_call.1} parent=0
    #allocation3 [shape = 'u8[1024]{0}', space=vmem, size = 0x400, scoped, tag = 'output window, operand 1']
    #allocation4 [shape = 's32[2]{0}', space=sflag, size = 0x8, scoped, tag = 'scoped memory for tpu_custom_call.1']
    #allocation5 [shape = 'u8[1024]{0}', space=vmem, size = 0x400, scoped, tag = 'output window, operand 2']
    #allocation6 [shape = 's32[2]{0}', space=sflag, size = 0x8, scoped, tag = 'scoped memory for tpu_custom_call.1']
    %12 = vsyncpa [#allocation4], 0
    %s13 = scalar_lea.sflag [#allocation4], 1
    %14 = vsyncpa %s13, 0
    %15 = vsyncpa [#allocation6], 0
    %s16 = scalar_lea.sflag [#allocation6], 1
    %17 = vsyncpa %s16, 0
    loop: start=0, step=1, limit=4
    $region2: #{tpu_custom_call.1} parent=1 // loop_pre_header
      _
    $region3: #{tpu_custom_call.1} parent=1 // loop_header
      %s19 = sphi 0, %s23
      %p20 = scmp.ge.s32.totalorder %s19, 4
      %s29 = sphi 0, %s31
      %s32 = sphi 0, %s29
      %s33 = sphi 0, %s32
      %s49 = sphi 0, %s33
      %s55 = sphi 0, %s57
      %s58 = sphi 0, %s55
      %s59 = sphi 0, %s58
      %s75 = sphi 0, %s59
      %s79 = sphi 0, %s79
      %s81 = sphi 0, %s79
      %s82 = sphi 0, %s81
      %s96 = sphi 0, %s82
      %s100 = sphi 0, %s100
      %s102 = sphi 0, %s100
      %s103 = sphi 0, %s102
      %s117 = sphi 0, %s103
      %s123 = sphi 0, %s125
      %s126 = sphi 0, %s123
      %s127 = sphi 0, %s126
      %s143 = sphi 0, %s127
      %s149 = sphi 0, %s151
      %s152 = sphi 0, %s149
      %s153 = sphi 0, %s152
      %s169 = sphi 0, %s153
      %s175 = sphi 0, %s177
      %s178 = sphi 0, %s175
      %s179 = sphi 0, %s178
      %s195 = sphi 0, %s179
    $region4: #{tpu_custom_call.1} parent=1 // loop_header_branch
      %22 = sbr.rel (%p20) target = $region8
    $region5: #{tpu_custom_call.1} parent=1 // loop_body
      %s24 = ssub.s32 %s19, 1
      %s25 = ssub.s32 %s19, 2
      %s26 = sadd.s32 %s19, 1
      %s27 = ssub.s32 %s19, %s26
      %p28 = scmp.eq.s32.totalorder %s27, 0
      %s30 = sadd.s32 %s29, 1
      %s31 = scalar_select %p28, %s29, %s30
      %p34 = pneg %p28
      %p35 = scmp.eq.s32.totalorder %s19, 1
      %p36 = por %p34, %p35
      %p37 = scmp.ne.s32.totalorder %s29, %s32
      %p38 = scmp.eq.s32.totalorder %s19, 0
      %p39 = por %p37, %p38
      %p40 = scmp.ne.s32.totalorder %s29, %s32
      %p41 = scmp.eq.s32.totalorder %s24, 1
      %p42 = por %p40, %p41
      %p43 = scmp.ne.s32.totalorder %s32, %s33
      %p44 = scmp.eq.s32.totalorder %s24, 0
      %p45 = por %p43, %p44
      %p46 = scmp.ne.s32.totalorder %s32, %s33
      %p47 = scmp.eq.s32.totalorder %s25, 1
      %p48 = por %p46, %p47
      %p50 = scmp.ne.s32.totalorder %s33, %s49
      %p51 = scmp.eq.s32.totalorder %s25, 0
      %p52 = por %p50, %p51
      %s53 = ssub.s32 %s19, %s26
      %p54 = scmp.eq.s32.totalorder %s53, 0
      %s56 = sadd.s32 %s55, 1
      %s57 = scalar_select %p54, %s55, %s56
      %p60 = pneg %p54
      %p61 = scmp.eq.s32.totalorder %s19, 1
      %p62 = por %p60, %p61
      %p63 = scmp.ne.s32.totalorder %s55, %s58
      %p64 = scmp.eq.s32.totalorder %s19, 0
      %p65 = por %p63, %p64
      %p66 = scmp.ne.s32.totalorder %s55, %s58
      %p67 = scmp.eq.s32.totalorder %s24, 1
      %p68 = por %p66, %p67
      %p69 = scmp.ne.s32.totalorder %s58, %s59
      %p70 = scmp.eq.s32.totalorder %s24, 0
      %p71 = por %p69, %p70
      %p72 = scmp.ne.s32.totalorder %s58, %s59
      %p73 = scmp.eq.s32.totalorder %s25, 1
      %p74 = por %p72, %p73
      %p76 = scmp.ne.s32.totalorder %s59, %s75
      %p77 = scmp.eq.s32.totalorder %s25, 0
      %p78 = por %p76, %p77
      %s80 = sadd.s32 %s79, 1
      %p83 = scmp.eq.s32.totalorder %s19, 1
      %p84 = scmp.ne.s32.totalorder %s79, %s81
      %p85 = scmp.eq.s32.totalorder %s19, 0
      %p86 = por %p84, %p85
      %p87 = scmp.ne.s32.totalorder %s79, %s81
      %p88 = scmp.eq.s32.totalorder %s24, 1
      %p89 = por %p87, %p88
      %p90 = scmp.ne.s32.totalorder %s81, %s82
      %p91 = scmp.eq.s32.totalorder %s24, 0
      %p92 = por %p90, %p91
      %p93 = scmp.ne.s32.totalorder %s81, %s82
      %p94 = scmp.eq.s32.totalorder %s25, 1
      %p95 = por %p93, %p94
      %p97 = scmp.ne.s32.totalorder %s82, %s96
      %p98 = scmp.eq.s32.totalorder %s25, 0
      %p99 = por %p97, %p98
      %s101 = sadd.s32 %s100, 1
      %p104 = scmp.eq.s32.totalorder %s19, 1
      %p105 = scmp.ne.s32.totalorder %s100, %s102
      %p106 = scmp.eq.s32.totalorder %s19, 0
      %p107 = por %p105, %p106
      %p108 = scmp.ne.s32.totalorder %s100, %s102
      %p109 = scmp.eq.s32.totalorder %s24, 1
      %p110 = por %p108, %p109
      %p111 = scmp.ne.s32.totalorder %s102, %s103
      %p112 = scmp.eq.s32.totalorder %s24, 0
      %p113 = por %p111, %p112
      %p114 = scmp.ne.s32.totalorder %s102, %s103
      %p115 = scmp.eq.s32.totalorder %s25, 1
      %p116 = por %p114, %p115
      %p118 = scmp.ne.s32.totalorder %s103, %s117
      %p119 = scmp.eq.s32.totalorder %s25, 0
      %p120 = por %p118, %p119
      %s121 = ssub.s32 %s19, %s26
      %p122 = scmp.eq.s32.totalorder %s121, 0
      %s124 = sadd.s32 %s123, 1
      %s125 = scalar_select %p122, %s123, %s124
      %p128 = pneg %p122
      %p129 = scmp.eq.s32.totalorder %s19, 1
      %p130 = por %p128, %p129
      %p131 = scmp.ne.s32.totalorder %s123, %s126
      %p132 = scmp.eq.s32.totalorder %s19, 0
      %p133 = por %p131, %p132
      %p134 = scmp.ne.s32.totalorder %s123, %s126
      %p135 = scmp.eq.s32.totalorder %s24, 1
      %p136 = por %p134, %p135
      %p137 = scmp.ne.s32.totalorder %s126, %s127
      %p138 = scmp.eq.s32.totalorder %s24, 0
      %p139 = por %p137, %p138
      %p140 = scmp.ne.s32.totalorder %s126, %s127
      %p141 = scmp.eq.s32.totalorder %s25, 1
      %p142 = por %p140, %p141
      %p144 = scmp.ne.s32.totalorder %s127, %s143
      %p145 = scmp.eq.s32.totalorder %s25, 0
      %p146 = por %p144, %p145
      %s147 = ssub.s32 %s19, %s26
      %p148 = scmp.eq.s32.totalorder %s147, 0
      %s150 = sadd.s32 %s149, 1
      %s151 = scalar_select %p148, %s149, %s150
      %p154 = pneg %p148
      %p155 = scmp.eq.s32.totalorder %s19, 1
      %p156 = por %p154, %p155
      %p157 = scmp.ne.s32.totalorder %s149, %s152
      %p158 = scmp.eq.s32.totalorder %s19, 0
      %p159 = por %p157, %p158
      %p160 = scmp.ne.s32.totalorder %s149, %s152
      %p161 = scmp.eq.s32.totalorder %s24, 1
      %p162 = por %p160, %p161
      %p163 = scmp.ne.s32.totalorder %s152, %s153
      %p164 = scmp.eq.s32.totalorder %s24, 0
      %p165 = por %p163, %p164
      %p166 = scmp.ne.s32.totalorder %s152, %s153
      %p167 = scmp.eq.s32.totalorder %s25, 1
      %p168 = por %p166, %p167
      %p170 = scmp.ne.s32.totalorder %s153, %s169
      %p171 = scmp.eq.s32.totalorder %s25, 0
      %p172 = por %p170, %p171
      %s173 = ssub.s32 %s19, %s26
      %p174 = scmp.eq.s32.totalorder %s173, 0
      %s176 = sadd.s32 %s175, 1
      %s177 = scalar_select %p174, %s175, %s176
      %p180 = pneg %p174
      %p181 = scmp.eq.s32.totalorder %s19, 1
      %p182 = por %p180, %p181
      %p183 = scmp.ne.s32.totalorder %s175, %s178
      %p184 = scmp.eq.s32.totalorder %s19, 0
      %p185 = por %p183, %p184
      %p186 = scmp.ne.s32.totalorder %s175, %s178
      %p187 = scmp.eq.s32.totalorder %s24, 1
      %p188 = por %p186, %p187
      %p189 = scmp.ne.s32.totalorder %s178, %s179
      %p190 = scmp.eq.s32.totalorder %s24, 0
      %p191 = por %p189, %p190
      %p192 = scmp.ne.s32.totalorder %s178, %s179
      %p193 = scmp.eq.s32.totalorder %s25, 1
      %p194 = por %p192, %p193
      %p196 = scmp.ne.s32.totalorder %s179, %s195
      %p197 = scmp.eq.s32.totalorder %s25, 0
      %p198 = por %p196, %p197
      %p199 = scmp.le.s32.totalorder 1, %s19
      %p200 = scmp.lt.s32.totalorder %s19, 3
      %p201 = pnand %p199, %p200
      %p202 = pneg %p201
      // Predicated region
      $region9: #{tpu_custom_call.1} parent=5 // pred_check
        _
      $region10: #{tpu_custom_call.1} parent=5 // pred_check_branch
        %204 = sbr.rel (%p201) target = $region12
      $region11: #{tpu_custom_call.1} parent=5 // pred_region
        %s205 = ssub.s32 %s19, 1
        // Predicated region
        $region13: #{tpu_custom_call.1} parent=11 // pred_check
          %p206 = pneg %p92
        $region14: #{tpu_custom_call.1} parent=11 // pred_check_branch
          %208 = sbr.rel (%p206) target = $region16
        $region15: #{tpu_custom_call.1} parent=11 // pred_region
          _
        $region16: #{tpu_custom_call.1} parent=11 // pred_fallthru
          _
        // Predicated region
        $region17: #{tpu_custom_call.1} parent=11 // pred_check
          %p209 = pneg %p113
        $region18: #{tpu_custom_call.1} parent=11 // pred_check_branch
          %211 = sbr.rel (%p209) target = $region20
        $region19: #{tpu_custom_call.1} parent=11 // pred_region
          _
        $region20: #{tpu_custom_call.1} parent=11 // pred_fallthru
          _
      $region12: #{tpu_custom_call.1} parent=5 // pred_fallthru
        _
      %p212 = scmp.lt.s32.totalorder %s19, 2
      // Predicated region
      $region21: #{tpu_custom_call.1} parent=5 // pred_check
        %p213 = pneg %p212
      $region22: #{tpu_custom_call.1} parent=5 // pred_check_branch
        %215 = sbr.rel (%p213) target = $region24
      $region23: #{tpu_custom_call.1} parent=5 // pred_region
        // Predicated region
        $region25: #{tpu_custom_call.1} parent=23 // pred_check
          %p216 = pneg %p39
        $region26: #{tpu_custom_call.1} parent=23 // pred_check_branch
          %218 = sbr.rel (%p216) target = $region28
        $region27: #{tpu_custom_call.1} parent=23 // pred_region
          %p219 = scmp.lt.s32.totalorder %s19, 1
          %s220 = scalar_select %p219, %s19, 1
          %s221 = smul.addr %s220, 32
          %s222 = smul.addr %s221, 8
          %s223 = scalar_lea.vmem %s0, %s222
        $region28: #{tpu_custom_call.1} parent=23 // pred_fallthru
          _
        // Predicated region
        $region29: #{tpu_custom_call.1} parent=23 // pred_check
          %p224 = pneg %p65
        $region30: #{tpu_custom_call.1} parent=23 // pred_check_branch
          %226 = sbr.rel (%p224) target = $region32
        $region31: #{tpu_custom_call.1} parent=23 // pred_region
          %p227 = scmp.lt.s32.totalorder %s19, 1
          %s228 = scalar_select %p227, %s19, 1
          %s229 = smul.addr %s228, 32
          %s230 = smul.addr %s229, 8
          %s231 = scalar_lea.vmem %s1, %s230
        $region32: #{tpu_custom_call.1} parent=23 // pred_fallthru
          _
      $region24: #{tpu_custom_call.1} parent=5 // pred_fallthru
        _
      %p232 = scmp.le.s32.totalorder 1, %s19
      %p233 = scmp.lt.s32.totalorder %s19, 3
      %p234 = pnand %p232, %p233
      %p235 = pneg %p234
      // Predicated region
      $region33: #{tpu_custom_call.1} parent=5 // pred_check
        _
      $region34: #{tpu_custom_call.1} parent=5 // pred_check_branch
        %237 = sbr.rel (%p234) target = $region36
      $region35: #{tpu_custom_call.1} parent=5 // pred_region
        %s238 = ssub.s32 %s19, 1
        %p239 = scmp.lt.s32.totalorder %s24, 1
        %s240 = scalar_select %p239, %s24, 1
        %s241 = smul.addr %s240, 32
        %s242 = smul.addr %s241, 8
        %s243 = scalar_lea.vmem %s0, %s242
        %p244 = pneg %p45
        %p245 = pneg %p42
        %p246 = scmp.lt.s32.totalorder %s24, 1
        %s247 = scalar_select %p246, %s24, 1
        %s248 = smul.addr %s247, 32
        %s249 = smul.addr %s248, 8
        %s250 = scalar_lea.vmem %s1, %s249
        %p251 = pneg %p71
        %p252 = pneg %p68
        %p253 = pneg %p92
        %p254 = pneg %p89
        %p255 = pneg %p113
        %p256 = pneg %p110
        %p257 = pneg %p139
        %p258 = pneg %p136
        %p259 = scmp.lt.s32.totalorder %s24, 1
        %s260 = scalar_select %p259, %s24, 1
        %s261 = smul.addr %s260, 32
        %s262 = smul.addr %s261, 8
        %s263 = scalar_lea.vmem %s4, %s262
        %p264 = pneg %p165
        %p265 = pneg %p162
        %s266 = sand.u32 %s152, 1
        %s267 = scalar_lea.sflag [#allocation4], %s266
        %s268 = sand.u32 %s152, 1
        %s269 = scalar_lea.vmem [#allocation3], %s268
        %p270 = pneg %p191
        %p271 = pneg %p188
        %s272 = sand.u32 %s178, 1
        %s273 = scalar_lea.sflag [#allocation6], %s272
        %s274 = sand.u32 %s178, 1
        %s275 = scalar_lea.vmem [#allocation5], %s274
        %p276 = scmp.lt.s32.totalorder %s24, 1
        %s277 = scalar_select %p276, %s24, 1
        %s278 = smul.addr %s277, 32
        %s279 = smul.addr %s278, 8
        %s280 = scalar_lea.vmem %s0, %s279
        %p281 = scmp.lt.s32.totalorder %s24, 1
        %s282 = scalar_select %p281, %s24, 1
        %s283 = smul.addr %s282, 32
        %s284 = smul.addr %s283, 8
        %s285 = scalar_lea.vmem %s1, %s284
        %p286 = scmp.lt.s32.totalorder %s24, 1
        %s287 = scalar_select %p286, %s24, 1
        %s288 = smul.addr %s287, 32
        %s289 = smul.addr %s288, 8
        %s290 = scalar_lea.vmem %s4, %s289
        %vm291 = vcmask 64512
        %292 = vst.msk [vmem:[#allocation2] sm:$0xff] %vm291, 0.0
        %293 = vst.msk [vmem:[#allocation2 + $0x8] sm:$0xff] %vm291, 0.0
        %vm294 = vcmask 58368
        %295 = vst.msk [vmem:[#allocation2 + $0x10] sm:$0x3] %vm294, 0.0
        %296 = vst.msk [vmem:[#allocation2 + $0x18] sm:$0xff] %vm291, 0.0
        %297 = vst.msk [vmem:[#allocation2 + $0x20] sm:$0xff] %vm291, 0.0
        %298 = vst.msk [vmem:[#allocation2 + $0x28] sm:$0x3] %vm294, 0.0
        %299 = vst.msk [vmem:[#allocation2 + $0x30] sm:$0xff] %vm291, 0.0
        %300 = vst.msk [vmem:[#allocation2 + $0x38] sm:$0xff] %vm291, 0.0
        %301 = vst.msk [vmem:[#allocation2 + $0x40] sm:$0x3] %vm294, 0.0
        %302 = vst.msk [vmem:[#allocation2 + $0x48] sm:$0xff] %vm291, 0.0
        %303 = vst.msk [vmem:[#allocation2 + $0x50] sm:$0xff] %vm291, 0.0
        %304 = vst.msk [vmem:[#allocation2 + $0x58] sm:$0x3] %vm294, 0.0
        %305 = vst.msk [vmem:[#allocation2 + $0x60] sm:$0xff] %vm291, 0.0
        %306 = vst.msk [vmem:[#allocation2 + $0x68] sm:$0xff] %vm291, 0.0
        %307 = vst.msk [vmem:[#allocation2 + $0x70] sm:$0x3] %vm294, 0.0
        %308 = vst.msk [vmem:[#allocation2 + $0x78] sm:$0xff] %vm291, 0.0
        %309 = vst.msk [vmem:[#allocation2 + $0x80] sm:$0xff] %vm291, 0.0
        %310 = vst.msk [vmem:[#allocation2 + $0x88] sm:$0x3] %vm294, 0.0
        %311 = vst.msk [vmem:[#allocation2 + $0x90] sm:$0xff] %vm291, 0.0
        %312 = vst.msk [vmem:[#allocation2 + $0x98] sm:$0xff] %vm291, 0.0
        %313 = vst.msk [vmem:[#allocation2 + $0xa0] sm:$0x3] %vm294, 0.0
        %314 = vst.msk [vmem:[#allocation2 + $0xa8] sm:$0xff] %vm291, 0.0
        %315 = vst.msk [vmem:[#allocation2 + $0xb0] sm:$0xff] %vm291, 0.0
        %316 = vst.msk [vmem:[#allocation2 + $0xb8] sm:$0x3] %vm294, 0.0
        %317 = vst.msk [vmem:[#allocation2 + $0xc0] sm:$0xff] %vm291, 0.0
        %318 = vst.msk [vmem:[#allocation2 + $0xc8] sm:$0xff] %vm291, 0.0
        %319 = vst.msk [vmem:[#allocation2 + $0xd0] sm:$0x3] %vm294, 0.0
        %320 = vst.msk [vmem:[#allocation2 + $0xd8] sm:$0xff] %vm291, 0.0
        %321 = vst.msk [vmem:[#allocation2 + $0xe0] sm:$0xff] %vm291, 0.0
        %322 = vst.msk [vmem:[#allocation2 + $0xe8] sm:$0x3] %vm294, 0.0
        %323 = vst.msk [vmem:[#allocation2 + $0xf0] sm:$0xff] %vm291, 0.0
        %324 = vst.msk [vmem:[#allocation2 + $0xf8] sm:$0xff] %vm291, 0.0
        %325 = vst.msk [vmem:[#allocation2 + $0x100] sm:$0x3] %vm294, 0.0
        %326 = vst.msk [vmem:[#allocation2 + $0x108] sm:$0xff] %vm291, 0.0
        %327 = vst.msk [vmem:[#allocation2 + $0x110] sm:$0xff] %vm291, 0.0
        %328 = vst.msk [vmem:[#allocation2 + $0x118] sm:$0x3] %vm294, 0.0
        %329 = vst.msk [vmem:[#allocation2 + $0x120] sm:$0xff] %vm291, 0.0
        %330 = vst.msk [vmem:[#allocation2 + $0x128] sm:$0xff] %vm291, 0.0
        %331 = vst.msk [vmem:[#allocation2 + $0x130] sm:$0x3] %vm294, 0.0
        %332 = vst.msk [vmem:[#allocation2 + $0x138] sm:$0xff] %vm291, 0.0
        %333 = vst.msk [vmem:[#allocation2 + $0x140] sm:$0xff] %vm291, 0.0
        %334 = vst.msk [vmem:[#allocation2 + $0x148] sm:$0x3] %vm294, 0.0
        %335 = vst.msk [vmem:[#allocation2 + $0x150] sm:$0xff] %vm291, 0.0
        %336 = vst.msk [vmem:[#allocation2 + $0x158] sm:$0xff] %vm291, 0.0
        %337 = vst.msk [vmem:[#allocation2 + $0x160] sm:$0x3] %vm294, 0.0
        %338 = vst.msk [vmem:[#allocation2 + $0x168] sm:$0xff] %vm291, 0.0
        %339 = vst.msk [vmem:[#allocation2 + $0x170] sm:$0xff] %vm291, 0.0
        %340 = vst.msk [vmem:[#allocation2 + $0x178] sm:$0x3] %vm294, 0.0
        %341 = vst.msk [vmem:[#allocation2 + $0x180] sm:$0xff] %vm291, 0.0
        %342 = vst.msk [vmem:[#allocation2 + $0x188] sm:$0xff] %vm291, 0.0
        %343 = vst.msk [vmem:[#allocation2 + $0x190] sm:$0x3] %vm294, 0.0
        %344 = vst.msk [vmem:[#allocation2 + $0x198] sm:$0xff] %vm291, 0.0
        %345 = vst.msk [vmem:[#allocation2 + $0x1a0] sm:$0xff] %vm291, 0.0
        %346 = vst.msk [vmem:[#allocation2 + $0x1a8] sm:$0x3] %vm294, 0.0
        %v347 = vld [vmem:[%s280] sm:$0xff]
        %v348 = vld [vmem:[%s280 + $0x8] sm:$0xff]
        %v349 = vld [vmem:[%s280 + $0x10] sm:$0xff]
        %v350 = vld [vmem:[%s280 + $0x18] sm:$0xff]
        %v351 = vld [vmem:[%s280 + $0x20] sm:$0xff]
        %v352 = vld [vmem:[%s280 + $0x28] sm:$0xff]
        %v353 = vld [vmem:[%s280 + $0x30] sm:$0xff]
        %v354 = vld [vmem:[%s280 + $0x38] sm:$0xff]
        %v355 = vld [vmem:[%s280 + $0x40] sm:$0xff]
        %v356 = vld [vmem:[%s280 + $0x48] sm:$0xff]
        %v357 = vld [vmem:[%s280 + $0x50] sm:$0xff]
        %v358 = vld [vmem:[%s280 + $0x58] sm:$0xff]
        %v359 = vld [vmem:[%s280 + $0x60] sm:$0xff]
        %v360 = vld [vmem:[%s280 + $0x68] sm:$0xff]
        %v361 = vld [vmem:[%s280 + $0x70] sm:$0xff]
        %v362 = vld [vmem:[%s280 + $0x78] sm:$0xff]
        %v363 = vld [vmem:[%s280 + $0x80] sm:$0xff]
        %v364 = vld [vmem:[%s280 + $0x88] sm:$0xff]
        %v365 = vld [vmem:[%s280 + $0x90] sm:$0xff]
        %v366 = vld [vmem:[%s280 + $0x98] sm:$0xff]
        %v367 = vld [vmem:[%s280 + $0xa0] sm:$0xff]
        %v368 = vld [vmem:[%s280 + $0xa8] sm:$0xff]
        %v369 = vld [vmem:[%s280 + $0xb0] sm:$0xff]
        %v370 = vld [vmem:[%s280 + $0xb8] sm:$0xff]
        %v371 = vld [vmem:[%s280 + $0xc0] sm:$0xff]
        %v372 = vld [vmem:[%s280 + $0xc8] sm:$0xff]
        %v373 = vld [vmem:[%s280 + $0xd0] sm:$0xff]
        %v374 = vld [vmem:[%s280 + $0xd8] sm:$0xff]
        %v375 = vld [vmem:[%s280 + $0xe0] sm:$0xff]
        %v376 = vld [vmem:[%s280 + $0xe8] sm:$0xff]
        %v377 = vld [vmem:[%s280 + $0xf0] sm:$0xff]
        %v378 = vld [vmem:[%s280 + $0xf8] sm:$0xff]
        %s379 = scalar_lea.vmem [#allocation2], 24
        %380 = vst.msk [vmem:[%s379 + $0x1] sm:$0xff] %vm291, %v347
        %381 = vst.msk [vmem:[%s379 + $0x9] sm:$0xff] %vm291, %v348
        %382 = vst.msk [vmem:[%s379 + $0x19] sm:$0xff] %vm291, %v349
        %383 = vst.msk [vmem:[%s379 + $0x21] sm:$0xff] %vm291, %v350
        %384 = vst.msk [vmem:[%s379 + $0x31] sm:$0xff] %vm291, %v351
        %385 = vst.msk [vmem:[%s379 + $0x39] sm:$0xff] %vm291, %v352
        %386 = vst.msk [vmem:[%s379 + $0x49] sm:$0xff] %vm291, %v353
        %387 = vst.msk [vmem:[%s379 + $0x51] sm:$0xff] %vm291, %v354
        %388 = vst.msk [vmem:[%s379 + $0x61] sm:$0xff] %vm291, %v355
        %389 = vst.msk [vmem:[%s379 + $0x69] sm:$0xff] %vm291, %v356
        %390 = vst.msk [vmem:[%s379 + $0x79] sm:$0xff] %vm291, %v357
        %391 = vst.msk [vmem:[%s379 + $0x81] sm:$0xff] %vm291, %v358
        %392 = vst.msk [vmem:[%s379 + $0x91] sm:$0xff] %vm291, %v359
        %393 = vst.msk [vmem:[%s379 + $0x99] sm:$0xff] %vm291, %v360
        %394 = vst.msk [vmem:[%s379 + $0xa9] sm:$0xff] %vm291, %v361
        %395 = vst.msk [vmem:[%s379 + $0xb1] sm:$0xff] %vm291, %v362
        %396 = vst.msk [vmem:[%s379 + $0xc1] sm:$0xff] %vm291, %v363
        %397 = vst.msk [vmem:[%s379 + $0xc9] sm:$0xff] %vm291, %v364
        %398 = vst.msk [vmem:[%s379 + $0xd9] sm:$0xff] %vm291, %v365
        %399 = vst.msk [vmem:[%s379 + $0xe1] sm:$0xff] %vm291, %v366
        %400 = vst.msk [vmem:[%s379 + $0xf1] sm:$0xff] %vm291, %v367
        %401 = vst.msk [vmem:[%s379 + $0xf9] sm:$0xff] %vm291, %v368
        %402 = vst.msk [vmem:[%s379 + $0x109] sm:$0xff] %vm291, %v369
        %403 = vst.msk [vmem:[%s379 + $0x111] sm:$0xff] %vm291, %v370
        %404 = vst.msk [vmem:[%s379 + $0x121] sm:$0xff] %vm291, %v371
        %405 = vst.msk [vmem:[%s379 + $0x129] sm:$0xff] %vm291, %v372
        %406 = vst.msk [vmem:[%s379 + $0x139] sm:$0xff] %vm291, %v373
        %407 = vst.msk [vmem:[%s379 + $0x141] sm:$0xff] %vm291, %v374
        %408 = vst.msk [vmem:[%s379 + $0x151] sm:$0xff] %vm291, %v375
        %409 = vst.msk [vmem:[%s379 + $0x159] sm:$0xff] %vm291, %v376
        %410 = vst.msk [vmem:[%s379 + $0x169] sm:$0xff] %vm291, %v377
        %411 = vst.msk [vmem:[%s379 + $0x171] sm:$0xff] %vm291, %v378
        %v412 = vld [vmem:[#allocation2] sm:$0xff]
        %v413 = vld [vmem:[#allocation2 + $0x8] sm:$0xff]
        %v414 = vld [vmem:[#allocation2 + $0x18] sm:$0xff]
        %v415 = vld [vmem:[#allocation2 + $0x20] sm:$0xff]
        %v416 = vld [vmem:[#allocation2 + $0x30] sm:$0xff]
        %v417 = vld [vmem:[#allocation2 + $0x38] sm:$0xff]
        %v418 = vld [vmem:[#allocation2 + $0x48] sm:$0xff]
        %v419 = vld [vmem:[#allocation2 + $0x50] sm:$0xff]
        %v420 = vld [vmem:[#allocation2 + $0x60] sm:$0xff]
        %v421 = vld [vmem:[#allocation2 + $0x68] sm:$0xff]
        %v422 = vld [vmem:[#allocation2 + $0x78] sm:$0xff]
        %v423 = vld [vmem:[#allocation2 + $0x80] sm:$0xff]
        %v424 = vld [vmem:[#allocation2 + $0x90] sm:$0xff]
        %v425 = vld [vmem:[#allocation2 + $0x98] sm:$0xff]
        %v426 = vld [vmem:[#allocation2 + $0xa8] sm:$0xff]
        %v427 = vld [vmem:[#allocation2 + $0xb0] sm:$0xff]
        %v428 = vld [vmem:[#allocation2 + $0xc0] sm:$0xff]
        %v429 = vld [vmem:[#allocation2 + $0xc8] sm:$0xff]
        %v430 = vld [vmem:[#allocation2 + $0xd8] sm:$0xff]
        %v431 = vld [vmem:[#allocation2 + $0xe0] sm:$0xff]
        %v432 = vld [vmem:[#allocation2 + $0xf0] sm:$0xff]
        %v433 = vld [vmem:[#allocation2 + $0xf8] sm:$0xff]
        %v434 = vld [vmem:[#allocation2 + $0x108] sm:$0xff]
        %v435 = vld [vmem:[#allocation2 + $0x110] sm:$0xff]
        %v436 = vld [vmem:[#allocation2 + $0x120] sm:$0xff]
        %v437 = vld [vmem:[#allocation2 + $0x128] sm:$0xff]
        %v438 = vld [vmem:[#allocation2 + $0x138] sm:$0xff]
        %v439 = vld [vmem:[#allocation2 + $0x140] sm:$0xff]
        %v440 = vld [vmem:[#allocation2 + $0x150] sm:$0xff]
        %v441 = vld [vmem:[#allocation2 + $0x158] sm:$0xff]
        %v442 = vld [vmem:[#allocation2 + $0x168] sm:$0xff]
        %v443 = vld [vmem:[#allocation2 + $0x170] sm:$0xff]
        %v444 = vld [vmem:[%s2] sm:$0xff]
        %v445 = vld [vmem:[#allocation2 + $0x1] sm:$0xff]
        %v446 = vld [vmem:[#allocation2 + $0x9] sm:$0xff]
        %v447 = vld [vmem:[#allocation2 + $0x19] sm:$0xff]
        %v448 = vld [vmem:[#allocation2 + $0x21] sm:$0xff]
        %v449 = vld [vmem:[#allocation2 + $0x31] sm:$0xff]
        %v450 = vld [vmem:[#allocation2 + $0x39] sm:$0xff]
        %v451 = vld [vmem:[#allocation2 + $0x49] sm:$0xff]
        %v452 = vld [vmem:[#allocation2 + $0x51] sm:$0xff]
        %v453 = vld [vmem:[#allocation2 + $0x61] sm:$0xff]
        %v454 = vld [vmem:[#allocation2 + $0x69] sm:$0xff]
        %v455 = vld [vmem:[#allocation2 + $0x79] sm:$0xff]
        %v456 = vld [vmem:[#allocation2 + $0x81] sm:$0xff]
        %v457 = vld [vmem:[#allocation2 + $0x91] sm:$0xff]
        %v458 = vld [vmem:[#allocation2 + $0x99] sm:$0xff]
        %v459 = vld [vmem:[#allocation2 + $0xa9] sm:$0xff]
        %v460 = vld [vmem:[#allocation2 + $0xb1] sm:$0xff]
        %v461 = vld [vmem:[#allocation2 + $0xc1] sm:$0xff]
        %v462 = vld [vmem:[#allocation2 + $0xc9] sm:$0xff]
        %v463 = vld [vmem:[#allocation2 + $0xd9] sm:$0xff]
        %v464 = vld [vmem:[#allocation2 + $0xe1] sm:$0xff]
        %v465 = vld [vmem:[#allocation2 + $0xf1] sm:$0xff]
        %v466 = vld [vmem:[#allocation2 + $0xf9] sm:$0xff]
        %v467 = vld [vmem:[#allocation2 + $0x109] sm:$0xff]
        %v468 = vld [vmem:[#allocation2 + $0x111] sm:$0xff]
        %v469 = vld [vmem:[#allocation2 + $0x121] sm:$0xff]
        %v470 = vld [vmem:[#allocation2 + $0x129] sm:$0xff]
        %v471 = vld [vmem:[#allocation2 + $0x139] sm:$0xff]
        %v472 = vld [vmem:[#allocation2 + $0x141] sm:$0xff]
        %v473 = vld [vmem:[#allocation2 + $0x151] sm:$0xff]
        %v474 = vld [vmem:[#allocation2 + $0x159] sm:$0xff]
        %v475 = vld [vmem:[#allocation2 + $0x169] sm:$0xff]
        %v476 = vld [vmem:[#allocation2 + $0x171] sm:$0xff]
        %s477 = scalar_lea.vmem %s2, 8
        %v478 = vld [vmem:[%s477] sm:$0xff]
        %v480 = vsel %vm291, %v445, 0
        %v483 = vsel %vm291, %v446, 0
        %v486 = vsel %vm291, %v447, 0
        %v489 = vsel %vm291, %v448, 0
        %v492 = vsel %vm291, %v449, 0
        %v495 = vsel %vm291, %v450, 0
        %v498 = vsel %vm291, %v451, 0
        %v501 = vsel %vm291, %v452, 0
        %v504 = vsel %vm291, %v453, 0
        %v507 = vsel %vm291, %v454, 0
        %v510 = vsel %vm291, %v455, 0
        %v513 = vsel %vm291, %v456, 0
        %v516 = vsel %vm291, %v457, 0
        %v519 = vsel %vm291, %v458, 0
        %v522 = vsel %vm291, %v459, 0
        %v525 = vsel %vm291, %v460, 0
        %v528 = vsel %vm291, %v461, 0
        %v531 = vsel %vm291, %v462, 0
        %v534 = vsel %vm291, %v463, 0
        %v537 = vsel %vm291, %v464, 0
        %v540 = vsel %vm291, %v465, 0
        %v543 = vsel %vm291, %v466, 0
        %v546 = vsel %vm291, %v467, 0
        %v549 = vsel %vm291, %v468, 0
        %v552 = vsel %vm291, %v469, 0
        %v555 = vsel %vm291, %v470, 0
        %v558 = vsel %vm291, %v471, 0
        %v561 = vsel %vm291, %v472, 0
        %v564 = vsel %vm291, %v473, 0
        %v567 = vsel %vm291, %v474, 0
        %v570 = vsel %vm291, %v475, 0
        %v573 = vsel %vm291, %v476, 0
        %575 = vmatpush.msra.mxu0 0.0
        %576 = vmatpush.msra.mxu0 0.0
        %577 = vmatpush.msra.mxu0 0.0
        %578 = vmatpush.msra.mxu0 0.0
        %579 = vmatpush.msra.mxu0 0.0
        %580 = vmatpush.msra.mxu0 0.0
        %581 = vmatpush.msra.mxu0 0.0
        %582 = vmatpush.msra.mxu0 0.0
        %583 = vmatpush.msra.mxu0 0.0
        %584 = vmatpush.msra.mxu0 0.0
        %585 = vmatpush.msra.mxu0 0.0
        %586 = vmatpush.msra.mxu0 0.0
        %587 = vmatpush.msra.mxu0 0.0
        %588 = vmatpush.msra.mxu0 0.0
        %589 = vmatpush.msra.mxu0 0.0
        %590 = vmatpush.msra.mxu0 %v478
        %591 = vmatmul.f32.gmra.mxu0 %v480
        %v592 = vpop.f32.mrf.mxu0
        %v593 = vadd.f32 0.0, %v592
        %594 = vmatmul.f32.gmra.mxu0 %v483
        %v595 = vpop.f32.mrf.mxu0
        %v596 = vadd.f32 0.0, %v595
        %597 = vmatmul.f32.gmra.mxu0 %v486
        %v598 = vpop.f32.mrf.mxu0
        %v599 = vadd.f32 0.0, %v598
        %600 = vmatmul.f32.gmra.mxu0 %v489
        %v601 = vpop.f32.mrf.mxu0
        %v602 = vadd.f32 0.0, %v601
        %603 = vmatmul.f32.gmra.mxu0 %v492
        %v604 = vpop.f32.mrf.mxu0
        %v605 = vadd.f32 0.0, %v604
        %606 = vmatmul.f32.gmra.mxu0 %v495
        %v607 = vpop.f32.mrf.mxu0
        %v608 = vadd.f32 0.0, %v607
        %609 = vmatmul.f32.gmra.mxu0 %v498
        %v610 = vpop.f32.mrf.mxu0
        %v611 = vadd.f32 0.0, %v610
        %612 = vmatmul.f32.gmra.mxu0 %v501
        %v613 = vpop.f32.mrf.mxu0
        %v614 = vadd.f32 0.0, %v613
        %615 = vmatmul.f32.gmra.mxu0 %v504
        %v616 = vpop.f32.mrf.mxu0
        %v617 = vadd.f32 0.0, %v616
        %618 = vmatmul.f32.gmra.mxu0 %v507
        %v619 = vpop.f32.mrf.mxu0
        %v620 = vadd.f32 0.0, %v619
        %621 = vmatmul.f32.gmra.mxu0 %v510
        %v622 = vpop.f32.mrf.mxu0
        %v623 = vadd.f32 0.0, %v622
        %624 = vmatmul.f32.gmra.mxu0 %v513
        %v625 = vpop.f32.mrf.mxu0
        %v626 = vadd.f32 0.0, %v625
        %627 = vmatmul.f32.gmra.mxu0 %v516
        %v628 = vpop.f32.mrf.mxu0
        %v629 = vadd.f32 0.0, %v628
        %630 = vmatmul.f32.gmra.mxu0 %v519
        %v631 = vpop.f32.mrf.mxu0
        %v632 = vadd.f32 0.0, %v631
        %633 = vmatmul.f32.gmra.mxu0 %v522
        %v634 = vpop.f32.mrf.mxu0
        %v635 = vadd.f32 0.0, %v634
        %636 = vmatmul.f32.gmra.mxu0 %v525
        %v637 = vpop.f32.mrf.mxu0
        %v638 = vadd.f32 0.0, %v637
        %639 = vmatmul.f32.gmra.mxu0 %v528
        %v640 = vpop.f32.mrf.mxu0
        %v641 = vadd.f32 0.0, %v640
        %642 = vmatmul.f32.gmra.mxu0 %v531
        %v643 = vpop.f32.mrf.mxu0
        %v644 = vadd.f32 0.0, %v643
        %645 = vmatmul.f32.gmra.mxu0 %v534
        %v646 = vpop.f32.mrf.mxu0
        %v647 = vadd.f32 0.0, %v646
        %648 = vmatmul.f32.gmra.mxu0 %v537
        %v649 = vpop.f32.mrf.mxu0
        %v650 = vadd.f32 0.0, %v649
        %651 = vmatmul.f32.gmra.mxu0 %v540
        %v652 = vpop.f32.mrf.mxu0
        %v653 = vadd.f32 0.0, %v652
        %654 = vmatmul.f32.gmra.mxu0 %v543
        %v655 = vpop.f32.mrf.mxu0
        %v656 = vadd.f32 0.0, %v655
        %657 = vmatmul.f32.gmra.mxu0 %v546
        %v658 = vpop.f32.mrf.mxu0
        %v659 = vadd.f32 0.0, %v658
        %660 = vmatmul.f32.gmra.mxu0 %v549
        %v661 = vpop.f32.mrf.mxu0
        %v662 = vadd.f32 0.0, %v661
        %663 = vmatmul.f32.gmra.mxu0 %v552
        %v664 = vpop.f32.mrf.mxu0
        %v665 = vadd.f32 0.0, %v664
        %666 = vmatmul.f32.gmra.mxu0 %v555
        %v667 = vpop.f32.mrf.mxu0
        %v668 = vadd.f32 0.0, %v667
        %669 = vmatmul.f32.gmra.mxu0 %v558
        %v670 = vpop.f32.mrf.mxu0
        %v671 = vadd.f32 0.0, %v670
        %672 = vmatmul.f32.gmra.mxu0 %v561
        %v673 = vpop.f32.mrf.mxu0
        %v674 = vadd.f32 0.0, %v673
        %675 = vmatmul.f32.gmra.mxu0 %v564
        %v676 = vpop.f32.mrf.mxu0
        %v677 = vadd.f32 0.0, %v676
        %678 = vmatmul.f32.gmra.mxu0 %v567
        %v679 = vpop.f32.mrf.mxu0
        %v680 = vadd.f32 0.0, %v679
        %681 = vmatmul.f32.gmra.mxu0 %v570
        %v682 = vpop.f32.mrf.mxu0
        %v683 = vadd.f32 0.0, %v682
        %684 = vmatmul.f32.gmra.mxu0 %v573
        %v685 = vpop.f32.mrf.mxu0
        %v686 = vadd.f32 0.0, %v685
        %687 = vdwg.mxu0
        %v689 = vsel %vm291, %v412, 0
        %v692 = vsel %vm291, %v413, 0
        %v695 = vsel %vm291, %v414, 0
        %v698 = vsel %vm291, %v415, 0
        %v701 = vsel %vm291, %v416, 0
        %v704 = vsel %vm291, %v417, 0
        %v707 = vsel %vm291, %v418, 0
        %v710 = vsel %vm291, %v419, 0
        %v713 = vsel %vm291, %v420, 0
        %v716 = vsel %vm291, %v421, 0
        %v719 = vsel %vm291, %v422, 0
        %v722 = vsel %vm291, %v423, 0
        %v725 = vsel %vm291, %v424, 0
        %v728 = vsel %vm291, %v425, 0
        %v731 = vsel %vm291, %v426, 0
        %v734 = vsel %vm291, %v427, 0
        %v737 = vsel %vm291, %v428, 0
        %v740 = vsel %vm291, %v429, 0
        %v743 = vsel %vm291, %v430, 0
        %v746 = vsel %vm291, %v431, 0
        %v749 = vsel %vm291, %v432, 0
        %v752 = vsel %vm291, %v433, 0
        %v755 = vsel %vm291, %v434, 0
        %v758 = vsel %vm291, %v435, 0
        %v761 = vsel %vm291, %v436, 0
        %v764 = vsel %vm291, %v437, 0
        %v767 = vsel %vm291, %v438, 0
        %v770 = vsel %vm291, %v439, 0
        %v773 = vsel %vm291, %v440, 0
        %v776 = vsel %vm291, %v441, 0
        %v779 = vsel %vm291, %v442, 0
        %v782 = vsel %vm291, %v443, 0
        %784 = vmatpush.msra.mxu0 0.0
        %785 = vmatpush.msra.mxu0 0.0
        %786 = vmatpush.msra.mxu0 0.0
        %787 = vmatpush.msra.mxu0 0.0
        %788 = vmatpush.msra.mxu0 0.0
        %789 = vmatpush.msra.mxu0 0.0
        %790 = vmatpush.msra.mxu0 0.0
        %791 = vmatpush.msra.mxu0 0.0
        %792 = vmatpush.msra.mxu0 0.0
        %793 = vmatpush.msra.mxu0 0.0
        %794 = vmatpush.msra.mxu0 0.0
        %795 = vmatpush.msra.mxu0 0.0
        %796 = vmatpush.msra.mxu0 0.0
        %797 = vmatpush.msra.mxu0 0.0
        %798 = vmatpush.msra.mxu0 0.0
        %799 = vmatpush.msra.mxu0 %v444
        %800 = vmatmul.f32.gmra.mxu0 %v689
        %v801 = vpop.f32.mrf.mxu0
        %v802 = vadd.f32 %v593, %v801
        %803 = vmatmul.f32.gmra.mxu0 %v692
        %v804 = vpop.f32.mrf.mxu0
        %v805 = vadd.f32 %v596, %v804
        %806 = vmatmul.f32.gmra.mxu0 %v695
        %v807 = vpop.f32.mrf.mxu0
        %v808 = vadd.f32 %v599, %v807
        %809 = vmatmul.f32.gmra.mxu0 %v698
        %v810 = vpop.f32.mrf.mxu0
        %v811 = vadd.f32 %v602, %v810
        %812 = vmatmul.f32.gmra.mxu0 %v701
        %v813 = vpop.f32.mrf.mxu0
        %v814 = vadd.f32 %v605, %v813
        %815 = vmatmul.f32.gmra.mxu0 %v704
        %v816 = vpop.f32.mrf.mxu0
        %v817 = vadd.f32 %v608, %v816
        %818 = vmatmul.f32.gmra.mxu0 %v707
        %v819 = vpop.f32.mrf.mxu0
        %v820 = vadd.f32 %v611, %v819
        %821 = vmatmul.f32.gmra.mxu0 %v710
        %v822 = vpop.f32.mrf.mxu0
        %v823 = vadd.f32 %v614, %v822
        %824 = vmatmul.f32.gmra.mxu0 %v713
        %v825 = vpop.f32.mrf.mxu0
        %v826 = vadd.f32 %v617, %v825
        %827 = vmatmul.f32.gmra.mxu0 %v716
        %v828 = vpop.f32.mrf.mxu0
        %v829 = vadd.f32 %v620, %v828
        %830 = vmatmul.f32.gmra.mxu0 %v719
        %v831 = vpop.f32.mrf.mxu0
        %v832 = vadd.f32 %v623, %v831
        %833 = vmatmul.f32.gmra.mxu0 %v722
        %v834 = vpop.f32.mrf.mxu0
        %v835 = vadd.f32 %v626, %v834
        %836 = vmatmul.f32.gmra.mxu0 %v725
        %v837 = vpop.f32.mrf.mxu0
        %v838 = vadd.f32 %v629, %v837
        %839 = vmatmul.f32.gmra.mxu0 %v728
        %v840 = vpop.f32.mrf.mxu0
        %v841 = vadd.f32 %v632, %v840
        %842 = vmatmul.f32.gmra.mxu0 %v731
        %v843 = vpop.f32.mrf.mxu0
        %v844 = vadd.f32 %v635, %v843
        %845 = vmatmul.f32.gmra.mxu0 %v734
        %v846 = vpop.f32.mrf.mxu0
        %v847 = vadd.f32 %v638, %v846
        %848 = vmatmul.f32.gmra.mxu0 %v737
        %v849 = vpop.f32.mrf.mxu0
        %v850 = vadd.f32 %v641, %v849
        %851 = vmatmul.f32.gmra.mxu0 %v740
        %v852 = vpop.f32.mrf.mxu0
        %v853 = vadd.f32 %v644, %v852
        %854 = vmatmul.f32.gmra.mxu0 %v743
        %v855 = vpop.f32.mrf.mxu0
        %v856 = vadd.f32 %v647, %v855
        %857 = vmatmul.f32.gmra.mxu0 %v746
        %v858 = vpop.f32.mrf.mxu0
        %v859 = vadd.f32 %v650, %v858
        %860 = vmatmul.f32.gmra.mxu0 %v749
        %v861 = vpop.f32.mrf.mxu0
        %v862 = vadd.f32 %v653, %v861
        %863 = vmatmul.f32.gmra.mxu0 %v752
        %v864 = vpop.f32.mrf.mxu0
        %v865 = vadd.f32 %v656, %v864
        %866 = vmatmul.f32.gmra.mxu0 %v755
        %v867 = vpop.f32.mrf.mxu0
        %v868 = vadd.f32 %v659, %v867
        %869 = vmatmul.f32.gmra.mxu0 %v758
        %v870 = vpop.f32.mrf.mxu0
        %v871 = vadd.f32 %v662, %v870
        %872 = vmatmul.f32.gmra.mxu0 %v761
        %v873 = vpop.f32.mrf.mxu0
        %v874 = vadd.f32 %v665, %v873
        %875 = vmatmul.f32.gmra.mxu0 %v764
        %v876 = vpop.f32.mrf.mxu0
        %v877 = vadd.f32 %v668, %v876
        %878 = vmatmul.f32.gmra.mxu0 %v767
        %v879 = vpop.f32.mrf.mxu0
        %v880 = vadd.f32 %v671, %v879
        %881 = vmatmul.f32.gmra.mxu0 %v770
        %v882 = vpop.f32.mrf.mxu0
        %v883 = vadd.f32 %v674, %v882
        %884 = vmatmul.f32.gmra.mxu0 %v773
        %v885 = vpop.f32.mrf.mxu0
        %v886 = vadd.f32 %v677, %v885
        %887 = vmatmul.f32.gmra.mxu0 %v776
        %v888 = vpop.f32.mrf.mxu0
        %v889 = vadd.f32 %v680, %v888
        %890 = vmatmul.f32.gmra.mxu0 %v779
        %v891 = vpop.f32.mrf.mxu0
        %v892 = vadd.f32 %v683, %v891
        %893 = vmatmul.f32.gmra.mxu0 %v782
        %v894 = vpop.f32.mrf.mxu0
        %v895 = vadd.f32 %v686, %v894
        %896 = vdwg.mxu0
        %v897 = vld [vmem:[#allocation2 + $0x2] sm:$0xff]
        %v898 = vld [vmem:[#allocation2 + $0xa] sm:$0xff]
        %v899 = vld [vmem:[#allocation2 + $0x1a] sm:$0xff]
        %v900 = vld [vmem:[#allocation2 + $0x22] sm:$0xff]
        %v901 = vld [vmem:[#allocation2 + $0x32] sm:$0xff]
        %v902 = vld [vmem:[#allocation2 + $0x3a] sm:$0xff]
        %v903 = vld [vmem:[#allocation2 + $0x4a] sm:$0xff]
        %v904 = vld [vmem:[#allocation2 + $0x52] sm:$0xff]
        %v905 = vld [vmem:[#allocation2 + $0x62] sm:$0xff]
        %v906 = vld [vmem:[#allocation2 + $0x6a] sm:$0xff]
        %v907 = vld [vmem:[#allocation2 + $0x7a] sm:$0xff]
        %v908 = vld [vmem:[#allocation2 + $0x82] sm:$0xff]
        %v909 = vld [vmem:[#allocation2 + $0x92] sm:$0xff]
        %v910 = vld [vmem:[#allocation2 + $0x9a] sm:$0xff]
        %v911 = vld [vmem:[#allocation2 + $0xaa] sm:$0xff]
        %v912 = vld [vmem:[#allocation2 + $0xb2] sm:$0xff]
        %v913 = vld [vmem:[#allocation2 + $0xc2] sm:$0xff]
        %v914 = vld [vmem:[#allocation2 + $0xca] sm:$0xff]
        %v915 = vld [vmem:[#allocation2 + $0xda] sm:$0xff]
        %v916 = vld [vmem:[#allocation2 + $0xe2] sm:$0xff]
        %v917 = vld [vmem:[#allocation2 + $0xf2] sm:$0xff]
        %v918 = vld [vmem:[#allocation2 + $0xfa] sm:$0xff]
        %v919 = vld [vmem:[#allocation2 + $0x10a] sm:$0xff]
        %v920 = vld [vmem:[#allocation2 + $0x112] sm:$0xff]
        %v921 = vld [vmem:[#allocation2 + $0x122] sm:$0xff]
        %v922 = vld [vmem:[#allocation2 + $0x12a] sm:$0xff]
        %v923 = vld [vmem:[#allocation2 + $0x13a] sm:$0xff]
        %v924 = vld [vmem:[#allocation2 + $0x142] sm:$0xff]
        %v925 = vld [vmem:[#allocation2 + $0x152] sm:$0xff]
        %v926 = vld [vmem:[#allocation2 + $0x15a] sm:$0xff]
        %v927 = vld [vmem:[#allocation2 + $0x16a] sm:$0xff]
        %v928 = vld [vmem:[#allocation2 + $0x172] sm:$0xff]
        %s929 = scalar_lea.vmem %s2, 16
        %v930 = vld [vmem:[%s929] sm:$0xff]
        %v932 = vsel %vm291, %v897, 0
        %v935 = vsel %vm291, %v898, 0
        %v938 = vsel %vm291, %v899, 0
        %v941 = vsel %vm291, %v900, 0
        %v944 = vsel %vm291, %v901, 0
        %v947 = vsel %vm291, %v902, 0
        %v950 = vsel %vm291, %v903, 0
        %v953 = vsel %vm291, %v904, 0
        %v956 = vsel %vm291, %v905, 0
        %v959 = vsel %vm291, %v906, 0
        %v962 = vsel %vm291, %v907, 0
        %v965 = vsel %vm291, %v908, 0
        %v968 = vsel %vm291, %v909, 0
        %v971 = vsel %vm291, %v910, 0
        %v974 = vsel %vm291, %v911, 0
        %v977 = vsel %vm291, %v912, 0
        %v980 = vsel %vm291, %v913, 0
        %v983 = vsel %vm291, %v914, 0
        %v986 = vsel %vm291, %v915, 0
        %v989 = vsel %vm291, %v916, 0
        %v992 = vsel %vm291, %v917, 0
        %v995 = vsel %vm291, %v918, 0
        %v998 = vsel %vm291, %v919, 0
        %v1001 = vsel %vm291, %v920, 0
        %v1004 = vsel %vm291, %v921, 0
        %v1007 = vsel %vm291, %v922, 0
        %v1010 = vsel %vm291, %v923, 0
        %v1013 = vsel %vm291, %v924, 0
        %v1016 = vsel %vm291, %v925, 0
        %v1019 = vsel %vm291, %v926, 0
        %v1022 = vsel %vm291, %v927, 0
        %v1025 = vsel %vm291, %v928, 0
        %1027 = vmatpush.msra.mxu0 0.0
        %1028 = vmatpush.msra.mxu0 0.0
        %1029 = vmatpush.msra.mxu0 0.0
        %1030 = vmatpush.msra.mxu0 0.0
        %1031 = vmatpush.msra.mxu0 0.0
        %1032 = vmatpush.msra.mxu0 0.0
        %1033 = vmatpush.msra.mxu0 0.0
        %1034 = vmatpush.msra.mxu0 0.0
        %1035 = vmatpush.msra.mxu0 0.0
        %1036 = vmatpush.msra.mxu0 0.0
        %1037 = vmatpush.msra.mxu0 0.0
        %1038 = vmatpush.msra.mxu0 0.0
        %1039 = vmatpush.msra.mxu0 0.0
        %1040 = vmatpush.msra.mxu0 0.0
        %1041 = vmatpush.msra.mxu0 0.0
        %1042 = vmatpush.msra.mxu0 %v930
        %1043 = vmatmul.f32.gmra.mxu0 %v932
        %v1044 = vpop.f32.mrf.mxu0
        %v1045 = vadd.f32 0.0, %v1044
        %1046 = vmatmul.f32.gmra.mxu0 %v935
        %v1047 = vpop.f32.mrf.mxu0
        %v1048 = vadd.f32 0.0, %v1047
        %1049 = vmatmul.f32.gmra.mxu0 %v938
        %v1050 = vpop.f32.mrf.mxu0
        %v1051 = vadd.f32 0.0, %v1050
        %1052 = vmatmul.f32.gmra.mxu0 %v941
        %v1053 = vpop.f32.mrf.mxu0
        %v1054 = vadd.f32 0.0, %v1053
        %1055 = vmatmul.f32.gmra.mxu0 %v944
        %v1056 = vpop.f32.mrf.mxu0
        %v1057 = vadd.f32 0.0, %v1056
        %1058 = vmatmul.f32.gmra.mxu0 %v947
        %v1059 = vpop.f32.mrf.mxu0
        %v1060 = vadd.f32 0.0, %v1059
        %1061 = vmatmul.f32.gmra.mxu0 %v950
        %v1062 = vpop.f32.mrf.mxu0
        %v1063 = vadd.f32 0.0, %v1062
        %1064 = vmatmul.f32.gmra.mxu0 %v953
        %v1065 = vpop.f32.mrf.mxu0
        %v1066 = vadd.f32 0.0, %v1065
        %1067 = vmatmul.f32.gmra.mxu0 %v956
        %v1068 = vpop.f32.mrf.mxu0
        %v1069 = vadd.f32 0.0, %v1068
        %1070 = vmatmul.f32.gmra.mxu0 %v959
        %v1071 = vpop.f32.mrf.mxu0
        %v1072 = vadd.f32 0.0, %v1071
        %1073 = vmatmul.f32.gmra.mxu0 %v962
        %v1074 = vpop.f32.mrf.mxu0
        %v1075 = vadd.f32 0.0, %v1074
        %1076 = vmatmul.f32.gmra.mxu0 %v965
        %v1077 = vpop.f32.mrf.mxu0
        %v1078 = vadd.f32 0.0, %v1077
        %1079 = vmatmul.f32.gmra.mxu0 %v968
        %v1080 = vpop.f32.mrf.mxu0
        %v1081 = vadd.f32 0.0, %v1080
        %1082 = vmatmul.f32.gmra.mxu0 %v971
        %v1083 = vpop.f32.mrf.mxu0
        %v1084 = vadd.f32 0.0, %v1083
        %1085 = vmatmul.f32.gmra.mxu0 %v974
        %v1086 = vpop.f32.mrf.mxu0
        %v1087 = vadd.f32 0.0, %v1086
        %1088 = vmatmul.f32.gmra.mxu0 %v977
        %v1089 = vpop.f32.mrf.mxu0
        %v1090 = vadd.f32 0.0, %v1089
        %1091 = vmatmul.f32.gmra.mxu0 %v980
        %v1092 = vpop.f32.mrf.mxu0
        %v1093 = vadd.f32 0.0, %v1092
        %1094 = vmatmul.f32.gmra.mxu0 %v983
        %v1095 = vpop.f32.mrf.mxu0
        %v1096 = vadd.f32 0.0, %v1095
        %1097 = vmatmul.f32.gmra.mxu0 %v986
        %v1098 = vpop.f32.mrf.mxu0
        %v1099 = vadd.f32 0.0, %v1098
        %1100 = vmatmul.f32.gmra.mxu0 %v989
        %v1101 = vpop.f32.mrf.mxu0
        %v1102 = vadd.f32 0.0, %v1101
        %1103 = vmatmul.f32.gmra.mxu0 %v992
        %v1104 = vpop.f32.mrf.mxu0
        %v1105 = vadd.f32 0.0, %v1104
        %1106 = vmatmul.f32.gmra.mxu0 %v995
        %v1107 = vpop.f32.mrf.mxu0
        %v1108 = vadd.f32 0.0, %v1107
        %1109 = vmatmul.f32.gmra.mxu0 %v998
        %v1110 = vpop.f32.mrf.mxu0
        %v1111 = vadd.f32 0.0, %v1110
        %1112 = vmatmul.f32.gmra.mxu0 %v1001
        %v1113 = vpop.f32.mrf.mxu0
        %v1114 = vadd.f32 0.0, %v1113
        %1115 = vmatmul.f32.gmra.mxu0 %v1004
        %v1116 = vpop.f32.mrf.mxu0
        %v1117 = vadd.f32 0.0, %v1116
        %1118 = vmatmul.f32.gmra.mxu0 %v1007
        %v1119 = vpop.f32.mrf.mxu0
        %v1120 = vadd.f32 0.0, %v1119
        %1121 = vmatmul.f32.gmra.mxu0 %v1010
        %v1122 = vpop.f32.mrf.mxu0
        %v1123 = vadd.f32 0.0, %v1122
        %1124 = vmatmul.f32.gmra.mxu0 %v1013
        %v1125 = vpop.f32.mrf.mxu0
        %v1126 = vadd.f32 0.0, %v1125
        %1127 = vmatmul.f32.gmra.mxu0 %v1016
        %v1128 = vpop.f32.mrf.mxu0
        %v1129 = vadd.f32 0.0, %v1128
        %1130 = vmatmul.f32.gmra.mxu0 %v1019
        %v1131 = vpop.f32.mrf.mxu0
        %v1132 = vadd.f32 0.0, %v1131
        %1133 = vmatmul.f32.gmra.mxu0 %v1022
        %v1134 = vpop.f32.mrf.mxu0
        %v1135 = vadd.f32 0.0, %v1134
        %1136 = vmatmul.f32.gmra.mxu0 %v1025
        %v1137 = vpop.f32.mrf.mxu0
        %v1138 = vadd.f32 0.0, %v1137
        %1139 = vdwg.mxu0
        %v1140 = vadd.f32 %v802, %v1045
        %v1141 = vadd.f32 %v805, %v1048
        %v1142 = vadd.f32 %v808, %v1051
        %v1143 = vadd.f32 %v811, %v1054
        %v1144 = vadd.f32 %v814, %v1057
        %v1145 = vadd.f32 %v817, %v1060
        %v1146 = vadd.f32 %v820, %v1063
        %v1147 = vadd.f32 %v823, %v1066
        %v1148 = vadd.f32 %v826, %v1069
        %v1149 = vadd.f32 %v829, %v1072
        %v1150 = vadd.f32 %v832, %v1075
        %v1151 = vadd.f32 %v835, %v1078
        %v1152 = vadd.f32 %v838, %v1081
        %v1153 = vadd.f32 %v841, %v1084
        %v1154 = vadd.f32 %v844, %v1087
        %v1155 = vadd.f32 %v847, %v1090
        %v1156 = vadd.f32 %v850, %v1093
        %v1157 = vadd.f32 %v853, %v1096
        %v1158 = vadd.f32 %v856, %v1099
        %v1159 = vadd.f32 %v859, %v1102
        %v1160 = vadd.f32 %v862, %v1105
        %v1161 = vadd.f32 %v865, %v1108
        %v1162 = vadd.f32 %v868, %v1111
        %v1163 = vadd.f32 %v871, %v1114
        %v1164 = vadd.f32 %v874, %v1117
        %v1165 = vadd.f32 %v877, %v1120
        %v1166 = vadd.f32 %v880, %v1123
        %v1167 = vadd.f32 %v883, %v1126
        %v1168 = vadd.f32 %v886, %v1129
        %v1169 = vadd.f32 %v889, %v1132
        %v1170 = vadd.f32 %v892, %v1135
        %v1171 = vadd.f32 %v895, %v1138
        %v1172 = vld [vmem:[%s379] sm:$0xff]
        %v1173 = vld [vmem:[%s379 + $0x8] sm:$0xff]
        %v1174 = vld [vmem:[%s379 + $0x18] sm:$0xff]
        %v1175 = vld [vmem:[%s379 + $0x20] sm:$0xff]
        %v1176 = vld [vmem:[%s379 + $0x30] sm:$0xff]
        %v1177 = vld [vmem:[%s379 + $0x38] sm:$0xff]
        %v1178 = vld [vmem:[%s379 + $0x48] sm:$0xff]
        %v1179 = vld [vmem:[%s379 + $0x50] sm:$0xff]
        %v1180 = vld [vmem:[%s379 + $0x60] sm:$0xff]
        %v1181 = vld [vmem:[%s379 + $0x68] sm:$0xff]
        %v1182 = vld [vmem:[%s379 + $0x78] sm:$0xff]
        %v1183 = vld [vmem:[%s379 + $0x80] sm:$0xff]
        %v1184 = vld [vmem:[%s379 + $0x90] sm:$0xff]
        %v1185 = vld [vmem:[%s379 + $0x98] sm:$0xff]
        %v1186 = vld [vmem:[%s379 + $0xa8] sm:$0xff]
        %v1187 = vld [vmem:[%s379 + $0xb0] sm:$0xff]
        %v1188 = vld [vmem:[%s379 + $0xc0] sm:$0xff]
        %v1189 = vld [vmem:[%s379 + $0xc8] sm:$0xff]
        %v1190 = vld [vmem:[%s379 + $0xd8] sm:$0xff]
        %v1191 = vld [vmem:[%s379 + $0xe0] sm:$0xff]
        %v1192 = vld [vmem:[%s379 + $0xf0] sm:$0xff]
        %v1193 = vld [vmem:[%s379 + $0xf8] sm:$0xff]
        %v1194 = vld [vmem:[%s379 + $0x108] sm:$0xff]
        %v1195 = vld [vmem:[%s379 + $0x110] sm:$0xff]
        %v1196 = vld [vmem:[%s379 + $0x120] sm:$0xff]
        %v1197 = vld [vmem:[%s379 + $0x128] sm:$0xff]
        %v1198 = vld [vmem:[%s379 + $0x138] sm:$0xff]
        %v1199 = vld [vmem:[%s379 + $0x140] sm:$0xff]
        %v1200 = vld [vmem:[%s379 + $0x150] sm:$0xff]
        %v1201 = vld [vmem:[%s379 + $0x158] sm:$0xff]
        %v1202 = vld [vmem:[%s379 + $0x168] sm:$0xff]
        %v1203 = vld [vmem:[%s379 + $0x170] sm:$0xff]
        %s1204 = scalar_lea.vmem %s2, 24
        %v1205 = vld [vmem:[%s1204] sm:$0xff]
        %v1207 = vsel %vm291, %v1172, 0
        %v1210 = vsel %vm291, %v1173, 0
        %v1213 = vsel %vm291, %v1174, 0
        %v1216 = vsel %vm291, %v1175, 0
        %v1219 = vsel %vm291, %v1176, 0
        %v1222 = vsel %vm291, %v1177, 0
        %v1225 = vsel %vm291, %v1178, 0
        %v1228 = vsel %vm291, %v1179, 0
        %v1231 = vsel %vm291, %v1180, 0
        %v1234 = vsel %vm291, %v1181, 0
        %v1237 = vsel %vm291, %v1182, 0
        %v1240 = vsel %vm291, %v1183, 0
        %v1243 = vsel %vm291, %v1184, 0
        %v1246 = vsel %vm291, %v1185, 0
        %v1249 = vsel %vm291, %v1186, 0
        %v1252 = vsel %vm291, %v1187, 0
        %v1255 = vsel %vm291, %v1188, 0
        %v1258 = vsel %vm291, %v1189, 0
        %v1261 = vsel %vm291, %v1190, 0
        %v1264 = vsel %vm291, %v1191, 0
        %v1267 = vsel %vm291, %v1192, 0
        %v1270 = vsel %vm291, %v1193, 0
        %v1273 = vsel %vm291, %v1194, 0
        %v1276 = vsel %vm291, %v1195, 0
        %v1279 = vsel %vm291, %v1196, 0
        %v1282 = vsel %vm291, %v1197, 0
        %v1285 = vsel %vm291, %v1198, 0
        %v1288 = vsel %vm291, %v1199, 0
        %v1291 = vsel %vm291, %v1200, 0
        %v1294 = vsel %vm291, %v1201, 0
        %v1297 = vsel %vm291, %v1202, 0
        %v1300 = vsel %vm291, %v1203, 0
        %1302 = vmatpush.msra.mxu0 0.0
        %1303 = vmatpush.msra.mxu0 0.0
        %1304 = vmatpush.msra.mxu0 0.0
        %1305 = vmatpush.msra.mxu0 0.0
        %1306 = vmatpush.msra.mxu0 0.0
        %1307 = vmatpush.msra.mxu0 0.0
        %1308 = vmatpush.msra.mxu0 0.0
        %1309 = vmatpush.msra.mxu0 0.0
        %1310 = vmatpush.msra.mxu0 0.0
        %1311 = vmatpush.msra.mxu0 0.0
        %1312 = vmatpush.msra.mxu0 0.0
        %1313 = vmatpush.msra.mxu0 0.0
        %1314 = vmatpush.msra.mxu0 0.0
        %1315 = vmatpush.msra.mxu0 0.0
        %1316 = vmatpush.msra.mxu0 0.0
        %1317 = vmatpush.msra.mxu0 %v1205
        %1318 = vmatmul.f32.gmra.mxu0 %v1207
        %v1319 = vpop.f32.mrf.mxu0
        %v1320 = vadd.f32 0.0, %v1319
        %1321 = vmatmul.f32.gmra.mxu0 %v1210
        %v1322 = vpop.f32.mrf.mxu0
        %v1323 = vadd.f32 0.0, %v1322
        %1324 = vmatmul.f32.gmra.mxu0 %v1213
        %v1325 = vpop.f32.mrf.mxu0
        %v1326 = vadd.f32 0.0, %v1325
        %1327 = vmatmul.f32.gmra.mxu0 %v1216
        %v1328 = vpop.f32.mrf.mxu0
        %v1329 = vadd.f32 0.0, %v1328
        %1330 = vmatmul.f32.gmra.mxu0 %v1219
        %v1331 = vpop.f32.mrf.mxu0
        %v1332 = vadd.f32 0.0, %v1331
        %1333 = vmatmul.f32.gmra.mxu0 %v1222
        %v1334 = vpop.f32.mrf.mxu0
        %v1335 = vadd.f32 0.0, %v1334
        %1336 = vmatmul.f32.gmra.mxu0 %v1225
        %v1337 = vpop.f32.mrf.mxu0
        %v1338 = vadd.f32 0.0, %v1337
        %1339 = vmatmul.f32.gmra.mxu0 %v1228
        %v1340 = vpop.f32.mrf.mxu0
        %v1341 = vadd.f32 0.0, %v1340
        %1342 = vmatmul.f32.gmra.mxu0 %v1231
        %v1343 = vpop.f32.mrf.mxu0
        %v1344 = vadd.f32 0.0, %v1343
        %1345 = vmatmul.f32.gmra.mxu0 %v1234
        %v1346 = vpop.f32.mrf.mxu0
        %v1347 = vadd.f32 0.0, %v1346
        %1348 = vmatmul.f32.gmra.mxu0 %v1237
        %v1349 = vpop.f32.mrf.mxu0
        %v1350 = vadd.f32 0.0, %v1349
        %1351 = vmatmul.f32.gmra.mxu0 %v1240
        %v1352 = vpop.f32.mrf.mxu0
        %v1353 = vadd.f32 0.0, %v1352
        %1354 = vmatmul.f32.gmra.mxu0 %v1243
        %v1355 = vpop.f32.mrf.mxu0
        %v1356 = vadd.f32 0.0, %v1355
        %1357 = vmatmul.f32.gmra.mxu0 %v1246
        %v1358 = vpop.f32.mrf.mxu0
        %v1359 = vadd.f32 0.0, %v1358
        %1360 = vmatmul.f32.gmra.mxu0 %v1249
        %v1361 = vpop.f32.mrf.mxu0
        %v1362 = vadd.f32 0.0, %v1361
        %1363 = vmatmul.f32.gmra.mxu0 %v1252
        %v1364 = vpop.f32.mrf.mxu0
        %v1365 = vadd.f32 0.0, %v1364
        %1366 = vmatmul.f32.gmra.mxu0 %v1255
        %v1367 = vpop.f32.mrf.mxu0
        %v1368 = vadd.f32 0.0, %v1367
        %1369 = vmatmul.f32.gmra.mxu0 %v1258
        %v1370 = vpop.f32.mrf.mxu0
        %v1371 = vadd.f32 0.0, %v1370
        %1372 = vmatmul.f32.gmra.mxu0 %v1261
        %v1373 = vpop.f32.mrf.mxu0
        %v1374 = vadd.f32 0.0, %v1373
        %1375 = vmatmul.f32.gmra.mxu0 %v1264
        %v1376 = vpop.f32.mrf.mxu0
        %v1377 = vadd.f32 0.0, %v1376
        %1378 = vmatmul.f32.gmra.mxu0 %v1267
        %v1379 = vpop.f32.mrf.mxu0
        %v1380 = vadd.f32 0.0, %v1379
        %1381 = vmatmul.f32.gmra.mxu0 %v1270
        %v1382 = vpop.f32.mrf.mxu0
        %v1383 = vadd.f32 0.0, %v1382
        %1384 = vmatmul.f32.gmra.mxu0 %v1273
        %v1385 = vpop.f32.mrf.mxu0
        %v1386 = vadd.f32 0.0, %v1385
        %1387 = vmatmul.f32.gmra.mxu0 %v1276
        %v1388 = vpop.f32.mrf.mxu0
        %v1389 = vadd.f32 0.0, %v1388
        %1390 = vmatmul.f32.gmra.mxu0 %v1279
        %v1391 = vpop.f32.mrf.mxu0
        %v1392 = vadd.f32 0.0, %v1391
        %1393 = vmatmul.f32.gmra.mxu0 %v1282
        %v1394 = vpop.f32.mrf.mxu0
        %v1395 = vadd.f32 0.0, %v1394
        %1396 = vmatmul.f32.gmra.mxu0 %v1285
        %v1397 = vpop.f32.mrf.mxu0
        %v1398 = vadd.f32 0.0, %v1397
        %1399 = vmatmul.f32.gmra.mxu0 %v1288
        %v1400 = vpop.f32.mrf.mxu0
        %v1401 = vadd.f32 0.0, %v1400
        %1402 = vmatmul.f32.gmra.mxu0 %v1291
        %v1403 = vpop.f32.mrf.mxu0
        %v1404 = vadd.f32 0.0, %v1403
        %1405 = vmatmul.f32.gmra.mxu0 %v1294
        %v1406 = vpop.f32.mrf.mxu0
        %v1407 = vadd.f32 0.0, %v1406
        %1408 = vmatmul.f32.gmra.mxu0 %v1297
        %v1409 = vpop.f32.mrf.mxu0
        %v1410 = vadd.f32 0.0, %v1409
        %1411 = vmatmul.f32.gmra.mxu0 %v1300
        %v1412 = vpop.f32.mrf.mxu0
        %v1413 = vadd.f32 0.0, %v1412
        %1414 = vdwg.mxu0
        %v1415 = vadd.f32 %v1140, %v1320
        %v1416 = vadd.f32 %v1141, %v1323
        %v1417 = vadd.f32 %v1142, %v1326
        %v1418 = vadd.f32 %v1143, %v1329
        %v1419 = vadd.f32 %v1144, %v1332
        %v1420 = vadd.f32 %v1145, %v1335
        %v1421 = vadd.f32 %v1146, %v1338
        %v1422 = vadd.f32 %v1147, %v1341
        %v1423 = vadd.f32 %v1148, %v1344
        %v1424 = vadd.f32 %v1149, %v1347
        %v1425 = vadd.f32 %v1150, %v1350
        %v1426 = vadd.f32 %v1151, %v1353
        %v1427 = vadd.f32 %v1152, %v1356
        %v1428 = vadd.f32 %v1153, %v1359
        %v1429 = vadd.f32 %v1154, %v1362
        %v1430 = vadd.f32 %v1155, %v1365
        %v1431 = vadd.f32 %v1156, %v1368
        %v1432 = vadd.f32 %v1157, %v1371
        %v1433 = vadd.f32 %v1158, %v1374
        %v1434 = vadd.f32 %v1159, %v1377
        %v1435 = vadd.f32 %v1160, %v1380
        %v1436 = vadd.f32 %v1161, %v1383
        %v1437 = vadd.f32 %v1162, %v1386
        %v1438 = vadd.f32 %v1163, %v1389
        %v1439 = vadd.f32 %v1164, %v1392
        %v1440 = vadd.f32 %v1165, %v1395
        %v1441 = vadd.f32 %v1166, %v1398
        %v1442 = vadd.f32 %v1167, %v1401
        %v1443 = vadd.f32 %v1168, %v1404
        %v1444 = vadd.f32 %v1169, %v1407
        %v1445 = vadd.f32 %v1170, %v1410
        %v1446 = vadd.f32 %v1171, %v1413
        %v1447 = vld [vmem:[%s379 + $0x1] sm:$0xff]
        %v1448 = vld [vmem:[%s379 + $0x9] sm:$0xff]
        %v1449 = vld [vmem:[%s379 + $0x19] sm:$0xff]
        %v1450 = vld [vmem:[%s379 + $0x21] sm:$0xff]
        %v1451 = vld [vmem:[%s379 + $0x31] sm:$0xff]
        %v1452 = vld [vmem:[%s379 + $0x39] sm:$0xff]
        %v1453 = vld [vmem:[%s379 + $0x49] sm:$0xff]
        %v1454 = vld [vmem:[%s379 + $0x51] sm:$0xff]
        %v1455 = vld [vmem:[%s379 + $0x61] sm:$0xff]
        %v1456 = vld [vmem:[%s379 + $0x69] sm:$0xff]
        %v1457 = vld [vmem:[%s379 + $0x79] sm:$0xff]
        %v1458 = vld [vmem:[%s379 + $0x81] sm:$0xff]
        %v1459 = vld [vmem:[%s379 + $0x91] sm:$0xff]
        %v1460 = vld [vmem:[%s379 + $0x99] sm:$0xff]
        %v1461 = vld [vmem:[%s379 + $0xa9] sm:$0xff]
        %v1462 = vld [vmem:[%s379 + $0xb1] sm:$0xff]
        %v1463 = vld [vmem:[%s379 + $0xc1] sm:$0xff]
        %v1464 = vld [vmem:[%s379 + $0xc9] sm:$0xff]
        %v1465 = vld [vmem:[%s379 + $0xd9] sm:$0xff]
        %v1466 = vld [vmem:[%s379 + $0xe1] sm:$0xff]
        %v1467 = vld [vmem:[%s379 + $0xf1] sm:$0xff]
        %v1468 = vld [vmem:[%s379 + $0xf9] sm:$0xff]
        %v1469 = vld [vmem:[%s379 + $0x109] sm:$0xff]
        %v1470 = vld [vmem:[%s379 + $0x111] sm:$0xff]
        %v1471 = vld [vmem:[%s379 + $0x121] sm:$0xff]
        %v1472 = vld [vmem:[%s379 + $0x129] sm:$0xff]
        %v1473 = vld [vmem:[%s379 + $0x139] sm:$0xff]
        %v1474 = vld [vmem:[%s379 + $0x141] sm:$0xff]
        %v1475 = vld [vmem:[%s379 + $0x151] sm:$0xff]
        %v1476 = vld [vmem:[%s379 + $0x159] sm:$0xff]
        %v1477 = vld [vmem:[%s379 + $0x169] sm:$0xff]
        %v1478 = vld [vmem:[%s379 + $0x171] sm:$0xff]
        %s1479 = scalar_lea.vmem %s2, 32
        %v1480 = vld [vmem:[%s1479] sm:$0xff]
        %v1482 = vsel %vm291, %v1447, 0
        %v1485 = vsel %vm291, %v1448, 0
        %v1488 = vsel %vm291, %v1449, 0
        %v1491 = vsel %vm291, %v1450, 0
        %v1494 = vsel %vm291, %v1451, 0
        %v1497 = vsel %vm291, %v1452, 0
        %v1500 = vsel %vm291, %v1453, 0
        %v1503 = vsel %vm291, %v1454, 0
        %v1506 = vsel %vm291, %v1455, 0
        %v1509 = vsel %vm291, %v1456, 0
        %v1512 = vsel %vm291, %v1457, 0
        %v1515 = vsel %vm291, %v1458, 0
        %v1518 = vsel %vm291, %v1459, 0
        %v1521 = vsel %vm291, %v1460, 0
        %v1524 = vsel %vm291, %v1461, 0
        %v1527 = vsel %vm291, %v1462, 0
        %v1530 = vsel %vm291, %v1463, 0
        %v1533 = vsel %vm291, %v1464, 0
        %v1536 = vsel %vm291, %v1465, 0
        %v1539 = vsel %vm291, %v1466, 0
        %v1542 = vsel %vm291, %v1467, 0
        %v1545 = vsel %vm291, %v1468, 0
        %v1548 = vsel %vm291, %v1469, 0
        %v1551 = vsel %vm291, %v1470, 0
        %v1554 = vsel %vm291, %v1471, 0
        %v1557 = vsel %vm291, %v1472, 0
        %v1560 = vsel %vm291, %v1473, 0
        %v1563 = vsel %vm291, %v1474, 0
        %v1566 = vsel %vm291, %v1475, 0
        %v1569 = vsel %vm291, %v1476, 0
        %v1572 = vsel %vm291, %v1477, 0
        %v1575 = vsel %vm291, %v1478, 0
        %1577 = vmatpush.msra.mxu0 0.0
        %1578 = vmatpush.msra.mxu0 0.0
        %1579 = vmatpush.msra.mxu0 0.0
        %1580 = vmatpush.msra.mxu0 0.0
        %1581 = vmatpush.msra.mxu0 0.0
        %1582 = vmatpush.msra.mxu0 0.0
        %1583 = vmatpush.msra.mxu0 0.0
        %1584 = vmatpush.msra.mxu0 0.0
        %1585 = vmatpush.msra.mxu0 0.0
        %1586 = vmatpush.msra.mxu0 0.0
        %1587 = vmatpush.msra.mxu0 0.0
        %1588 = vmatpush.msra.mxu0 0.0
        %1589 = vmatpush.msra.mxu0 0.0
        %1590 = vmatpush.msra.mxu0 0.0
        %1591 = vmatpush.msra.mxu0 0.0
        %1592 = vmatpush.msra.mxu0 %v1480
        %1593 = vmatmul.f32.gmra.mxu0 %v1482
        %v1594 = vpop.f32.mrf.mxu0
        %v1595 = vadd.f32 0.0, %v1594
        %1596 = vmatmul.f32.gmra.mxu0 %v1485
        %v1597 = vpop.f32.mrf.mxu0
        %v1598 = vadd.f32 0.0, %v1597
        %1599 = vmatmul.f32.gmra.mxu0 %v1488
        %v1600 = vpop.f32.mrf.mxu0
        %v1601 = vadd.f32 0.0, %v1600
        %1602 = vmatmul.f32.gmra.mxu0 %v1491
        %v1603 = vpop.f32.mrf.mxu0
        %v1604 = vadd.f32 0.0, %v1603
        %1605 = vmatmul.f32.gmra.mxu0 %v1494
        %v1606 = vpop.f32.mrf.mxu0
        %v1607 = vadd.f32 0.0, %v1606
        %1608 = vmatmul.f32.gmra.mxu0 %v1497
        %v1609 = vpop.f32.mrf.mxu0
        %v1610 = vadd.f32 0.0, %v1609
        %1611 = vmatmul.f32.gmra.mxu0 %v1500
        %v1612 = vpop.f32.mrf.mxu0
        %v1613 = vadd.f32 0.0, %v1612
        %1614 = vmatmul.f32.gmra.mxu0 %v1503
        %v1615 = vpop.f32.mrf.mxu0
        %v1616 = vadd.f32 0.0, %v1615
        %1617 = vmatmul.f32.gmra.mxu0 %v1506
        %v1618 = vpop.f32.mrf.mxu0
        %v1619 = vadd.f32 0.0, %v1618
        %1620 = vmatmul.f32.gmra.mxu0 %v1509
        %v1621 = vpop.f32.mrf.mxu0
        %v1622 = vadd.f32 0.0, %v1621
        %1623 = vmatmul.f32.gmra.mxu0 %v1512
        %v1624 = vpop.f32.mrf.mxu0
        %v1625 = vadd.f32 0.0, %v1624
        %1626 = vmatmul.f32.gmra.mxu0 %v1515
        %v1627 = vpop.f32.mrf.mxu0
        %v1628 = vadd.f32 0.0, %v1627
        %1629 = vmatmul.f32.gmra.mxu0 %v1518
        %v1630 = vpop.f32.mrf.mxu0
        %v1631 = vadd.f32 0.0, %v1630
        %1632 = vmatmul.f32.gmra.mxu0 %v1521
        %v1633 = vpop.f32.mrf.mxu0
        %v1634 = vadd.f32 0.0, %v1633
        %1635 = vmatmul.f32.gmra.mxu0 %v1524
        %v1636 = vpop.f32.mrf.mxu0
        %v1637 = vadd.f32 0.0, %v1636
        %1638 = vmatmul.f32.gmra.mxu0 %v1527
        %v1639 = vpop.f32.mrf.mxu0
        %v1640 = vadd.f32 0.0, %v1639
        %1641 = vmatmul.f32.gmra.mxu0 %v1530
        %v1642 = vpop.f32.mrf.mxu0
        %v1643 = vadd.f32 0.0, %v1642
        %1644 = vmatmul.f32.gmra.mxu0 %v1533
        %v1645 = vpop.f32.mrf.mxu0
        %v1646 = vadd.f32 0.0, %v1645
        %1647 = vmatmul.f32.gmra.mxu0 %v1536
        %v1648 = vpop.f32.mrf.mxu0
        %v1649 = vadd.f32 0.0, %v1648
        %1650 = vmatmul.f32.gmra.mxu0 %v1539
        %v1651 = vpop.f32.mrf.mxu0
        %v1652 = vadd.f32 0.0, %v1651
        %1653 = vmatmul.f32.gmra.mxu0 %v1542
        %v1654 = vpop.f32.mrf.mxu0
        %v1655 = vadd.f32 0.0, %v1654
        %1656 = vmatmul.f32.gmra.mxu0 %v1545
        %v1657 = vpop.f32.mrf.mxu0
        %v1658 = vadd.f32 0.0, %v1657
        %1659 = vmatmul.f32.gmra.mxu0 %v1548
        %v1660 = vpop.f32.mrf.mxu0
        %v1661 = vadd.f32 0.0, %v1660
        %1662 = vmatmul.f32.gmra.mxu0 %v1551
        %v1663 = vpop.f32.mrf.mxu0
        %v1664 = vadd.f32 0.0, %v1663
        %1665 = vmatmul.f32.gmra.mxu0 %v1554
        %v1666 = vpop.f32.mrf.mxu0
        %v1667 = vadd.f32 0.0, %v1666
        %1668 = vmatmul.f32.gmra.mxu0 %v1557
        %v1669 = vpop.f32.mrf.mxu0
        %v1670 = vadd.f32 0.0, %v1669
        %1671 = vmatmul.f32.gmra.mxu0 %v1560
        %v1672 = vpop.f32.mrf.mxu0
        %v1673 = vadd.f32 0.0, %v1672
        %1674 = vmatmul.f32.gmra.mxu0 %v1563
        %v1675 = vpop.f32.mrf.mxu0
        %v1676 = vadd.f32 0.0, %v1675
        %1677 = vmatmul.f32.gmra.mxu0 %v1566
        %v1678 = vpop.f32.mrf.mxu0
        %v1679 = vadd.f32 0.0, %v1678
        %1680 = vmatmul.f32.gmra.mxu0 %v1569
        %v1681 = vpop.f32.mrf.mxu0
        %v1682 = vadd.f32 0.0, %v1681
        %1683 = vmatmul.f32.gmra.mxu0 %v1572
        %v1684 = vpop.f32.mrf.mxu0
        %v1685 = vadd.f32 0.0, %v1684
        %1686 = vmatmul.f32.gmra.mxu0 %v1575
        %v1687 = vpop.f32.mrf.mxu0
        %v1688 = vadd.f32 0.0, %v1687
        %1689 = vdwg.mxu0
        %v1690 = vadd.f32 %v1415, %v1595
        %v1691 = vadd.f32 %v1416, %v1598
        %v1692 = vadd.f32 %v1417, %v1601
        %v1693 = vadd.f32 %v1418, %v1604
        %v1694 = vadd.f32 %v1419, %v1607
        %v1695 = vadd.f32 %v1420, %v1610
        %v1696 = vadd.f32 %v1421, %v1613
        %v1697 = vadd.f32 %v1422, %v1616
        %v1698 = vadd.f32 %v1423, %v1619
        %v1699 = vadd.f32 %v1424, %v1622
        %v1700 = vadd.f32 %v1425, %v1625
        %v1701 = vadd.f32 %v1426, %v1628
        %v1702 = vadd.f32 %v1427, %v1631
        %v1703 = vadd.f32 %v1428, %v1634
        %v1704 = vadd.f32 %v1429, %v1637
        %v1705 = vadd.f32 %v1430, %v1640
        %v1706 = vadd.f32 %v1431, %v1643
        %v1707 = vadd.f32 %v1432, %v1646
        %v1708 = vadd.f32 %v1433, %v1649
        %v1709 = vadd.f32 %v1434, %v1652
        %v1710 = vadd.f32 %v1435, %v1655
        %v1711 = vadd.f32 %v1436, %v1658
        %v1712 = vadd.f32 %v1437, %v1661
        %v1713 = vadd.f32 %v1438, %v1664
        %v1714 = vadd.f32 %v1439, %v1667
        %v1715 = vadd.f32 %v1440, %v1670
        %v1716 = vadd.f32 %v1441, %v1673
        %v1717 = vadd.f32 %v1442, %v1676
        %v1718 = vadd.f32 %v1443, %v1679
        %v1719 = vadd.f32 %v1444, %v1682
        %v1720 = vadd.f32 %v1445, %v1685
        %v1721 = vadd.f32 %v1446, %v1688
        %v1722 = vld [vmem:[%s379 + $0x2] sm:$0xff]
        %v1723 = vld [vmem:[%s379 + $0xa] sm:$0xff]
        %v1724 = vld [vmem:[%s379 + $0x1a] sm:$0xff]
        %v1725 = vld [vmem:[%s379 + $0x22] sm:$0xff]
        %v1726 = vld [vmem:[%s379 + $0x32] sm:$0xff]
        %v1727 = vld [vmem:[%s379 + $0x3a] sm:$0xff]
        %v1728 = vld [vmem:[%s379 + $0x4a] sm:$0xff]
        %v1729 = vld [vmem:[%s379 + $0x52] sm:$0xff]
        %v1730 = vld [vmem:[%s379 + $0x62] sm:$0xff]
        %v1731 = vld [vmem:[%s379 + $0x6a] sm:$0xff]
        %v1732 = vld [vmem:[%s379 + $0x7a] sm:$0xff]
        %v1733 = vld [vmem:[%s379 + $0x82] sm:$0xff]
        %v1734 = vld [vmem:[%s379 + $0x92] sm:$0xff]
        %v1735 = vld [vmem:[%s379 + $0x9a] sm:$0xff]
        %v1736 = vld [vmem:[%s379 + $0xaa] sm:$0xff]
        %v1737 = vld [vmem:[%s379 + $0xb2] sm:$0xff]
        %v1738 = vld [vmem:[%s379 + $0xc2] sm:$0xff]
        %v1739 = vld [vmem:[%s379 + $0xca] sm:$0xff]
        %v1740 = vld [vmem:[%s379 + $0xda] sm:$0xff]
        %v1741 = vld [vmem:[%s379 + $0xe2] sm:$0xff]
        %v1742 = vld [vmem:[%s379 + $0xf2] sm:$0xff]
        %v1743 = vld [vmem:[%s379 + $0xfa] sm:$0xff]
        %v1744 = vld [vmem:[%s379 + $0x10a] sm:$0xff]
        %v1745 = vld [vmem:[%s379 + $0x112] sm:$0xff]
        %v1746 = vld [vmem:[%s379 + $0x122] sm:$0xff]
        %v1747 = vld [vmem:[%s379 + $0x12a] sm:$0xff]
        %v1748 = vld [vmem:[%s379 + $0x13a] sm:$0xff]
        %v1749 = vld [vmem:[%s379 + $0x142] sm:$0xff]
        %v1750 = vld [vmem:[%s379 + $0x152] sm:$0xff]
        %v1751 = vld [vmem:[%s379 + $0x15a] sm:$0xff]
        %v1752 = vld [vmem:[%s379 + $0x16a] sm:$0xff]
        %v1753 = vld [vmem:[%s379 + $0x172] sm:$0xff]
        %s1754 = scalar_lea.vmem %s2, 40
        %v1755 = vld [vmem:[%s1754] sm:$0xff]
        %v1757 = vsel %vm291, %v1722, 0
        %v1760 = vsel %vm291, %v1723, 0
        %v1763 = vsel %vm291, %v1724, 0
        %v1766 = vsel %vm291, %v1725, 0
        %v1769 = vsel %vm291, %v1726, 0
        %v1772 = vsel %vm291, %v1727, 0
        %v1775 = vsel %vm291, %v1728, 0
        %v1778 = vsel %vm291, %v1729, 0
        %v1781 = vsel %vm291, %v1730, 0
        %v1784 = vsel %vm291, %v1731, 0
        %v1787 = vsel %vm291, %v1732, 0
        %v1790 = vsel %vm291, %v1733, 0
        %v1793 = vsel %vm291, %v1734, 0
        %v1796 = vsel %vm291, %v1735, 0
        %v1799 = vsel %vm291, %v1736, 0
        %v1802 = vsel %vm291, %v1737, 0
        %v1805 = vsel %vm291, %v1738, 0
        %v1808 = vsel %vm291, %v1739, 0
        %v1811 = vsel %vm291, %v1740, 0
        %v1814 = vsel %vm291, %v1741, 0
        %v1817 = vsel %vm291, %v1742, 0
        %v1820 = vsel %vm291, %v1743, 0
        %v1823 = vsel %vm291, %v1744, 0
        %v1826 = vsel %vm291, %v1745, 0
        %v1829 = vsel %vm291, %v1746, 0
        %v1832 = vsel %vm291, %v1747, 0
        %v1835 = vsel %vm291, %v1748, 0
        %v1838 = vsel %vm291, %v1749, 0
        %v1841 = vsel %vm291, %v1750, 0
        %v1844 = vsel %vm291, %v1751, 0
        %v1847 = vsel %vm291, %v1752, 0
        %v1850 = vsel %vm291, %v1753, 0
        %1852 = vmatpush.msra.mxu0 0.0
        %1853 = vmatpush.msra.mxu0 0.0
        %1854 = vmatpush.msra.mxu0 0.0
        %1855 = vmatpush.msra.mxu0 0.0
        %1856 = vmatpush.msra.mxu0 0.0
        %1857 = vmatpush.msra.mxu0 0.0
        %1858 = vmatpush.msra.mxu0 0.0
        %1859 = vmatpush.msra.mxu0 0.0
        %1860 = vmatpush.msra.mxu0 0.0
        %1861 = vmatpush.msra.mxu0 0.0
        %1862 = vmatpush.msra.mxu0 0.0
        %1863 = vmatpush.msra.mxu0 0.0
        %1864 = vmatpush.msra.mxu0 0.0
        %1865 = vmatpush.msra.mxu0 0.0
        %1866 = vmatpush.msra.mxu0 0.0
        %1867 = vmatpush.msra.mxu0 %v1755
        %1868 = vmatmul.f32.gmra.mxu0 %v1757
        %v1869 = vpop.f32.mrf.mxu0
        %v1870 = vadd.f32 0.0, %v1869
        %1871 = vmatmul.f32.gmra.mxu0 %v1760
        %v1872 = vpop.f32.mrf.mxu0
        %v1873 = vadd.f32 0.0, %v1872
        %1874 = vmatmul.f32.gmra.mxu0 %v1763
        %v1875 = vpop.f32.mrf.mxu0
        %v1876 = vadd.f32 0.0, %v1875
        %1877 = vmatmul.f32.gmra.mxu0 %v1766
        %v1878 = vpop.f32.mrf.mxu0
        %v1879 = vadd.f32 0.0, %v1878
        %1880 = vmatmul.f32.gmra.mxu0 %v1769
        %v1881 = vpop.f32.mrf.mxu0
        %v1882 = vadd.f32 0.0, %v1881
        %1883 = vmatmul.f32.gmra.mxu0 %v1772
        %v1884 = vpop.f32.mrf.mxu0
        %v1885 = vadd.f32 0.0, %v1884
        %1886 = vmatmul.f32.gmra.mxu0 %v1775
        %v1887 = vpop.f32.mrf.mxu0
        %v1888 = vadd.f32 0.0, %v1887
        %1889 = vmatmul.f32.gmra.mxu0 %v1778
        %v1890 = vpop.f32.mrf.mxu0
        %v1891 = vadd.f32 0.0, %v1890
        %1892 = vmatmul.f32.gmra.mxu0 %v1781
        %v1893 = vpop.f32.mrf.mxu0
        %v1894 = vadd.f32 0.0, %v1893
        %1895 = vmatmul.f32.gmra.mxu0 %v1784
        %v1896 = vpop.f32.mrf.mxu0
        %v1897 = vadd.f32 0.0, %v1896
        %1898 = vmatmul.f32.gmra.mxu0 %v1787
        %v1899 = vpop.f32.mrf.mxu0
        %v1900 = vadd.f32 0.0, %v1899
        %1901 = vmatmul.f32.gmra.mxu0 %v1790
        %v1902 = vpop.f32.mrf.mxu0
        %v1903 = vadd.f32 0.0, %v1902
        %1904 = vmatmul.f32.gmra.mxu0 %v1793
        %v1905 = vpop.f32.mrf.mxu0
        %v1906 = vadd.f32 0.0, %v1905
        %1907 = vmatmul.f32.gmra.mxu0 %v1796
        %v1908 = vpop.f32.mrf.mxu0
        %v1909 = vadd.f32 0.0, %v1908
        %1910 = vmatmul.f32.gmra.mxu0 %v1799
        %v1911 = vpop.f32.mrf.mxu0
        %v1912 = vadd.f32 0.0, %v1911
        %1913 = vmatmul.f32.gmra.mxu0 %v1802
        %v1914 = vpop.f32.mrf.mxu0
        %v1915 = vadd.f32 0.0, %v1914
        %1916 = vmatmul.f32.gmra.mxu0 %v1805
        %v1917 = vpop.f32.mrf.mxu0
        %v1918 = vadd.f32 0.0, %v1917
        %1919 = vmatmul.f32.gmra.mxu0 %v1808
        %v1920 = vpop.f32.mrf.mxu0
        %v1921 = vadd.f32 0.0, %v1920
        %1922 = vmatmul.f32.gmra.mxu0 %v1811
        %v1923 = vpop.f32.mrf.mxu0
        %v1924 = vadd.f32 0.0, %v1923
        %1925 = vmatmul.f32.gmra.mxu0 %v1814
        %v1926 = vpop.f32.mrf.mxu0
        %v1927 = vadd.f32 0.0, %v1926
        %1928 = vmatmul.f32.gmra.mxu0 %v1817
        %v1929 = vpop.f32.mrf.mxu0
        %v1930 = vadd.f32 0.0, %v1929
        %1931 = vmatmul.f32.gmra.mxu0 %v1820
        %v1932 = vpop.f32.mrf.mxu0
        %v1933 = vadd.f32 0.0, %v1932
        %1934 = vmatmul.f32.gmra.mxu0 %v1823
        %v1935 = vpop.f32.mrf.mxu0
        %v1936 = vadd.f32 0.0, %v1935
        %1937 = vmatmul.f32.gmra.mxu0 %v1826
        %v1938 = vpop.f32.mrf.mxu0
        %v1939 = vadd.f32 0.0, %v1938
        %1940 = vmatmul.f32.gmra.mxu0 %v1829
        %v1941 = vpop.f32.mrf.mxu0
        %v1942 = vadd.f32 0.0, %v1941
        %1943 = vmatmul.f32.gmra.mxu0 %v1832
        %v1944 = vpop.f32.mrf.mxu0
        %v1945 = vadd.f32 0.0, %v1944
        %1946 = vmatmul.f32.gmra.mxu0 %v1835
        %v1947 = vpop.f32.mrf.mxu0
        %v1948 = vadd.f32 0.0, %v1947
        %1949 = vmatmul.f32.gmra.mxu0 %v1838
        %v1950 = vpop.f32.mrf.mxu0
        %v1951 = vadd.f32 0.0, %v1950
        %1952 = vmatmul.f32.gmra.mxu0 %v1841
        %v1953 = vpop.f32.mrf.mxu0
        %v1954 = vadd.f32 0.0, %v1953
        %1955 = vmatmul.f32.gmra.mxu0 %v1844
        %v1956 = vpop.f32.mrf.mxu0
        %v1957 = vadd.f32 0.0, %v1956
        %1958 = vmatmul.f32.gmra.mxu0 %v1847
        %v1959 = vpop.f32.mrf.mxu0
        %v1960 = vadd.f32 0.0, %v1959
        %1961 = vmatmul.f32.gmra.mxu0 %v1850
        %v1962 = vpop.f32.mrf.mxu0
        %v1963 = vadd.f32 0.0, %v1962
        %1964 = vdwg.mxu0
        %v1965 = vadd.f32 %v1690, %v1870
        %v1966 = vadd.f32 %v1691, %v1873
        %v1967 = vadd.f32 %v1692, %v1876
        %v1968 = vadd.f32 %v1693, %v1879
        %v1969 = vadd.f32 %v1694, %v1882
        %v1970 = vadd.f32 %v1695, %v1885
        %v1971 = vadd.f32 %v1696, %v1888
        %v1972 = vadd.f32 %v1697, %v1891
        %v1973 = vadd.f32 %v1698, %v1894
        %v1974 = vadd.f32 %v1699, %v1897
        %v1975 = vadd.f32 %v1700, %v1900
        %v1976 = vadd.f32 %v1701, %v1903
        %v1977 = vadd.f32 %v1702, %v1906
        %v1978 = vadd.f32 %v1703, %v1909
        %v1979 = vadd.f32 %v1704, %v1912
        %v1980 = vadd.f32 %v1705, %v1915
        %v1981 = vadd.f32 %v1706, %v1918
        %v1982 = vadd.f32 %v1707, %v1921
        %v1983 = vadd.f32 %v1708, %v1924
        %v1984 = vadd.f32 %v1709, %v1927
        %v1985 = vadd.f32 %v1710, %v1930
        %v1986 = vadd.f32 %v1711, %v1933
        %v1987 = vadd.f32 %v1712, %v1936
        %v1988 = vadd.f32 %v1713, %v1939
        %v1989 = vadd.f32 %v1714, %v1942
        %v1990 = vadd.f32 %v1715, %v1945
        %v1991 = vadd.f32 %v1716, %v1948
        %v1992 = vadd.f32 %v1717, %v1951
        %v1993 = vadd.f32 %v1718, %v1954
        %v1994 = vadd.f32 %v1719, %v1957
        %v1995 = vadd.f32 %v1720, %v1960
        %v1996 = vadd.f32 %v1721, %v1963
        %s1997 = scalar_lea.vmem [#allocation2], 48
        %v1998 = vld [vmem:[%s1997] sm:$0xff]
        %v1999 = vld [vmem:[%s1997 + $0x8] sm:$0xff]
        %v2000 = vld [vmem:[%s1997 + $0x18] sm:$0xff]
        %v2001 = vld [vmem:[%s1997 + $0x20] sm:$0xff]
        %v2002 = vld [vmem:[%s1997 + $0x30] sm:$0xff]
        %v2003 = vld [vmem:[%s1997 + $0x38] sm:$0xff]
        %v2004 = vld [vmem:[%s1997 + $0x48] sm:$0xff]
        %v2005 = vld [vmem:[%s1997 + $0x50] sm:$0xff]
        %v2006 = vld [vmem:[%s1997 + $0x60] sm:$0xff]
        %v2007 = vld [vmem:[%s1997 + $0x68] sm:$0xff]
        %v2008 = vld [vmem:[%s1997 + $0x78] sm:$0xff]
        %v2009 = vld [vmem:[%s1997 + $0x80] sm:$0xff]
        %v2010 = vld [vmem:[%s1997 + $0x90] sm:$0xff]
        %v2011 = vld [vmem:[%s1997 + $0x98] sm:$0xff]
        %v2012 = vld [vmem:[%s1997 + $0xa8] sm:$0xff]
        %v2013 = vld [vmem:[%s1997 + $0xb0] sm:$0xff]
        %v2014 = vld [vmem:[%s1997 + $0xc0] sm:$0xff]
        %v2015 = vld [vmem:[%s1997 + $0xc8] sm:$0xff]
        %v2016 = vld [vmem:[%s1997 + $0xd8] sm:$0xff]
        %v2017 = vld [vmem:[%s1997 + $0xe0] sm:$0xff]
        %v2018 = vld [vmem:[%s1997 + $0xf0] sm:$0xff]
        %v2019 = vld [vmem:[%s1997 + $0xf8] sm:$0xff]
        %v2020 = vld [vmem:[%s1997 + $0x108] sm:$0xff]
        %v2021 = vld [vmem:[%s1997 + $0x110] sm:$0xff]
        %v2022 = vld [vmem:[%s1997 + $0x120] sm:$0xff]
        %v2023 = vld [vmem:[%s1997 + $0x128] sm:$0xff]
        %v2024 = vld [vmem:[%s1997 + $0x138] sm:$0xff]
        %v2025 = vld [vmem:[%s1997 + $0x140] sm:$0xff]
        %v2026 = vld [vmem:[%s1997 + $0x150] sm:$0xff]
        %v2027 = vld [vmem:[%s1997 + $0x158] sm:$0xff]
        %v2028 = vld [vmem:[%s1997 + $0x168] sm:$0xff]
        %v2029 = vld [vmem:[%s1997 + $0x170] sm:$0xff]
        %s2030 = scalar_lea.vmem %s2, 48
        %v2031 = vld [vmem:[%s2030] sm:$0xff]
        %v2033 = vsel %vm291, %v1998, 0
        %v2036 = vsel %vm291, %v1999, 0
        %v2039 = vsel %vm291, %v2000, 0
        %v2042 = vsel %vm291, %v2001, 0
        %v2045 = vsel %vm291, %v2002, 0
        %v2048 = vsel %vm291, %v2003, 0
        %v2051 = vsel %vm291, %v2004, 0
        %v2054 = vsel %vm291, %v2005, 0
        %v2057 = vsel %vm291, %v2006, 0
        %v2060 = vsel %vm291, %v2007, 0
        %v2063 = vsel %vm291, %v2008, 0
        %v2066 = vsel %vm291, %v2009, 0
        %v2069 = vsel %vm291, %v2010, 0
        %v2072 = vsel %vm291, %v2011, 0
        %v2075 = vsel %vm291, %v2012, 0
        %v2078 = vsel %vm291, %v2013, 0
        %v2081 = vsel %vm291, %v2014, 0
        %v2084 = vsel %vm291, %v2015, 0
        %v2087 = vsel %vm291, %v2016, 0
        %v2090 = vsel %vm291, %v2017, 0
        %v2093 = vsel %vm291, %v2018, 0
        %v2096 = vsel %vm291, %v2019, 0
        %v2099 = vsel %vm291, %v2020, 0
        %v2102 = vsel %vm291, %v2021, 0
        %v2105 = vsel %vm291, %v2022, 0
        %v2108 = vsel %vm291, %v2023, 0
        %v2111 = vsel %vm291, %v2024, 0
        %v2114 = vsel %vm291, %v2025, 0
        %v2117 = vsel %vm291, %v2026, 0
        %v2120 = vsel %vm291, %v2027, 0
        %v2123 = vsel %vm291, %v2028, 0
        %v2126 = vsel %vm291, %v2029, 0
        %2128 = vmatpush.msra.mxu0 0.0
        %2129 = vmatpush.msra.mxu0 0.0
        %2130 = vmatpush.msra.mxu0 0.0
        %2131 = vmatpush.msra.mxu0 0.0
        %2132 = vmatpush.msra.mxu0 0.0
        %2133 = vmatpush.msra.mxu0 0.0
        %2134 = vmatpush.msra.mxu0 0.0
        %2135 = vmatpush.msra.mxu0 0.0
        %2136 = vmatpush.msra.mxu0 0.0
        %2137 = vmatpush.msra.mxu0 0.0
        %2138 = vmatpush.msra.mxu0 0.0
        %2139 = vmatpush.msra.mxu0 0.0
        %2140 = vmatpush.msra.mxu0 0.0
        %2141 = vmatpush.msra.mxu0 0.0
        %2142 = vmatpush.msra.mxu0 0.0
        %2143 = vmatpush.msra.mxu0 %v2031
        %2144 = vmatmul.f32.gmra.mxu0 %v2033
        %v2145 = vpop.f32.mrf.mxu0
        %v2146 = vadd.f32 0.0, %v2145
        %2147 = vmatmul.f32.gmra.mxu0 %v2036
        %v2148 = vpop.f32.mrf.mxu0
        %v2149 = vadd.f32 0.0, %v2148
        %2150 = vmatmul.f32.gmra.mxu0 %v2039
        %v2151 = vpop.f32.mrf.mxu0
        %v2152 = vadd.f32 0.0, %v2151
        %2153 = vmatmul.f32.gmra.mxu0 %v2042
        %v2154 = vpop.f32.mrf.mxu0
        %v2155 = vadd.f32 0.0, %v2154
        %2156 = vmatmul.f32.gmra.mxu0 %v2045
        %v2157 = vpop.f32.mrf.mxu0
        %v2158 = vadd.f32 0.0, %v2157
        %2159 = vmatmul.f32.gmra.mxu0 %v2048
        %v2160 = vpop.f32.mrf.mxu0
        %v2161 = vadd.f32 0.0, %v2160
        %2162 = vmatmul.f32.gmra.mxu0 %v2051
        %v2163 = vpop.f32.mrf.mxu0
        %v2164 = vadd.f32 0.0, %v2163
        %2165 = vmatmul.f32.gmra.mxu0 %v2054
        %v2166 = vpop.f32.mrf.mxu0
        %v2167 = vadd.f32 0.0, %v2166
        %2168 = vmatmul.f32.gmra.mxu0 %v2057
        %v2169 = vpop.f32.mrf.mxu0
        %v2170 = vadd.f32 0.0, %v2169
        %2171 = vmatmul.f32.gmra.mxu0 %v2060
        %v2172 = vpop.f32.mrf.mxu0
        %v2173 = vadd.f32 0.0, %v2172
        %2174 = vmatmul.f32.gmra.mxu0 %v2063
        %v2175 = vpop.f32.mrf.mxu0
        %v2176 = vadd.f32 0.0, %v2175
        %2177 = vmatmul.f32.gmra.mxu0 %v2066
        %v2178 = vpop.f32.mrf.mxu0
        %v2179 = vadd.f32 0.0, %v2178
        %2180 = vmatmul.f32.gmra.mxu0 %v2069
        %v2181 = vpop.f32.mrf.mxu0
        %v2182 = vadd.f32 0.0, %v2181
        %2183 = vmatmul.f32.gmra.mxu0 %v2072
        %v2184 = vpop.f32.mrf.mxu0
        %v2185 = vadd.f32 0.0, %v2184
        %2186 = vmatmul.f32.gmra.mxu0 %v2075
        %v2187 = vpop.f32.mrf.mxu0
        %v2188 = vadd.f32 0.0, %v2187
        %2189 = vmatmul.f32.gmra.mxu0 %v2078
        %v2190 = vpop.f32.mrf.mxu0
        %v2191 = vadd.f32 0.0, %v2190
        %2192 = vmatmul.f32.gmra.mxu0 %v2081
        %v2193 = vpop.f32.mrf.mxu0
        %v2194 = vadd.f32 0.0, %v2193
        %2195 = vmatmul.f32.gmra.mxu0 %v2084
        %v2196 = vpop.f32.mrf.mxu0
        %v2197 = vadd.f32 0.0, %v2196
        %2198 = vmatmul.f32.gmra.mxu0 %v2087
        %v2199 = vpop.f32.mrf.mxu0
        %v2200 = vadd.f32 0.0, %v2199
        %2201 = vmatmul.f32.gmra.mxu0 %v2090
        %v2202 = vpop.f32.mrf.mxu0
        %v2203 = vadd.f32 0.0, %v2202
        %2204 = vmatmul.f32.gmra.mxu0 %v2093
        %v2205 = vpop.f32.mrf.mxu0
        %v2206 = vadd.f32 0.0, %v2205
        %2207 = vmatmul.f32.gmra.mxu0 %v2096
        %v2208 = vpop.f32.mrf.mxu0
        %v2209 = vadd.f32 0.0, %v2208
        %2210 = vmatmul.f32.gmra.mxu0 %v2099
        %v2211 = vpop.f32.mrf.mxu0
        %v2212 = vadd.f32 0.0, %v2211
        %2213 = vmatmul.f32.gmra.mxu0 %v2102
        %v2214 = vpop.f32.mrf.mxu0
        %v2215 = vadd.f32 0.0, %v2214
        %2216 = vmatmul.f32.gmra.mxu0 %v2105
        %v2217 = vpop.f32.mrf.mxu0
        %v2218 = vadd.f32 0.0, %v2217
        %2219 = vmatmul.f32.gmra.mxu0 %v2108
        %v2220 = vpop.f32.mrf.mxu0
        %v2221 = vadd.f32 0.0, %v2220
        %2222 = vmatmul.f32.gmra.mxu0 %v2111
        %v2223 = vpop.f32.mrf.mxu0
        %v2224 = vadd.f32 0.0, %v2223
        %2225 = vmatmul.f32.gmra.mxu0 %v2114
        %v2226 = vpop.f32.mrf.mxu0
        %v2227 = vadd.f32 0.0, %v2226
        %2228 = vmatmul.f32.gmra.mxu0 %v2117
        %v2229 = vpop.f32.mrf.mxu0
        %v2230 = vadd.f32 0.0, %v2229
        %2231 = vmatmul.f32.gmra.mxu0 %v2120
        %v2232 = vpop.f32.mrf.mxu0
        %v2233 = vadd.f32 0.0, %v2232
        %2234 = vmatmul.f32.gmra.mxu0 %v2123
        %v2235 = vpop.f32.mrf.mxu0
        %v2236 = vadd.f32 0.0, %v2235
        %2237 = vmatmul.f32.gmra.mxu0 %v2126
        %v2238 = vpop.f32.mrf.mxu0
        %v2239 = vadd.f32 0.0, %v2238
        %2240 = vdwg.mxu0
        %v2241 = vadd.f32 %v1965, %v2146
        %v2242 = vadd.f32 %v1966, %v2149
        %v2243 = vadd.f32 %v1967, %v2152
        %v2244 = vadd.f32 %v1968, %v2155
        %v2245 = vadd.f32 %v1969, %v2158
        %v2246 = vadd.f32 %v1970, %v2161
        %v2247 = vadd.f32 %v1971, %v2164
        %v2248 = vadd.f32 %v1972, %v2167
        %v2249 = vadd.f32 %v1973, %v2170
        %v2250 = vadd.f32 %v1974, %v2173
        %v2251 = vadd.f32 %v1975, %v2176
        %v2252 = vadd.f32 %v1976, %v2179
        %v2253 = vadd.f32 %v1977, %v2182
        %v2254 = vadd.f32 %v1978, %v2185
        %v2255 = vadd.f32 %v1979, %v2188
        %v2256 = vadd.f32 %v1980, %v2191
        %v2257 = vadd.f32 %v1981, %v2194
        %v2258 = vadd.f32 %v1982, %v2197
        %v2259 = vadd.f32 %v1983, %v2200
        %v2260 = vadd.f32 %v1984, %v2203
        %v2261 = vadd.f32 %v1985, %v2206
        %v2262 = vadd.f32 %v1986, %v2209
        %v2263 = vadd.f32 %v1987, %v2212
        %v2264 = vadd.f32 %v1988, %v2215
        %v2265 = vadd.f32 %v1989, %v2218
        %v2266 = vadd.f32 %v1990, %v2221
        %v2267 = vadd.f32 %v1991, %v2224
        %v2268 = vadd.f32 %v1992, %v2227
        %v2269 = vadd.f32 %v1993, %v2230
        %v2270 = vadd.f32 %v1994, %v2233
        %v2271 = vadd.f32 %v1995, %v2236
        %v2272 = vadd.f32 %v1996, %v2239
        %v2273 = vld [vmem:[%s1997 + $0x1] sm:$0xff]
        %v2274 = vld [vmem:[%s1997 + $0x9] sm:$0xff]
        %v2275 = vld [vmem:[%s1997 + $0x19] sm:$0xff]
        %v2276 = vld [vmem:[%s1997 + $0x21] sm:$0xff]
        %v2277 = vld [vmem:[%s1997 + $0x31] sm:$0xff]
        %v2278 = vld [vmem:[%s1997 + $0x39] sm:$0xff]
        %v2279 = vld [vmem:[%s1997 + $0x49] sm:$0xff]
        %v2280 = vld [vmem:[%s1997 + $0x51] sm:$0xff]
        %v2281 = vld [vmem:[%s1997 + $0x61] sm:$0xff]
        %v2282 = vld [vmem:[%s1997 + $0x69] sm:$0xff]
        %v2283 = vld [vmem:[%s1997 + $0x79] sm:$0xff]
        %v2284 = vld [vmem:[%s1997 + $0x81] sm:$0xff]
        %v2285 = vld [vmem:[%s1997 + $0x91] sm:$0xff]
        %v2286 = vld [vmem:[%s1997 + $0x99] sm:$0xff]
        %v2287 = vld [vmem:[%s1997 + $0xa9] sm:$0xff]
        %v2288 = vld [vmem:[%s1997 + $0xb1] sm:$0xff]
        %v2289 = vld [vmem:[%s1997 + $0xc1] sm:$0xff]
        %v2290 = vld [vmem:[%s1997 + $0xc9] sm:$0xff]
        %v2291 = vld [vmem:[%s1997 + $0xd9] sm:$0xff]
        %v2292 = vld [vmem:[%s1997 + $0xe1] sm:$0xff]
        %v2293 = vld [vmem:[%s1997 + $0xf1] sm:$0xff]
        %v2294 = vld [vmem:[%s1997 + $0xf9] sm:$0xff]
        %v2295 = vld [vmem:[%s1997 + $0x109] sm:$0xff]
        %v2296 = vld [vmem:[%s1997 + $0x111] sm:$0xff]
        %v2297 = vld [vmem:[%s1997 + $0x121] sm:$0xff]
        %v2298 = vld [vmem:[%s1997 + $0x129] sm:$0xff]
        %v2299 = vld [vmem:[%s1997 + $0x139] sm:$0xff]
        %v2300 = vld [vmem:[%s1997 + $0x141] sm:$0xff]
        %v2301 = vld [vmem:[%s1997 + $0x151] sm:$0xff]
        %v2302 = vld [vmem:[%s1997 + $0x159] sm:$0xff]
        %v2303 = vld [vmem:[%s1997 + $0x169] sm:$0xff]
        %v2304 = vld [vmem:[%s1997 + $0x171] sm:$0xff]
        %s2305 = scalar_lea.vmem %s2, 56
        %v2306 = vld [vmem:[%s2305] sm:$0xff]
        %v2308 = vsel %vm291, %v2273, 0
        %v2311 = vsel %vm291, %v2274, 0
        %v2314 = vsel %vm291, %v2275, 0
        %v2317 = vsel %vm291, %v2276, 0
        %v2320 = vsel %vm291, %v2277, 0
        %v2323 = vsel %vm291, %v2278, 0
        %v2326 = vsel %vm291, %v2279, 0
        %v2329 = vsel %vm291, %v2280, 0
        %v2332 = vsel %vm291, %v2281, 0
        %v2335 = vsel %vm291, %v2282, 0
        %v2338 = vsel %vm291, %v2283, 0
        %v2341 = vsel %vm291, %v2284, 0
        %v2344 = vsel %vm291, %v2285, 0
        %v2347 = vsel %vm291, %v2286, 0
        %v2350 = vsel %vm291, %v2287, 0
        %v2353 = vsel %vm291, %v2288, 0
        %v2356 = vsel %vm291, %v2289, 0
        %v2359 = vsel %vm291, %v2290, 0
        %v2362 = vsel %vm291, %v2291, 0
        %v2365 = vsel %vm291, %v2292, 0
        %v2368 = vsel %vm291, %v2293, 0
        %v2371 = vsel %vm291, %v2294, 0
        %v2374 = vsel %vm291, %v2295, 0
        %v2377 = vsel %vm291, %v2296, 0
        %v2380 = vsel %vm291, %v2297, 0
        %v2383 = vsel %vm291, %v2298, 0
        %v2386 = vsel %vm291, %v2299, 0
        %v2389 = vsel %vm291, %v2300, 0
        %v2392 = vsel %vm291, %v2301, 0
        %v2395 = vsel %vm291, %v2302, 0
        %v2398 = vsel %vm291, %v2303, 0
        %v2401 = vsel %vm291, %v2304, 0
        %2403 = vmatpush.msra.mxu0 0.0
        %2404 = vmatpush.msra.mxu0 0.0
        %2405 = vmatpush.msra.mxu0 0.0
        %2406 = vmatpush.msra.mxu0 0.0
        %2407 = vmatpush.msra.mxu0 0.0
        %2408 = vmatpush.msra.mxu0 0.0
        %2409 = vmatpush.msra.mxu0 0.0
        %2410 = vmatpush.msra.mxu0 0.0
        %2411 = vmatpush.msra.mxu0 0.0
        %2412 = vmatpush.msra.mxu0 0.0
        %2413 = vmatpush.msra.mxu0 0.0
        %2414 = vmatpush.msra.mxu0 0.0
        %2415 = vmatpush.msra.mxu0 0.0
        %2416 = vmatpush.msra.mxu0 0.0
        %2417 = vmatpush.msra.mxu0 0.0
        %2418 = vmatpush.msra.mxu0 %v2306
        %2419 = vmatmul.f32.gmra.mxu0 %v2308
        %v2420 = vpop.f32.mrf.mxu0
        %v2421 = vadd.f32 0.0, %v2420
        %2422 = vmatmul.f32.gmra.mxu0 %v2311
        %v2423 = vpop.f32.mrf.mxu0
        %v2424 = vadd.f32 0.0, %v2423
        %2425 = vmatmul.f32.gmra.mxu0 %v2314
        %v2426 = vpop.f32.mrf.mxu0
        %v2427 = vadd.f32 0.0, %v2426
        %2428 = vmatmul.f32.gmra.mxu0 %v2317
        %v2429 = vpop.f32.mrf.mxu0
        %v2430 = vadd.f32 0.0, %v2429
        %2431 = vmatmul.f32.gmra.mxu0 %v2320
        %v2432 = vpop.f32.mrf.mxu0
        %v2433 = vadd.f32 0.0, %v2432
        %2434 = vmatmul.f32.gmra.mxu0 %v2323
        %v2435 = vpop.f32.mrf.mxu0
        %v2436 = vadd.f32 0.0, %v2435
        %2437 = vmatmul.f32.gmra.mxu0 %v2326
        %v2438 = vpop.f32.mrf.mxu0
        %v2439 = vadd.f32 0.0, %v2438
        %2440 = vmatmul.f32.gmra.mxu0 %v2329
        %v2441 = vpop.f32.mrf.mxu0
        %v2442 = vadd.f32 0.0, %v2441
        %2443 = vmatmul.f32.gmra.mxu0 %v2332
        %v2444 = vpop.f32.mrf.mxu0
        %v2445 = vadd.f32 0.0, %v2444
        %2446 = vmatmul.f32.gmra.mxu0 %v2335
        %v2447 = vpop.f32.mrf.mxu0
        %v2448 = vadd.f32 0.0, %v2447
        %2449 = vmatmul.f32.gmra.mxu0 %v2338
        %v2450 = vpop.f32.mrf.mxu0
        %v2451 = vadd.f32 0.0, %v2450
        %2452 = vmatmul.f32.gmra.mxu0 %v2341
        %v2453 = vpop.f32.mrf.mxu0
        %v2454 = vadd.f32 0.0, %v2453
        %2455 = vmatmul.f32.gmra.mxu0 %v2344
        %v2456 = vpop.f32.mrf.mxu0
        %v2457 = vadd.f32 0.0, %v2456
        %2458 = vmatmul.f32.gmra.mxu0 %v2347
        %v2459 = vpop.f32.mrf.mxu0
        %v2460 = vadd.f32 0.0, %v2459
        %2461 = vmatmul.f32.gmra.mxu0 %v2350
        %v2462 = vpop.f32.mrf.mxu0
        %v2463 = vadd.f32 0.0, %v2462
        %2464 = vmatmul.f32.gmra.mxu0 %v2353
        %v2465 = vpop.f32.mrf.mxu0
        %v2466 = vadd.f32 0.0, %v2465
        %2467 = vmatmul.f32.gmra.mxu0 %v2356
        %v2468 = vpop.f32.mrf.mxu0
        %v2469 = vadd.f32 0.0, %v2468
        %2470 = vmatmul.f32.gmra.mxu0 %v2359
        %v2471 = vpop.f32.mrf.mxu0
        %v2472 = vadd.f32 0.0, %v2471
        %2473 = vmatmul.f32.gmra.mxu0 %v2362
        %v2474 = vpop.f32.mrf.mxu0
        %v2475 = vadd.f32 0.0, %v2474
        %2476 = vmatmul.f32.gmra.mxu0 %v2365
        %v2477 = vpop.f32.mrf.mxu0
        %v2478 = vadd.f32 0.0, %v2477
        %2479 = vmatmul.f32.gmra.mxu0 %v2368
        %v2480 = vpop.f32.mrf.mxu0
        %v2481 = vadd.f32 0.0, %v2480
        %2482 = vmatmul.f32.gmra.mxu0 %v2371
        %v2483 = vpop.f32.mrf.mxu0
        %v2484 = vadd.f32 0.0, %v2483
        %2485 = vmatmul.f32.gmra.mxu0 %v2374
        %v2486 = vpop.f32.mrf.mxu0
        %v2487 = vadd.f32 0.0, %v2486
        %2488 = vmatmul.f32.gmra.mxu0 %v2377
        %v2489 = vpop.f32.mrf.mxu0
        %v2490 = vadd.f32 0.0, %v2489
        %2491 = vmatmul.f32.gmra.mxu0 %v2380
        %v2492 = vpop.f32.mrf.mxu0
        %v2493 = vadd.f32 0.0, %v2492
        %2494 = vmatmul.f32.gmra.mxu0 %v2383
        %v2495 = vpop.f32.mrf.mxu0
        %v2496 = vadd.f32 0.0, %v2495
        %2497 = vmatmul.f32.gmra.mxu0 %v2386
        %v2498 = vpop.f32.mrf.mxu0
        %v2499 = vadd.f32 0.0, %v2498
        %2500 = vmatmul.f32.gmra.mxu0 %v2389
        %v2501 = vpop.f32.mrf.mxu0
        %v2502 = vadd.f32 0.0, %v2501
        %2503 = vmatmul.f32.gmra.mxu0 %v2392
        %v2504 = vpop.f32.mrf.mxu0
        %v2505 = vadd.f32 0.0, %v2504
        %2506 = vmatmul.f32.gmra.mxu0 %v2395
        %v2507 = vpop.f32.mrf.mxu0
        %v2508 = vadd.f32 0.0, %v2507
        %2509 = vmatmul.f32.gmra.mxu0 %v2398
        %v2510 = vpop.f32.mrf.mxu0
        %v2511 = vadd.f32 0.0, %v2510
        %2512 = vmatmul.f32.gmra.mxu0 %v2401
        %v2513 = vpop.f32.mrf.mxu0
        %v2514 = vadd.f32 0.0, %v2513
        %2515 = vdwg.mxu0
        %v2516 = vadd.f32 %v2241, %v2421
        %v2517 = vadd.f32 %v2242, %v2424
        %v2518 = vadd.f32 %v2243, %v2427
        %v2519 = vadd.f32 %v2244, %v2430
        %v2520 = vadd.f32 %v2245, %v2433
        %v2521 = vadd.f32 %v2246, %v2436
        %v2522 = vadd.f32 %v2247, %v2439
        %v2523 = vadd.f32 %v2248, %v2442
        %v2524 = vadd.f32 %v2249, %v2445
        %v2525 = vadd.f32 %v2250, %v2448
        %v2526 = vadd.f32 %v2251, %v2451
        %v2527 = vadd.f32 %v2252, %v2454
        %v2528 = vadd.f32 %v2253, %v2457
        %v2529 = vadd.f32 %v2254, %v2460
        %v2530 = vadd.f32 %v2255, %v2463
        %v2531 = vadd.f32 %v2256, %v2466
        %v2532 = vadd.f32 %v2257, %v2469
        %v2533 = vadd.f32 %v2258, %v2472
        %v2534 = vadd.f32 %v2259, %v2475
        %v2535 = vadd.f32 %v2260, %v2478
        %v2536 = vadd.f32 %v2261, %v2481
        %v2537 = vadd.f32 %v2262, %v2484
        %v2538 = vadd.f32 %v2263, %v2487
        %v2539 = vadd.f32 %v2264, %v2490
        %v2540 = vadd.f32 %v2265, %v2493
        %v2541 = vadd.f32 %v2266, %v2496
        %v2542 = vadd.f32 %v2267, %v2499
        %v2543 = vadd.f32 %v2268, %v2502
        %v2544 = vadd.f32 %v2269, %v2505
        %v2545 = vadd.f32 %v2270, %v2508
        %v2546 = vadd.f32 %v2271, %v2511
        %v2547 = vadd.f32 %v2272, %v2514
        %v2548 = vld [vmem:[%s1997 + $0x2] sm:$0xff]
        %v2549 = vld [vmem:[%s1997 + $0xa] sm:$0xff]
        %v2550 = vld [vmem:[%s1997 + $0x1a] sm:$0xff]
        %v2551 = vld [vmem:[%s1997 + $0x22] sm:$0xff]
        %v2552 = vld [vmem:[%s1997 + $0x32] sm:$0xff]
        %v2553 = vld [vmem:[%s1997 + $0x3a] sm:$0xff]
        %v2554 = vld [vmem:[%s1997 + $0x4a] sm:$0xff]
        %v2555 = vld [vmem:[%s1997 + $0x52] sm:$0xff]
        %v2556 = vld [vmem:[%s1997 + $0x62] sm:$0xff]
        %v2557 = vld [vmem:[%s1997 + $0x6a] sm:$0xff]
        %v2558 = vld [vmem:[%s1997 + $0x7a] sm:$0xff]
        %v2559 = vld [vmem:[%s1997 + $0x82] sm:$0xff]
        %v2560 = vld [vmem:[%s1997 + $0x92] sm:$0xff]
        %v2561 = vld [vmem:[%s1997 + $0x9a] sm:$0xff]
        %v2562 = vld [vmem:[%s1997 + $0xaa] sm:$0xff]
        %v2563 = vld [vmem:[%s1997 + $0xb2] sm:$0xff]
        %v2564 = vld [vmem:[%s1997 + $0xc2] sm:$0xff]
        %v2565 = vld [vmem:[%s1997 + $0xca] sm:$0xff]
        %v2566 = vld [vmem:[%s1997 + $0xda] sm:$0xff]
        %v2567 = vld [vmem:[%s1997 + $0xe2] sm:$0xff]
        %v2568 = vld [vmem:[%s1997 + $0xf2] sm:$0xff]
        %v2569 = vld [vmem:[%s1997 + $0xfa] sm:$0xff]
        %v2570 = vld [vmem:[%s1997 + $0x10a] sm:$0xff]
        %v2571 = vld [vmem:[%s1997 + $0x112] sm:$0xff]
        %v2572 = vld [vmem:[%s1997 + $0x122] sm:$0xff]
        %v2573 = vld [vmem:[%s1997 + $0x12a] sm:$0xff]
        %v2574 = vld [vmem:[%s1997 + $0x13a] sm:$0xff]
        %v2575 = vld [vmem:[%s1997 + $0x142] sm:$0xff]
        %v2576 = vld [vmem:[%s1997 + $0x152] sm:$0xff]
        %v2577 = vld [vmem:[%s1997 + $0x15a] sm:$0xff]
        %v2578 = vld [vmem:[%s1997 + $0x16a] sm:$0xff]
        %v2579 = vld [vmem:[%s1997 + $0x172] sm:$0xff]
        %s2580 = scalar_lea.vmem %s2, 64
        %v2581 = vld [vmem:[%s2580] sm:$0xff]
        %v2583 = vsel %vm291, %v2548, 0
        %v2586 = vsel %vm291, %v2549, 0
        %v2589 = vsel %vm291, %v2550, 0
        %v2592 = vsel %vm291, %v2551, 0
        %v2595 = vsel %vm291, %v2552, 0
        %v2598 = vsel %vm291, %v2553, 0
        %v2601 = vsel %vm291, %v2554, 0
        %v2604 = vsel %vm291, %v2555, 0
        %v2607 = vsel %vm291, %v2556, 0
        %v2610 = vsel %vm291, %v2557, 0
        %v2613 = vsel %vm291, %v2558, 0
        %v2616 = vsel %vm291, %v2559, 0
        %v2619 = vsel %vm291, %v2560, 0
        %v2622 = vsel %vm291, %v2561, 0
        %v2625 = vsel %vm291, %v2562, 0
        %v2628 = vsel %vm291, %v2563, 0
        %v2631 = vsel %vm291, %v2564, 0
        %v2634 = vsel %vm291, %v2565, 0
        %v2637 = vsel %vm291, %v2566, 0
        %v2640 = vsel %vm291, %v2567, 0
        %v2643 = vsel %vm291, %v2568, 0
        %v2646 = vsel %vm291, %v2569, 0
        %v2649 = vsel %vm291, %v2570, 0
        %v2652 = vsel %vm291, %v2571, 0
        %v2655 = vsel %vm291, %v2572, 0
        %v2658 = vsel %vm291, %v2573, 0
        %v2661 = vsel %vm291, %v2574, 0
        %v2664 = vsel %vm291, %v2575, 0
        %v2667 = vsel %vm291, %v2576, 0
        %v2670 = vsel %vm291, %v2577, 0
        %v2673 = vsel %vm291, %v2578, 0
        %v2676 = vsel %vm291, %v2579, 0
        %2678 = vmatpush.msra.mxu0 0.0
        %2679 = vmatpush.msra.mxu0 0.0
        %2680 = vmatpush.msra.mxu0 0.0
        %2681 = vmatpush.msra.mxu0 0.0
        %2682 = vmatpush.msra.mxu0 0.0
        %2683 = vmatpush.msra.mxu0 0.0
        %2684 = vmatpush.msra.mxu0 0.0
        %2685 = vmatpush.msra.mxu0 0.0
        %2686 = vmatpush.msra.mxu0 0.0
        %2687 = vmatpush.msra.mxu0 0.0
        %2688 = vmatpush.msra.mxu0 0.0
        %2689 = vmatpush.msra.mxu0 0.0
        %2690 = vmatpush.msra.mxu0 0.0
        %2691 = vmatpush.msra.mxu0 0.0
        %2692 = vmatpush.msra.mxu0 0.0
        %2693 = vmatpush.msra.mxu0 %v2581
        %2694 = vmatmul.f32.gmra.mxu0 %v2583
        %v2695 = vpop.f32.mrf.mxu0
        %v2696 = vadd.f32 0.0, %v2695
        %2697 = vmatmul.f32.gmra.mxu0 %v2586
        %v2698 = vpop.f32.mrf.mxu0
        %v2699 = vadd.f32 0.0, %v2698
        %2700 = vmatmul.f32.gmra.mxu0 %v2589
        %v2701 = vpop.f32.mrf.mxu0
        %v2702 = vadd.f32 0.0, %v2701
        %2703 = vmatmul.f32.gmra.mxu0 %v2592
        %v2704 = vpop.f32.mrf.mxu0
        %v2705 = vadd.f32 0.0, %v2704
        %2706 = vmatmul.f32.gmra.mxu0 %v2595
        %v2707 = vpop.f32.mrf.mxu0
        %v2708 = vadd.f32 0.0, %v2707
        %2709 = vmatmul.f32.gmra.mxu0 %v2598
        %v2710 = vpop.f32.mrf.mxu0
        %v2711 = vadd.f32 0.0, %v2710
        %2712 = vmatmul.f32.gmra.mxu0 %v2601
        %v2713 = vpop.f32.mrf.mxu0
        %v2714 = vadd.f32 0.0, %v2713
        %2715 = vmatmul.f32.gmra.mxu0 %v2604
        %v2716 = vpop.f32.mrf.mxu0
        %v2717 = vadd.f32 0.0, %v2716
        %2718 = vmatmul.f32.gmra.mxu0 %v2607
        %v2719 = vpop.f32.mrf.mxu0
        %v2720 = vadd.f32 0.0, %v2719
        %2721 = vmatmul.f32.gmra.mxu0 %v2610
        %v2722 = vpop.f32.mrf.mxu0
        %v2723 = vadd.f32 0.0, %v2722
        %2724 = vmatmul.f32.gmra.mxu0 %v2613
        %v2725 = vpop.f32.mrf.mxu0
        %v2726 = vadd.f32 0.0, %v2725
        %2727 = vmatmul.f32.gmra.mxu0 %v2616
        %v2728 = vpop.f32.mrf.mxu0
        %v2729 = vadd.f32 0.0, %v2728
        %2730 = vmatmul.f32.gmra.mxu0 %v2619
        %v2731 = vpop.f32.mrf.mxu0
        %v2732 = vadd.f32 0.0, %v2731
        %2733 = vmatmul.f32.gmra.mxu0 %v2622
        %v2734 = vpop.f32.mrf.mxu0
        %v2735 = vadd.f32 0.0, %v2734
        %2736 = vmatmul.f32.gmra.mxu0 %v2625
        %v2737 = vpop.f32.mrf.mxu0
        %v2738 = vadd.f32 0.0, %v2737
        %2739 = vmatmul.f32.gmra.mxu0 %v2628
        %v2740 = vpop.f32.mrf.mxu0
        %v2741 = vadd.f32 0.0, %v2740
        %2742 = vmatmul.f32.gmra.mxu0 %v2631
        %v2743 = vpop.f32.mrf.mxu0
        %v2744 = vadd.f32 0.0, %v2743
        %2745 = vmatmul.f32.gmra.mxu0 %v2634
        %v2746 = vpop.f32.mrf.mxu0
        %v2747 = vadd.f32 0.0, %v2746
        %2748 = vmatmul.f32.gmra.mxu0 %v2637
        %v2749 = vpop.f32.mrf.mxu0
        %v2750 = vadd.f32 0.0, %v2749
        %2751 = vmatmul.f32.gmra.mxu0 %v2640
        %v2752 = vpop.f32.mrf.mxu0
        %v2753 = vadd.f32 0.0, %v2752
        %2754 = vmatmul.f32.gmra.mxu0 %v2643
        %v2755 = vpop.f32.mrf.mxu0
        %v2756 = vadd.f32 0.0, %v2755
        %2757 = vmatmul.f32.gmra.mxu0 %v2646
        %v2758 = vpop.f32.mrf.mxu0
        %v2759 = vadd.f32 0.0, %v2758
        %2760 = vmatmul.f32.gmra.mxu0 %v2649
        %v2761 = vpop.f32.mrf.mxu0
        %v2762 = vadd.f32 0.0, %v2761
        %2763 = vmatmul.f32.gmra.mxu0 %v2652
        %v2764 = vpop.f32.mrf.mxu0
        %v2765 = vadd.f32 0.0, %v2764
        %2766 = vmatmul.f32.gmra.mxu0 %v2655
        %v2767 = vpop.f32.mrf.mxu0
        %v2768 = vadd.f32 0.0, %v2767
        %2769 = vmatmul.f32.gmra.mxu0 %v2658
        %v2770 = vpop.f32.mrf.mxu0
        %v2771 = vadd.f32 0.0, %v2770
        %2772 = vmatmul.f32.gmra.mxu0 %v2661
        %v2773 = vpop.f32.mrf.mxu0
        %v2774 = vadd.f32 0.0, %v2773
        %2775 = vmatmul.f32.gmra.mxu0 %v2664
        %v2776 = vpop.f32.mrf.mxu0
        %v2777 = vadd.f32 0.0, %v2776
        %2778 = vmatmul.f32.gmra.mxu0 %v2667
        %v2779 = vpop.f32.mrf.mxu0
        %v2780 = vadd.f32 0.0, %v2779
        %2781 = vmatmul.f32.gmra.mxu0 %v2670
        %v2782 = vpop.f32.mrf.mxu0
        %v2783 = vadd.f32 0.0, %v2782
        %2784 = vmatmul.f32.gmra.mxu0 %v2673
        %v2785 = vpop.f32.mrf.mxu0
        %v2786 = vadd.f32 0.0, %v2785
        %2787 = vmatmul.f32.gmra.mxu0 %v2676
        %v2788 = vpop.f32.mrf.mxu0
        %v2789 = vadd.f32 0.0, %v2788
        %2790 = vdwg.mxu0
        %v2791 = vadd.f32 %v2516, %v2696
        %v2792 = vadd.f32 %v2517, %v2699
        %v2793 = vadd.f32 %v2518, %v2702
        %v2794 = vadd.f32 %v2519, %v2705
        %v2795 = vadd.f32 %v2520, %v2708
        %v2796 = vadd.f32 %v2521, %v2711
        %v2797 = vadd.f32 %v2522, %v2714
        %v2798 = vadd.f32 %v2523, %v2717
        %v2799 = vadd.f32 %v2524, %v2720
        %v2800 = vadd.f32 %v2525, %v2723
        %v2801 = vadd.f32 %v2526, %v2726
        %v2802 = vadd.f32 %v2527, %v2729
        %v2803 = vadd.f32 %v2528, %v2732
        %v2804 = vadd.f32 %v2529, %v2735
        %v2805 = vadd.f32 %v2530, %v2738
        %v2806 = vadd.f32 %v2531, %v2741
        %v2807 = vadd.f32 %v2532, %v2744
        %v2808 = vadd.f32 %v2533, %v2747
        %v2809 = vadd.f32 %v2534, %v2750
        %v2810 = vadd.f32 %v2535, %v2753
        %v2811 = vadd.f32 %v2536, %v2756
        %v2812 = vadd.f32 %v2537, %v2759
        %v2813 = vadd.f32 %v2538, %v2762
        %v2814 = vadd.f32 %v2539, %v2765
        %v2815 = vadd.f32 %v2540, %v2768
        %v2816 = vadd.f32 %v2541, %v2771
        %v2817 = vadd.f32 %v2542, %v2774
        %v2818 = vadd.f32 %v2543, %v2777
        %v2819 = vadd.f32 %v2544, %v2780
        %v2820 = vadd.f32 %v2545, %v2783
        %v2821 = vadd.f32 %v2546, %v2786
        %v2822 = vadd.f32 %v2547, %v2789
        %v2823 = vld [vmem:[%s3] sm:$0x1]
        %v2825 = vperm.slane %v2823, 0
        %v2827 = vadd.f32 %v2791, %v2825
        %v2828 = vadd.f32 %v2792, %v2825
        %v2829 = vadd.f32 %v2793, %v2825
        %v2830 = vadd.f32 %v2794, %v2825
        %v2831 = vadd.f32 %v2795, %v2825
        %v2832 = vadd.f32 %v2796, %v2825
        %v2833 = vadd.f32 %v2797, %v2825
        %v2834 = vadd.f32 %v2798, %v2825
        %v2835 = vadd.f32 %v2799, %v2825
        %v2836 = vadd.f32 %v2800, %v2825
        %v2837 = vadd.f32 %v2801, %v2825
        %v2838 = vadd.f32 %v2802, %v2825
        %v2839 = vadd.f32 %v2803, %v2825
        %v2840 = vadd.f32 %v2804, %v2825
        %v2841 = vadd.f32 %v2805, %v2825
        %v2842 = vadd.f32 %v2806, %v2825
        %v2843 = vadd.f32 %v2807, %v2825
        %v2844 = vadd.f32 %v2808, %v2825
        %v2845 = vadd.f32 %v2809, %v2825
        %v2846 = vadd.f32 %v2810, %v2825
        %v2847 = vadd.f32 %v2811, %v2825
        %v2848 = vadd.f32 %v2812, %v2825
        %v2849 = vadd.f32 %v2813, %v2825
        %v2850 = vadd.f32 %v2814, %v2825
        %v2851 = vadd.f32 %v2815, %v2825
        %v2852 = vadd.f32 %v2816, %v2825
        %v2853 = vadd.f32 %v2817, %v2825
        %v2854 = vadd.f32 %v2818, %v2825
        %v2855 = vadd.f32 %v2819, %v2825
        %v2856 = vadd.f32 %v2820, %v2825
        %v2857 = vadd.f32 %v2821, %v2825
        %v2858 = vadd.f32 %v2822, %v2825
        %v2859 = vxor.u32 %v2827, 2147483648
        %v2860 = vxor.u32 %v2828, 2147483648
        %v2861 = vxor.u32 %v2829, 2147483648
        %v2862 = vxor.u32 %v2830, 2147483648
        %v2863 = vxor.u32 %v2831, 2147483648
        %v2864 = vxor.u32 %v2832, 2147483648
        %v2865 = vxor.u32 %v2833, 2147483648
        %v2866 = vxor.u32 %v2834, 2147483648
        %v2867 = vxor.u32 %v2835, 2147483648
        %v2868 = vxor.u32 %v2836, 2147483648
        %v2869 = vxor.u32 %v2837, 2147483648
        %v2870 = vxor.u32 %v2838, 2147483648
        %v2871 = vxor.u32 %v2839, 2147483648
        %v2872 = vxor.u32 %v2840, 2147483648
        %v2873 = vxor.u32 %v2841, 2147483648
        %v2874 = vxor.u32 %v2842, 2147483648
        %v2875 = vxor.u32 %v2843, 2147483648
        %v2876 = vxor.u32 %v2844, 2147483648
        %v2877 = vxor.u32 %v2845, 2147483648
        %v2878 = vxor.u32 %v2846, 2147483648
        %v2879 = vxor.u32 %v2847, 2147483648
        %v2880 = vxor.u32 %v2848, 2147483648
        %v2881 = vxor.u32 %v2849, 2147483648
        %v2882 = vxor.u32 %v2850, 2147483648
        %v2883 = vxor.u32 %v2851, 2147483648
        %v2884 = vxor.u32 %v2852, 2147483648
        %v2885 = vxor.u32 %v2853, 2147483648
        %v2886 = vxor.u32 %v2854, 2147483648
        %v2887 = vxor.u32 %v2855, 2147483648
        %v2888 = vxor.u32 %v2856, 2147483648
        %v2889 = vxor.u32 %v2857, 2147483648
        %v2890 = vxor.u32 %v2858, 2147483648
        %v2891 = vmul.f32 %v2859, 1.442695
        %v2892 = vpow.pop %v2891
        %v2893 = vmul.f32 %v2860, 1.442695
        %v2894 = vpow.pop %v2893
        %v2895 = vmul.f32 %v2861, 1.442695
        %v2896 = vpow.pop %v2895
        %v2897 = vmul.f32 %v2862, 1.442695
        %v2898 = vpow.pop %v2897
        %v2899 = vmul.f32 %v2863, 1.442695
        %v2900 = vpow.pop %v2899
        %v2901 = vmul.f32 %v2864, 1.442695
        %v2902 = vpow.pop %v2901
        %v2903 = vmul.f32 %v2865, 1.442695
        %v2904 = vpow.pop %v2903
        %v2905 = vmul.f32 %v2866, 1.442695
        %v2906 = vpow.pop %v2905
        %v2907 = vmul.f32 %v2867, 1.442695
        %v2908 = vpow.pop %v2907
        %v2909 = vmul.f32 %v2868, 1.442695
        %v2910 = vpow.pop %v2909
        %v2911 = vmul.f32 %v2869, 1.442695
        %v2912 = vpow.pop %v2911
        %v2913 = vmul.f32 %v2870, 1.442695
        %v2914 = vpow.pop %v2913
        %v2915 = vmul.f32 %v2871, 1.442695
        %v2916 = vpow.pop %v2915
        %v2917 = vmul.f32 %v2872, 1.442695
        %v2918 = vpow.pop %v2917
        %v2919 = vmul.f32 %v2873, 1.442695
        %v2920 = vpow.pop %v2919
        %v2921 = vmul.f32 %v2874, 1.442695
        %v2922 = vpow.pop %v2921
        %v2923 = vmul.f32 %v2875, 1.442695
        %v2924 = vpow.pop %v2923
        %v2925 = vmul.f32 %v2876, 1.442695
        %v2926 = vpow.pop %v2925
        %v2927 = vmul.f32 %v2877, 1.442695
        %v2928 = vpow.pop %v2927
        %v2929 = vmul.f32 %v2878, 1.442695
        %v2930 = vpow.pop %v2929
        %v2931 = vmul.f32 %v2879, 1.442695
        %v2932 = vpow.pop %v2931
        %v2933 = vmul.f32 %v2880, 1.442695
        %v2934 = vpow.pop %v2933
        %v2935 = vmul.f32 %v2881, 1.442695
        %v2936 = vpow.pop %v2935
        %v2937 = vmul.f32 %v2882, 1.442695
        %v2938 = vpow.pop %v2937
        %v2939 = vmul.f32 %v2883, 1.442695
        %v2940 = vpow.pop %v2939
        %v2941 = vmul.f32 %v2884, 1.442695
        %v2942 = vpow.pop %v2941
        %v2943 = vmul.f32 %v2885, 1.442695
        %v2944 = vpow.pop %v2943
        %v2945 = vmul.f32 %v2886, 1.442695
        %v2946 = vpow.pop %v2945
        %v2947 = vmul.f32 %v2887, 1.442695
        %v2948 = vpow.pop %v2947
        %v2949 = vmul.f32 %v2888, 1.442695
        %v2950 = vpow.pop %v2949
        %v2951 = vmul.f32 %v2889, 1.442695
        %v2952 = vpow.pop %v2951
        %v2953 = vmul.f32 %v2890, 1.442695
        %v2954 = vpow.pop %v2953
        %v2955 = vadd.f32 %v2892, 1.0
        %v2956 = vadd.f32 %v2894, 1.0
        %v2957 = vadd.f32 %v2896, 1.0
        %v2958 = vadd.f32 %v2898, 1.0
        %v2959 = vadd.f32 %v2900, 1.0
        %v2960 = vadd.f32 %v2902, 1.0
        %v2961 = vadd.f32 %v2904, 1.0
        %v2962 = vadd.f32 %v2906, 1.0
        %v2963 = vadd.f32 %v2908, 1.0
        %v2964 = vadd.f32 %v2910, 1.0
        %v2965 = vadd.f32 %v2912, 1.0
        %v2966 = vadd.f32 %v2914, 1.0
        %v2967 = vadd.f32 %v2916, 1.0
        %v2968 = vadd.f32 %v2918, 1.0
        %v2969 = vadd.f32 %v2920, 1.0
        %v2970 = vadd.f32 %v2922, 1.0
        %v2971 = vadd.f32 %v2924, 1.0
        %v2972 = vadd.f32 %v2926, 1.0
        %v2973 = vadd.f32 %v2928, 1.0
        %v2974 = vadd.f32 %v2930, 1.0
        %v2975 = vadd.f32 %v2932, 1.0
        %v2976 = vadd.f32 %v2934, 1.0
        %v2977 = vadd.f32 %v2936, 1.0
        %v2978 = vadd.f32 %v2938, 1.0
        %v2979 = vadd.f32 %v2940, 1.0
        %v2980 = vadd.f32 %v2942, 1.0
        %v2981 = vadd.f32 %v2944, 1.0
        %v2982 = vadd.f32 %v2946, 1.0
        %v2983 = vadd.f32 %v2948, 1.0
        %v2984 = vadd.f32 %v2950, 1.0
        %v2985 = vadd.f32 %v2952, 1.0
        %v2986 = vadd.f32 %v2954, 1.0
        %v2987 = vrcp.pop %v2955
        %v2988 = vmul.f32 %v2955, %v2987
        %v2989 = vsub.f32 1.0, %v2988
        %v2990 = vmul.f32 %v2987, %v2989
        %v2991 = vadd.f32 %v2987, %v2990
        %vm2992 = vweird.f32 %v2955
        %vm2993 = vweird.f32 %v2987
        %vm2994 = vmor %vm2992, %vm2993
        %v2995 = vsel %vm2994, %v2987, %v2991
        %v2996 = vand.u32 2147483647, %v2955
        %vm2997 = vcmp.eq.f32.partialorder %v2996, 8.507059e+37
        %v2998 = vand.u32 %v2955, 2147483648
        %v2999 = vor.u32 1.1754944e-38, %v2998
        %v3000 = vsel %vm2997, %v2999, %v2995
        %v3001 = vmul.f32 1.0, %v3000
        %v3002 = vrcp.pop %v2956
        %v3003 = vmul.f32 %v2956, %v3002
        %v3004 = vsub.f32 1.0, %v3003
        %v3005 = vmul.f32 %v3002, %v3004
        %v3006 = vadd.f32 %v3002, %v3005
        %vm3007 = vweird.f32 %v2956
        %vm3008 = vweird.f32 %v3002
        %vm3009 = vmor %vm3007, %vm3008
        %v3010 = vsel %vm3009, %v3002, %v3006
        %v3011 = vand.u32 2147483647, %v2956
        %vm3012 = vcmp.eq.f32.partialorder %v3011, 8.507059e+37
        %v3013 = vand.u32 %v2956, 2147483648
        %v3014 = vor.u32 1.1754944e-38, %v3013
        %v3015 = vsel %vm3012, %v3014, %v3010
        %v3016 = vmul.f32 1.0, %v3015
        %v3017 = vrcp.pop %v2957
        %v3018 = vmul.f32 %v2957, %v3017
        %v3019 = vsub.f32 1.0, %v3018
        %v3020 = vmul.f32 %v3017, %v3019
        %v3021 = vadd.f32 %v3017, %v3020
        %vm3022 = vweird.f32 %v2957
        %vm3023 = vweird.f32 %v3017
        %vm3024 = vmor %vm3022, %vm3023
        %v3025 = vsel %vm3024, %v3017, %v3021
        %v3026 = vand.u32 2147483647, %v2957
        %vm3027 = vcmp.eq.f32.partialorder %v3026, 8.507059e+37
        %v3028 = vand.u32 %v2957, 2147483648
        %v3029 = vor.u32 1.1754944e-38, %v3028
        %v3030 = vsel %vm3027, %v3029, %v3025
        %v3031 = vmul.f32 1.0, %v3030
        %v3032 = vrcp.pop %v2958
        %v3033 = vmul.f32 %v2958, %v3032
        %v3034 = vsub.f32 1.0, %v3033
        %v3035 = vmul.f32 %v3032, %v3034
        %v3036 = vadd.f32 %v3032, %v3035
        %vm3037 = vweird.f32 %v2958
        %vm3038 = vweird.f32 %v3032
        %vm3039 = vmor %vm3037, %vm3038
        %v3040 = vsel %vm3039, %v3032, %v3036
        %v3041 = vand.u32 2147483647, %v2958
        %vm3042 = vcmp.eq.f32.partialorder %v3041, 8.507059e+37
        %v3043 = vand.u32 %v2958, 2147483648
        %v3044 = vor.u32 1.1754944e-38, %v3043
        %v3045 = vsel %vm3042, %v3044, %v3040
        %v3046 = vmul.f32 1.0, %v3045
        %v3047 = vrcp.pop %v2959
        %v3048 = vmul.f32 %v2959, %v3047
        %v3049 = vsub.f32 1.0, %v3048
        %v3050 = vmul.f32 %v3047, %v3049
        %v3051 = vadd.f32 %v3047, %v3050
        %vm3052 = vweird.f32 %v2959
        %vm3053 = vweird.f32 %v3047
        %vm3054 = vmor %vm3052, %vm3053
        %v3055 = vsel %vm3054, %v3047, %v3051
        %v3056 = vand.u32 2147483647, %v2959
        %vm3057 = vcmp.eq.f32.partialorder %v3056, 8.507059e+37
        %v3058 = vand.u32 %v2959, 2147483648
        %v3059 = vor.u32 1.1754944e-38, %v3058
        %v3060 = vsel %vm3057, %v3059, %v3055
        %v3061 = vmul.f32 1.0, %v3060
        %v3062 = vrcp.pop %v2960
        %v3063 = vmul.f32 %v2960, %v3062
        %v3064 = vsub.f32 1.0, %v3063
        %v3065 = vmul.f32 %v3062, %v3064
        %v3066 = vadd.f32 %v3062, %v3065
        %vm3067 = vweird.f32 %v2960
        %vm3068 = vweird.f32 %v3062
        %vm3069 = vmor %vm3067, %vm3068
        %v3070 = vsel %vm3069, %v3062, %v3066
        %v3071 = vand.u32 2147483647, %v2960
        %vm3072 = vcmp.eq.f32.partialorder %v3071, 8.507059e+37
        %v3073 = vand.u32 %v2960, 2147483648
        %v3074 = vor.u32 1.1754944e-38, %v3073
        %v3075 = vsel %vm3072, %v3074, %v3070
        %v3076 = vmul.f32 1.0, %v3075
        %v3077 = vrcp.pop %v2961
        %v3078 = vmul.f32 %v2961, %v3077
        %v3079 = vsub.f32 1.0, %v3078
        %v3080 = vmul.f32 %v3077, %v3079
        %v3081 = vadd.f32 %v3077, %v3080
        %vm3082 = vweird.f32 %v2961
        %vm3083 = vweird.f32 %v3077
        %vm3084 = vmor %vm3082, %vm3083
        %v3085 = vsel %vm3084, %v3077, %v3081
        %v3086 = vand.u32 2147483647, %v2961
        %vm3087 = vcmp.eq.f32.partialorder %v3086, 8.507059e+37
        %v3088 = vand.u32 %v2961, 2147483648
        %v3089 = vor.u32 1.1754944e-38, %v3088
        %v3090 = vsel %vm3087, %v3089, %v3085
        %v3091 = vmul.f32 1.0, %v3090
        %v3092 = vrcp.pop %v2962
        %v3093 = vmul.f32 %v2962, %v3092
        %v3094 = vsub.f32 1.0, %v3093
        %v3095 = vmul.f32 %v3092, %v3094
        %v3096 = vadd.f32 %v3092, %v3095
        %vm3097 = vweird.f32 %v2962
        %vm3098 = vweird.f32 %v3092
        %vm3099 = vmor %vm3097, %vm3098
        %v3100 = vsel %vm3099, %v3092, %v3096
        %v3101 = vand.u32 2147483647, %v2962
        %vm3102 = vcmp.eq.f32.partialorder %v3101, 8.507059e+37
        %v3103 = vand.u32 %v2962, 2147483648
        %v3104 = vor.u32 1.1754944e-38, %v3103
        %v3105 = vsel %vm3102, %v3104, %v3100
        %v3106 = vmul.f32 1.0, %v3105
        %v3107 = vrcp.pop %v2963
        %v3108 = vmul.f32 %v2963, %v3107
        %v3109 = vsub.f32 1.0, %v3108
        %v3110 = vmul.f32 %v3107, %v3109
        %v3111 = vadd.f32 %v3107, %v3110
        %vm3112 = vweird.f32 %v2963
        %vm3113 = vweird.f32 %v3107
        %vm3114 = vmor %vm3112, %vm3113
        %v3115 = vsel %vm3114, %v3107, %v3111
        %v3116 = vand.u32 2147483647, %v2963
        %vm3117 = vcmp.eq.f32.partialorder %v3116, 8.507059e+37
        %v3118 = vand.u32 %v2963, 2147483648
        %v3119 = vor.u32 1.1754944e-38, %v3118
        %v3120 = vsel %vm3117, %v3119, %v3115
        %v3121 = vmul.f32 1.0, %v3120
        %v3122 = vrcp.pop %v2964
        %v3123 = vmul.f32 %v2964, %v3122
        %v3124 = vsub.f32 1.0, %v3123
        %v3125 = vmul.f32 %v3122, %v3124
        %v3126 = vadd.f32 %v3122, %v3125
        %vm3127 = vweird.f32 %v2964
        %vm3128 = vweird.f32 %v3122
        %vm3129 = vmor %vm3127, %vm3128
        %v3130 = vsel %vm3129, %v3122, %v3126
        %v3131 = vand.u32 2147483647, %v2964
        %vm3132 = vcmp.eq.f32.partialorder %v3131, 8.507059e+37
        %v3133 = vand.u32 %v2964, 2147483648
        %v3134 = vor.u32 1.1754944e-38, %v3133
        %v3135 = vsel %vm3132, %v3134, %v3130
        %v3136 = vmul.f32 1.0, %v3135
        %v3137 = vrcp.pop %v2965
        %v3138 = vmul.f32 %v2965, %v3137
        %v3139 = vsub.f32 1.0, %v3138
        %v3140 = vmul.f32 %v3137, %v3139
        %v3141 = vadd.f32 %v3137, %v3140
        %vm3142 = vweird.f32 %v2965
        %vm3143 = vweird.f32 %v3137
        %vm3144 = vmor %vm3142, %vm3143
        %v3145 = vsel %vm3144, %v3137, %v3141
        %v3146 = vand.u32 2147483647, %v2965
        %vm3147 = vcmp.eq.f32.partialorder %v3146, 8.507059e+37
        %v3148 = vand.u32 %v2965, 2147483648
        %v3149 = vor.u32 1.1754944e-38, %v3148
        %v3150 = vsel %vm3147, %v3149, %v3145
        %v3151 = vmul.f32 1.0, %v3150
        %v3152 = vrcp.pop %v2966
        %v3153 = vmul.f32 %v2966, %v3152
        %v3154 = vsub.f32 1.0, %v3153
        %v3155 = vmul.f32 %v3152, %v3154
        %v3156 = vadd.f32 %v3152, %v3155
        %vm3157 = vweird.f32 %v2966
        %vm3158 = vweird.f32 %v3152
        %vm3159 = vmor %vm3157, %vm3158
        %v3160 = vsel %vm3159, %v3152, %v3156
        %v3161 = vand.u32 2147483647, %v2966
        %vm3162 = vcmp.eq.f32.partialorder %v3161, 8.507059e+37
        %v3163 = vand.u32 %v2966, 2147483648
        %v3164 = vor.u32 1.1754944e-38, %v3163
        %v3165 = vsel %vm3162, %v3164, %v3160
        %v3166 = vmul.f32 1.0, %v3165
        %v3167 = vrcp.pop %v2967
        %v3168 = vmul.f32 %v2967, %v3167
        %v3169 = vsub.f32 1.0, %v3168
        %v3170 = vmul.f32 %v3167, %v3169
        %v3171 = vadd.f32 %v3167, %v3170
        %vm3172 = vweird.f32 %v2967
        %vm3173 = vweird.f32 %v3167
        %vm3174 = vmor %vm3172, %vm3173
        %v3175 = vsel %vm3174, %v3167, %v3171
        %v3176 = vand.u32 2147483647, %v2967
        %vm3177 = vcmp.eq.f32.partialorder %v3176, 8.507059e+37
        %v3178 = vand.u32 %v2967, 2147483648
        %v3179 = vor.u32 1.1754944e-38, %v3178
        %v3180 = vsel %vm3177, %v3179, %v3175
        %v3181 = vmul.f32 1.0, %v3180
        %v3182 = vrcp.pop %v2968
        %v3183 = vmul.f32 %v2968, %v3182
        %v3184 = vsub.f32 1.0, %v3183
        %v3185 = vmul.f32 %v3182, %v3184
        %v3186 = vadd.f32 %v3182, %v3185
        %vm3187 = vweird.f32 %v2968
        %vm3188 = vweird.f32 %v3182
        %vm3189 = vmor %vm3187, %vm3188
        %v3190 = vsel %vm3189, %v3182, %v3186
        %v3191 = vand.u32 2147483647, %v2968
        %vm3192 = vcmp.eq.f32.partialorder %v3191, 8.507059e+37
        %v3193 = vand.u32 %v2968, 2147483648
        %v3194 = vor.u32 1.1754944e-38, %v3193
        %v3195 = vsel %vm3192, %v3194, %v3190
        %v3196 = vmul.f32 1.0, %v3195
        %v3197 = vrcp.pop %v2969
        %v3198 = vmul.f32 %v2969, %v3197
        %v3199 = vsub.f32 1.0, %v3198
        %v3200 = vmul.f32 %v3197, %v3199
        %v3201 = vadd.f32 %v3197, %v3200
        %vm3202 = vweird.f32 %v2969
        %vm3203 = vweird.f32 %v3197
        %vm3204 = vmor %vm3202, %vm3203
        %v3205 = vsel %vm3204, %v3197, %v3201
        %v3206 = vand.u32 2147483647, %v2969
        %vm3207 = vcmp.eq.f32.partialorder %v3206, 8.507059e+37
        %v3208 = vand.u32 %v2969, 2147483648
        %v3209 = vor.u32 1.1754944e-38, %v3208
        %v3210 = vsel %vm3207, %v3209, %v3205
        %v3211 = vmul.f32 1.0, %v3210
        %v3212 = vrcp.pop %v2970
        %v3213 = vmul.f32 %v2970, %v3212
        %v3214 = vsub.f32 1.0, %v3213
        %v3215 = vmul.f32 %v3212, %v3214
        %v3216 = vadd.f32 %v3212, %v3215
        %vm3217 = vweird.f32 %v2970
        %vm3218 = vweird.f32 %v3212
        %vm3219 = vmor %vm3217, %vm3218
        %v3220 = vsel %vm3219, %v3212, %v3216
        %v3221 = vand.u32 2147483647, %v2970
        %vm3222 = vcmp.eq.f32.partialorder %v3221, 8.507059e+37
        %v3223 = vand.u32 %v2970, 2147483648
        %v3224 = vor.u32 1.1754944e-38, %v3223
        %v3225 = vsel %vm3222, %v3224, %v3220
        %v3226 = vmul.f32 1.0, %v3225
        %v3227 = vrcp.pop %v2971
        %v3228 = vmul.f32 %v2971, %v3227
        %v3229 = vsub.f32 1.0, %v3228
        %v3230 = vmul.f32 %v3227, %v3229
        %v3231 = vadd.f32 %v3227, %v3230
        %vm3232 = vweird.f32 %v2971
        %vm3233 = vweird.f32 %v3227
        %vm3234 = vmor %vm3232, %vm3233
        %v3235 = vsel %vm3234, %v3227, %v3231
        %v3236 = vand.u32 2147483647, %v2971
        %vm3237 = vcmp.eq.f32.partialorder %v3236, 8.507059e+37
        %v3238 = vand.u32 %v2971, 2147483648
        %v3239 = vor.u32 1.1754944e-38, %v3238
        %v3240 = vsel %vm3237, %v3239, %v3235
        %v3241 = vmul.f32 1.0, %v3240
        %v3242 = vrcp.pop %v2972
        %v3243 = vmul.f32 %v2972, %v3242
        %v3244 = vsub.f32 1.0, %v3243
        %v3245 = vmul.f32 %v3242, %v3244
        %v3246 = vadd.f32 %v3242, %v3245
        %vm3247 = vweird.f32 %v2972
        %vm3248 = vweird.f32 %v3242
        %vm3249 = vmor %vm3247, %vm3248
        %v3250 = vsel %vm3249, %v3242, %v3246
        %v3251 = vand.u32 2147483647, %v2972
        %vm3252 = vcmp.eq.f32.partialorder %v3251, 8.507059e+37
        %v3253 = vand.u32 %v2972, 2147483648
        %v3254 = vor.u32 1.1754944e-38, %v3253
        %v3255 = vsel %vm3252, %v3254, %v3250
        %v3256 = vmul.f32 1.0, %v3255
        %v3257 = vrcp.pop %v2973
        %v3258 = vmul.f32 %v2973, %v3257
        %v3259 = vsub.f32 1.0, %v3258
        %v3260 = vmul.f32 %v3257, %v3259
        %v3261 = vadd.f32 %v3257, %v3260
        %vm3262 = vweird.f32 %v2973
        %vm3263 = vweird.f32 %v3257
        %vm3264 = vmor %vm3262, %vm3263
        %v3265 = vsel %vm3264, %v3257, %v3261
        %v3266 = vand.u32 2147483647, %v2973
        %vm3267 = vcmp.eq.f32.partialorder %v3266, 8.507059e+37
        %v3268 = vand.u32 %v2973, 2147483648
        %v3269 = vor.u32 1.1754944e-38, %v3268
        %v3270 = vsel %vm3267, %v3269, %v3265
        %v3271 = vmul.f32 1.0, %v3270
        %v3272 = vrcp.pop %v2974
        %v3273 = vmul.f32 %v2974, %v3272
        %v3274 = vsub.f32 1.0, %v3273
        %v3275 = vmul.f32 %v3272, %v3274
        %v3276 = vadd.f32 %v3272, %v3275
        %vm3277 = vweird.f32 %v2974
        %vm3278 = vweird.f32 %v3272
        %vm3279 = vmor %vm3277, %vm3278
        %v3280 = vsel %vm3279, %v3272, %v3276
        %v3281 = vand.u32 2147483647, %v2974
        %vm3282 = vcmp.eq.f32.partialorder %v3281, 8.507059e+37
        %v3283 = vand.u32 %v2974, 2147483648
        %v3284 = vor.u32 1.1754944e-38, %v3283
        %v3285 = vsel %vm3282, %v3284, %v3280
        %v3286 = vmul.f32 1.0, %v3285
        %v3287 = vrcp.pop %v2975
        %v3288 = vmul.f32 %v2975, %v3287
        %v3289 = vsub.f32 1.0, %v3288
        %v3290 = vmul.f32 %v3287, %v3289
        %v3291 = vadd.f32 %v3287, %v3290
        %vm3292 = vweird.f32 %v2975
        %vm3293 = vweird.f32 %v3287
        %vm3294 = vmor %vm3292, %vm3293
        %v3295 = vsel %vm3294, %v3287, %v3291
        %v3296 = vand.u32 2147483647, %v2975
        %vm3297 = vcmp.eq.f32.partialorder %v3296, 8.507059e+37
        %v3298 = vand.u32 %v2975, 2147483648
        %v3299 = vor.u32 1.1754944e-38, %v3298
        %v3300 = vsel %vm3297, %v3299, %v3295
        %v3301 = vmul.f32 1.0, %v3300
        %v3302 = vrcp.pop %v2976
        %v3303 = vmul.f32 %v2976, %v3302
        %v3304 = vsub.f32 1.0, %v3303
        %v3305 = vmul.f32 %v3302, %v3304
        %v3306 = vadd.f32 %v3302, %v3305
        %vm3307 = vweird.f32 %v2976
        %vm3308 = vweird.f32 %v3302
        %vm3309 = vmor %vm3307, %vm3308
        %v3310 = vsel %vm3309, %v3302, %v3306
        %v3311 = vand.u32 2147483647, %v2976
        %vm3312 = vcmp.eq.f32.partialorder %v3311, 8.507059e+37
        %v3313 = vand.u32 %v2976, 2147483648
        %v3314 = vor.u32 1.1754944e-38, %v3313
        %v3315 = vsel %vm3312, %v3314, %v3310
        %v3316 = vmul.f32 1.0, %v3315
        %v3317 = vrcp.pop %v2977
        %v3318 = vmul.f32 %v2977, %v3317
        %v3319 = vsub.f32 1.0, %v3318
        %v3320 = vmul.f32 %v3317, %v3319
        %v3321 = vadd.f32 %v3317, %v3320
        %vm3322 = vweird.f32 %v2977
        %vm3323 = vweird.f32 %v3317
        %vm3324 = vmor %vm3322, %vm3323
        %v3325 = vsel %vm3324, %v3317, %v3321
        %v3326 = vand.u32 2147483647, %v2977
        %vm3327 = vcmp.eq.f32.partialorder %v3326, 8.507059e+37
        %v3328 = vand.u32 %v2977, 2147483648
        %v3329 = vor.u32 1.1754944e-38, %v3328
        %v3330 = vsel %vm3327, %v3329, %v3325
        %v3331 = vmul.f32 1.0, %v3330
        %v3332 = vrcp.pop %v2978
        %v3333 = vmul.f32 %v2978, %v3332
        %v3334 = vsub.f32 1.0, %v3333
        %v3335 = vmul.f32 %v3332, %v3334
        %v3336 = vadd.f32 %v3332, %v3335
        %vm3337 = vweird.f32 %v2978
        %vm3338 = vweird.f32 %v3332
        %vm3339 = vmor %vm3337, %vm3338
        %v3340 = vsel %vm3339, %v3332, %v3336
        %v3341 = vand.u32 2147483647, %v2978
        %vm3342 = vcmp.eq.f32.partialorder %v3341, 8.507059e+37
        %v3343 = vand.u32 %v2978, 2147483648
        %v3344 = vor.u32 1.1754944e-38, %v3343
        %v3345 = vsel %vm3342, %v3344, %v3340
        %v3346 = vmul.f32 1.0, %v3345
        %v3347 = vrcp.pop %v2979
        %v3348 = vmul.f32 %v2979, %v3347
        %v3349 = vsub.f32 1.0, %v3348
        %v3350 = vmul.f32 %v3347, %v3349
        %v3351 = vadd.f32 %v3347, %v3350
        %vm3352 = vweird.f32 %v2979
        %vm3353 = vweird.f32 %v3347
        %vm3354 = vmor %vm3352, %vm3353
        %v3355 = vsel %vm3354, %v3347, %v3351
        %v3356 = vand.u32 2147483647, %v2979
        %vm3357 = vcmp.eq.f32.partialorder %v3356, 8.507059e+37
        %v3358 = vand.u32 %v2979, 2147483648
        %v3359 = vor.u32 1.1754944e-38, %v3358
        %v3360 = vsel %vm3357, %v3359, %v3355
        %v3361 = vmul.f32 1.0, %v3360
        %v3362 = vrcp.pop %v2980
        %v3363 = vmul.f32 %v2980, %v3362
        %v3364 = vsub.f32 1.0, %v3363
        %v3365 = vmul.f32 %v3362, %v3364
        %v3366 = vadd.f32 %v3362, %v3365
        %vm3367 = vweird.f32 %v2980
        %vm3368 = vweird.f32 %v3362
        %vm3369 = vmor %vm3367, %vm3368
        %v3370 = vsel %vm3369, %v3362, %v3366
        %v3371 = vand.u32 2147483647, %v2980
        %vm3372 = vcmp.eq.f32.partialorder %v3371, 8.507059e+37
        %v3373 = vand.u32 %v2980, 2147483648
        %v3374 = vor.u32 1.1754944e-38, %v3373
        %v3375 = vsel %vm3372, %v3374, %v3370
        %v3376 = vmul.f32 1.0, %v3375
        %v3377 = vrcp.pop %v2981
        %v3378 = vmul.f32 %v2981, %v3377
        %v3379 = vsub.f32 1.0, %v3378
        %v3380 = vmul.f32 %v3377, %v3379
        %v3381 = vadd.f32 %v3377, %v3380
        %vm3382 = vweird.f32 %v2981
        %vm3383 = vweird.f32 %v3377
        %vm3384 = vmor %vm3382, %vm3383
        %v3385 = vsel %vm3384, %v3377, %v3381
        %v3386 = vand.u32 2147483647, %v2981
        %vm3387 = vcmp.eq.f32.partialorder %v3386, 8.507059e+37
        %v3388 = vand.u32 %v2981, 2147483648
        %v3389 = vor.u32 1.1754944e-38, %v3388
        %v3390 = vsel %vm3387, %v3389, %v3385
        %v3391 = vmul.f32 1.0, %v3390
        %v3392 = vrcp.pop %v2982
        %v3393 = vmul.f32 %v2982, %v3392
        %v3394 = vsub.f32 1.0, %v3393
        %v3395 = vmul.f32 %v3392, %v3394
        %v3396 = vadd.f32 %v3392, %v3395
        %vm3397 = vweird.f32 %v2982
        %vm3398 = vweird.f32 %v3392
        %vm3399 = vmor %vm3397, %vm3398
        %v3400 = vsel %vm3399, %v3392, %v3396
        %v3401 = vand.u32 2147483647, %v2982
        %vm3402 = vcmp.eq.f32.partialorder %v3401, 8.507059e+37
        %v3403 = vand.u32 %v2982, 2147483648
        %v3404 = vor.u32 1.1754944e-38, %v3403
        %v3405 = vsel %vm3402, %v3404, %v3400
        %v3406 = vmul.f32 1.0, %v3405
        %v3407 = vrcp.pop %v2983
        %v3408 = vmul.f32 %v2983, %v3407
        %v3409 = vsub.f32 1.0, %v3408
        %v3410 = vmul.f32 %v3407, %v3409
        %v3411 = vadd.f32 %v3407, %v3410
        %vm3412 = vweird.f32 %v2983
        %vm3413 = vweird.f32 %v3407
        %vm3414 = vmor %vm3412, %vm3413
        %v3415 = vsel %vm3414, %v3407, %v3411
        %v3416 = vand.u32 2147483647, %v2983
        %vm3417 = vcmp.eq.f32.partialorder %v3416, 8.507059e+37
        %v3418 = vand.u32 %v2983, 2147483648
        %v3419 = vor.u32 1.1754944e-38, %v3418
        %v3420 = vsel %vm3417, %v3419, %v3415
        %v3421 = vmul.f32 1.0, %v3420
        %v3422 = vrcp.pop %v2984
        %v3423 = vmul.f32 %v2984, %v3422
        %v3424 = vsub.f32 1.0, %v3423
        %v3425 = vmul.f32 %v3422, %v3424
        %v3426 = vadd.f32 %v3422, %v3425
        %vm3427 = vweird.f32 %v2984
        %vm3428 = vweird.f32 %v3422
        %vm3429 = vmor %vm3427, %vm3428
        %v3430 = vsel %vm3429, %v3422, %v3426
        %v3431 = vand.u32 2147483647, %v2984
        %vm3432 = vcmp.eq.f32.partialorder %v3431, 8.507059e+37
        %v3433 = vand.u32 %v2984, 2147483648
        %v3434 = vor.u32 1.1754944e-38, %v3433
        %v3435 = vsel %vm3432, %v3434, %v3430
        %v3436 = vmul.f32 1.0, %v3435
        %v3437 = vrcp.pop %v2985
        %v3438 = vmul.f32 %v2985, %v3437
        %v3439 = vsub.f32 1.0, %v3438
        %v3440 = vmul.f32 %v3437, %v3439
        %v3441 = vadd.f32 %v3437, %v3440
        %vm3442 = vweird.f32 %v2985
        %vm3443 = vweird.f32 %v3437
        %vm3444 = vmor %vm3442, %vm3443
        %v3445 = vsel %vm3444, %v3437, %v3441
        %v3446 = vand.u32 2147483647, %v2985
        %vm3447 = vcmp.eq.f32.partialorder %v3446, 8.507059e+37
        %v3448 = vand.u32 %v2985, 2147483648
        %v3449 = vor.u32 1.1754944e-38, %v3448
        %v3450 = vsel %vm3447, %v3449, %v3445
        %v3451 = vmul.f32 1.0, %v3450
        %v3452 = vrcp.pop %v2986
        %v3453 = vmul.f32 %v2986, %v3452
        %v3454 = vsub.f32 1.0, %v3453
        %v3455 = vmul.f32 %v3452, %v3454
        %v3456 = vadd.f32 %v3452, %v3455
        %vm3457 = vweird.f32 %v2986
        %vm3458 = vweird.f32 %v3452
        %vm3459 = vmor %vm3457, %vm3458
        %v3460 = vsel %vm3459, %v3452, %v3456
        %v3461 = vand.u32 2147483647, %v2986
        %vm3462 = vcmp.eq.f32.partialorder %v3461, 8.507059e+37
        %v3463 = vand.u32 %v2986, 2147483648
        %v3464 = vor.u32 1.1754944e-38, %v3463
        %v3465 = vsel %vm3462, %v3464, %v3460
        %v3466 = vmul.f32 1.0, %v3465
        %v3467 = vld [vmem:[%s280] sm:$0xff]
        %v3468 = vld [vmem:[%s280 + $0x8] sm:$0xff]
        %v3469 = vld [vmem:[%s280 + $0x10] sm:$0xff]
        %v3470 = vld [vmem:[%s280 + $0x18] sm:$0xff]
        %v3471 = vld [vmem:[%s280 + $0x20] sm:$0xff]
        %v3472 = vld [vmem:[%s280 + $0x28] sm:$0xff]
        %v3473 = vld [vmem:[%s280 + $0x30] sm:$0xff]
        %v3474 = vld [vmem:[%s280 + $0x38] sm:$0xff]
        %v3475 = vld [vmem:[%s280 + $0x40] sm:$0xff]
        %v3476 = vld [vmem:[%s280 + $0x48] sm:$0xff]
        %v3477 = vld [vmem:[%s280 + $0x50] sm:$0xff]
        %v3478 = vld [vmem:[%s280 + $0x58] sm:$0xff]
        %v3479 = vld [vmem:[%s280 + $0x60] sm:$0xff]
        %v3480 = vld [vmem:[%s280 + $0x68] sm:$0xff]
        %v3481 = vld [vmem:[%s280 + $0x70] sm:$0xff]
        %v3482 = vld [vmem:[%s280 + $0x78] sm:$0xff]
        %v3483 = vld [vmem:[%s280 + $0x80] sm:$0xff]
        %v3484 = vld [vmem:[%s280 + $0x88] sm:$0xff]
        %v3485 = vld [vmem:[%s280 + $0x90] sm:$0xff]
        %v3486 = vld [vmem:[%s280 + $0x98] sm:$0xff]
        %v3487 = vld [vmem:[%s280 + $0xa0] sm:$0xff]
        %v3488 = vld [vmem:[%s280 + $0xa8] sm:$0xff]
        %v3489 = vld [vmem:[%s280 + $0xb0] sm:$0xff]
        %v3490 = vld [vmem:[%s280 + $0xb8] sm:$0xff]
        %v3491 = vld [vmem:[%s280 + $0xc0] sm:$0xff]
        %v3492 = vld [vmem:[%s280 + $0xc8] sm:$0xff]
        %v3493 = vld [vmem:[%s280 + $0xd0] sm:$0xff]
        %v3494 = vld [vmem:[%s280 + $0xd8] sm:$0xff]
        %v3495 = vld [vmem:[%s280 + $0xe0] sm:$0xff]
        %v3496 = vld [vmem:[%s280 + $0xe8] sm:$0xff]
        %v3497 = vld [vmem:[%s280 + $0xf0] sm:$0xff]
        %v3498 = vld [vmem:[%s280 + $0xf8] sm:$0xff]
        %v3499 = vld [vmem:[%s285] sm:$0xff]
        %v3500 = vld [vmem:[%s285 + $0x8] sm:$0xff]
        %v3501 = vld [vmem:[%s285 + $0x10] sm:$0xff]
        %v3502 = vld [vmem:[%s285 + $0x18] sm:$0xff]
        %v3503 = vld [vmem:[%s285 + $0x20] sm:$0xff]
        %v3504 = vld [vmem:[%s285 + $0x28] sm:$0xff]
        %v3505 = vld [vmem:[%s285 + $0x30] sm:$0xff]
        %v3506 = vld [vmem:[%s285 + $0x38] sm:$0xff]
        %v3507 = vld [vmem:[%s285 + $0x40] sm:$0xff]
        %v3508 = vld [vmem:[%s285 + $0x48] sm:$0xff]
        %v3509 = vld [vmem:[%s285 + $0x50] sm:$0xff]
        %v3510 = vld [vmem:[%s285 + $0x58] sm:$0xff]
        %v3511 = vld [vmem:[%s285 + $0x60] sm:$0xff]
        %v3512 = vld [vmem:[%s285 + $0x68] sm:$0xff]
        %v3513 = vld [vmem:[%s285 + $0x70] sm:$0xff]
        %v3514 = vld [vmem:[%s285 + $0x78] sm:$0xff]
        %v3515 = vld [vmem:[%s285 + $0x80] sm:$0xff]
        %v3516 = vld [vmem:[%s285 + $0x88] sm:$0xff]
        %v3517 = vld [vmem:[%s285 + $0x90] sm:$0xff]
        %v3518 = vld [vmem:[%s285 + $0x98] sm:$0xff]
        %v3519 = vld [vmem:[%s285 + $0xa0] sm:$0xff]
        %v3520 = vld [vmem:[%s285 + $0xa8] sm:$0xff]
        %v3521 = vld [vmem:[%s285 + $0xb0] sm:$0xff]
        %v3522 = vld [vmem:[%s285 + $0xb8] sm:$0xff]
        %v3523 = vld [vmem:[%s285 + $0xc0] sm:$0xff]
        %v3524 = vld [vmem:[%s285 + $0xc8] sm:$0xff]
        %v3525 = vld [vmem:[%s285 + $0xd0] sm:$0xff]
        %v3526 = vld [vmem:[%s285 + $0xd8] sm:$0xff]
        %v3527 = vld [vmem:[%s285 + $0xe0] sm:$0xff]
        %v3528 = vld [vmem:[%s285 + $0xe8] sm:$0xff]
        %v3529 = vld [vmem:[%s285 + $0xf0] sm:$0xff]
        %v3530 = vld [vmem:[%s285 + $0xf8] sm:$0xff]
        %v3531 = vmul.f32 %v3499, %v3001
        %v3532 = vmul.f32 %v3500, %v3016
        %v3533 = vmul.f32 %v3501, %v3031
        %v3534 = vmul.f32 %v3502, %v3046
        %v3535 = vmul.f32 %v3503, %v3061
        %v3536 = vmul.f32 %v3504, %v3076
        %v3537 = vmul.f32 %v3505, %v3091
        %v3538 = vmul.f32 %v3506, %v3106
        %v3539 = vmul.f32 %v3507, %v3121
        %v3540 = vmul.f32 %v3508, %v3136
        %v3541 = vmul.f32 %v3509, %v3151
        %v3542 = vmul.f32 %v3510, %v3166
        %v3543 = vmul.f32 %v3511, %v3181
        %v3544 = vmul.f32 %v3512, %v3196
        %v3545 = vmul.f32 %v3513, %v3211
        %v3546 = vmul.f32 %v3514, %v3226
        %v3547 = vmul.f32 %v3515, %v3241
        %v3548 = vmul.f32 %v3516, %v3256
        %v3549 = vmul.f32 %v3517, %v3271
        %v3550 = vmul.f32 %v3518, %v3286
        %v3551 = vmul.f32 %v3519, %v3301
        %v3552 = vmul.f32 %v3520, %v3316
        %v3553 = vmul.f32 %v3521, %v3331
        %v3554 = vmul.f32 %v3522, %v3346
        %v3555 = vmul.f32 %v3523, %v3361
        %v3556 = vmul.f32 %v3524, %v3376
        %v3557 = vmul.f32 %v3525, %v3391
        %v3558 = vmul.f32 %v3526, %v3406
        %v3559 = vmul.f32 %v3527, %v3421
        %v3560 = vmul.f32 %v3528, %v3436
        %v3561 = vmul.f32 %v3529, %v3451
        %v3562 = vmul.f32 %v3530, %v3466
        %3595 = vrot.lane.b32.xlu0 %v3001, 120
        %v3596 = vpop.permute.xlu0 %3595
        %3597 = vrot.lane.b32.xlu0 %v3016, 120
        %v3598 = vpop.permute.xlu0 %3597
        %3599 = vrot.lane.b32.xlu0 %v3031, 120
        %v3600 = vpop.permute.xlu0 %3599
        %3601 = vrot.lane.b32.xlu0 %v3046, 120
        %v3602 = vpop.permute.xlu0 %3601
        %3603 = vrot.lane.b32.xlu0 %v3061, 120
        %v3604 = vpop.permute.xlu0 %3603
        %3605 = vrot.lane.b32.xlu0 %v3076, 120
        %v3606 = vpop.permute.xlu0 %3605
        %3607 = vrot.lane.b32.xlu0 %v3091, 120
        %v3608 = vpop.permute.xlu0 %3607
        %3609 = vrot.lane.b32.xlu0 %v3106, 120
        %v3610 = vpop.permute.xlu0 %3609
        %3611 = vrot.lane.b32.xlu0 %v3121, 120
        %v3612 = vpop.permute.xlu0 %3611
        %3613 = vrot.lane.b32.xlu0 %v3136, 120
        %v3614 = vpop.permute.xlu0 %3613
        %3615 = vrot.lane.b32.xlu0 %v3151, 120
        %v3616 = vpop.permute.xlu0 %3615
        %3617 = vrot.lane.b32.xlu0 %v3166, 120
        %v3618 = vpop.permute.xlu0 %3617
        %3619 = vrot.lane.b32.xlu0 %v3181, 120
        %v3620 = vpop.permute.xlu0 %3619
        %3621 = vrot.lane.b32.xlu0 %v3196, 120
        %v3622 = vpop.permute.xlu0 %3621
        %3623 = vrot.lane.b32.xlu0 %v3211, 120
        %v3624 = vpop.permute.xlu0 %3623
        %3625 = vrot.lane.b32.xlu0 %v3226, 120
        %v3626 = vpop.permute.xlu0 %3625
        %3627 = vrot.lane.b32.xlu0 %v3241, 120
        %v3628 = vpop.permute.xlu0 %3627
        %3629 = vrot.lane.b32.xlu0 %v3256, 120
        %v3630 = vpop.permute.xlu0 %3629
        %3631 = vrot.lane.b32.xlu0 %v3271, 120
        %v3632 = vpop.permute.xlu0 %3631
        %3633 = vrot.lane.b32.xlu0 %v3286, 120
        %v3634 = vpop.permute.xlu0 %3633
        %3635 = vrot.lane.b32.xlu0 %v3301, 120
        %v3636 = vpop.permute.xlu0 %3635
        %3637 = vrot.lane.b32.xlu0 %v3316, 120
        %v3638 = vpop.permute.xlu0 %3637
        %3639 = vrot.lane.b32.xlu0 %v3331, 120
        %v3640 = vpop.permute.xlu0 %3639
        %3641 = vrot.lane.b32.xlu0 %v3346, 120
        %v3642 = vpop.permute.xlu0 %3641
        %3643 = vrot.lane.b32.xlu0 %v3361, 120
        %v3644 = vpop.permute.xlu0 %3643
        %3645 = vrot.lane.b32.xlu0 %v3376, 120
        %v3646 = vpop.permute.xlu0 %3645
        %3647 = vrot.lane.b32.xlu0 %v3391, 120
        %v3648 = vpop.permute.xlu0 %3647
        %3649 = vrot.lane.b32.xlu0 %v3406, 120
        %v3650 = vpop.permute.xlu0 %3649
        %3651 = vrot.lane.b32.xlu0 %v3421, 120
        %v3652 = vpop.permute.xlu0 %3651
        %3653 = vrot.lane.b32.xlu0 %v3436, 120
        %v3654 = vpop.permute.xlu0 %3653
        %3655 = vrot.lane.b32.xlu0 %v3451, 120
        %v3656 = vpop.permute.xlu0 %3655
        %3657 = vrot.lane.b32.xlu0 %v3466, 120
        %v3658 = vpop.permute.xlu0 %3657
        %v3691 = vmul.f32 %v3467, %v3596
        %v3692 = vmul.f32 %v3468, %v3598
        %v3693 = vmul.f32 %v3469, %v3600
        %v3694 = vmul.f32 %v3470, %v3602
        %v3695 = vmul.f32 %v3471, %v3604
        %v3696 = vmul.f32 %v3472, %v3606
        %v3697 = vmul.f32 %v3473, %v3608
        %v3698 = vmul.f32 %v3474, %v3610
        %v3699 = vmul.f32 %v3475, %v3612
        %v3700 = vmul.f32 %v3476, %v3614
        %v3701 = vmul.f32 %v3477, %v3616
        %v3702 = vmul.f32 %v3478, %v3618
        %v3703 = vmul.f32 %v3479, %v3620
        %v3704 = vmul.f32 %v3480, %v3622
        %v3705 = vmul.f32 %v3481, %v3624
        %v3706 = vmul.f32 %v3482, %v3626
        %v3707 = vmul.f32 %v3483, %v3628
        %v3708 = vmul.f32 %v3484, %v3630
        %v3709 = vmul.f32 %v3485, %v3632
        %v3710 = vmul.f32 %v3486, %v3634
        %v3711 = vmul.f32 %v3487, %v3636
        %v3712 = vmul.f32 %v3488, %v3638
        %v3713 = vmul.f32 %v3489, %v3640
        %v3714 = vmul.f32 %v3490, %v3642
        %v3715 = vmul.f32 %v3491, %v3644
        %v3716 = vmul.f32 %v3492, %v3646
        %v3717 = vmul.f32 %v3493, %v3648
        %v3718 = vmul.f32 %v3494, %v3650
        %v3719 = vmul.f32 %v3495, %v3652
        %v3720 = vmul.f32 %v3496, %v3654
        %v3721 = vmul.f32 %v3497, %v3656
        %v3722 = vmul.f32 %v3498, %v3658
        %v3723 = vadd.f32 %v3531, %v3691
        %v3724 = vadd.f32 %v3532, %v3692
        %v3725 = vadd.f32 %v3533, %v3693
        %v3726 = vadd.f32 %v3534, %v3694
        %v3727 = vadd.f32 %v3535, %v3695
        %v3728 = vadd.f32 %v3536, %v3696
        %v3729 = vadd.f32 %v3537, %v3697
        %v3730 = vadd.f32 %v3538, %v3698
        %v3731 = vadd.f32 %v3539, %v3699
        %v3732 = vadd.f32 %v3540, %v3700
        %v3733 = vadd.f32 %v3541, %v3701
        %v3734 = vadd.f32 %v3542, %v3702
        %v3735 = vadd.f32 %v3543, %v3703
        %v3736 = vadd.f32 %v3544, %v3704
        %v3737 = vadd.f32 %v3545, %v3705
        %v3738 = vadd.f32 %v3546, %v3706
        %v3739 = vadd.f32 %v3547, %v3707
        %v3740 = vadd.f32 %v3548, %v3708
        %v3741 = vadd.f32 %v3549, %v3709
        %v3742 = vadd.f32 %v3550, %v3710
        %v3743 = vadd.f32 %v3551, %v3711
        %v3744 = vadd.f32 %v3552, %v3712
        %v3745 = vadd.f32 %v3553, %v3713
        %v3746 = vadd.f32 %v3554, %v3714
        %v3747 = vadd.f32 %v3555, %v3715
        %v3748 = vadd.f32 %v3556, %v3716
        %v3749 = vadd.f32 %v3557, %v3717
        %v3750 = vadd.f32 %v3558, %v3718
        %v3751 = vadd.f32 %v3559, %v3719
        %v3752 = vadd.f32 %v3560, %v3720
        %v3753 = vadd.f32 %v3561, %v3721
        %v3754 = vadd.f32 %v3562, %v3722
        %3755 = vst.msk [vmem:[%s290] sm:$0xff] %vm291, %v3723
        %3756 = vst.msk [vmem:[%s290 + $0x8] sm:$0xff] %vm291, %v3724
        %3757 = vst.msk [vmem:[%s290 + $0x10] sm:$0xff] %vm291, %v3725
        %3758 = vst.msk [vmem:[%s290 + $0x18] sm:$0xff] %vm291, %v3726
        %3759 = vst.msk [vmem:[%s290 + $0x20] sm:$0xff] %vm291, %v3727
        %3760 = vst.msk [vmem:[%s290 + $0x28] sm:$0xff] %vm291, %v3728
        %3761 = vst.msk [vmem:[%s290 + $0x30] sm:$0xff] %vm291, %v3729
        %3762 = vst.msk [vmem:[%s290 + $0x38] sm:$0xff] %vm291, %v3730
        %3763 = vst.msk [vmem:[%s290 + $0x40] sm:$0xff] %vm291, %v3731
        %3764 = vst.msk [vmem:[%s290 + $0x48] sm:$0xff] %vm291, %v3732
        %3765 = vst.msk [vmem:[%s290 + $0x50] sm:$0xff] %vm291, %v3733
        %3766 = vst.msk [vmem:[%s290 + $0x58] sm:$0xff] %vm291, %v3734
        %3767 = vst.msk [vmem:[%s290 + $0x60] sm:$0xff] %vm291, %v3735
        %3768 = vst.msk [vmem:[%s290 + $0x68] sm:$0xff] %vm291, %v3736
        %3769 = vst.msk [vmem:[%s290 + $0x70] sm:$0xff] %vm291, %v3737
        %3770 = vst.msk [vmem:[%s290 + $0x78] sm:$0xff] %vm291, %v3738
        %3771 = vst.msk [vmem:[%s290 + $0x80] sm:$0xff] %vm291, %v3739
        %3772 = vst.msk [vmem:[%s290 + $0x88] sm:$0xff] %vm291, %v3740
        %3773 = vst.msk [vmem:[%s290 + $0x90] sm:$0xff] %vm291, %v3741
        %3774 = vst.msk [vmem:[%s290 + $0x98] sm:$0xff] %vm291, %v3742
        %3775 = vst.msk [vmem:[%s290 + $0xa0] sm:$0xff] %vm291, %v3743
        %3776 = vst.msk [vmem:[%s290 + $0xa8] sm:$0xff] %vm291, %v3744
        %3777 = vst.msk [vmem:[%s290 + $0xb0] sm:$0xff] %vm291, %v3745
        %3778 = vst.msk [vmem:[%s290 + $0xb8] sm:$0xff] %vm291, %v3746
        %3779 = vst.msk [vmem:[%s290 + $0xc0] sm:$0xff] %vm291, %v3747
        %3780 = vst.msk [vmem:[%s290 + $0xc8] sm:$0xff] %vm291, %v3748
        %3781 = vst.msk [vmem:[%s290 + $0xd0] sm:$0xff] %vm291, %v3749
        %3782 = vst.msk [vmem:[%s290 + $0xd8] sm:$0xff] %vm291, %v3750
        %3783 = vst.msk [vmem:[%s290 + $0xe0] sm:$0xff] %vm291, %v3751
        %3784 = vst.msk [vmem:[%s290 + $0xe8] sm:$0xff] %vm291, %v3752
        %3785 = vst.msk [vmem:[%s290 + $0xf0] sm:$0xff] %vm291, %v3753
        %3786 = vst.msk [vmem:[%s290 + $0xf8] sm:$0xff] %vm291, %v3754
        %v3787 = vsel %vm291, %v3001, 0.0
        %v3788 = vsel %vm291, %v3016, 0.0
        %v3789 = vadd.f32 %v3787, %v3788
        %v3790 = vsel %vm291, %v3031, 0.0
        %v3791 = vadd.f32 %v3789, %v3790
        %v3792 = vsel %vm291, %v3046, 0.0
        %v3793 = vadd.f32 %v3791, %v3792
        %v3794 = vsel %vm291, %v3061, 0.0
        %v3795 = vadd.f32 %v3793, %v3794
        %v3796 = vsel %vm291, %v3076, 0.0
        %v3797 = vadd.f32 %v3795, %v3796
        %v3798 = vsel %vm291, %v3091, 0.0
        %v3799 = vadd.f32 %v3797, %v3798
        %v3800 = vsel %vm291, %v3106, 0.0
        %v3801 = vadd.f32 %v3799, %v3800
        %v3802 = vsel %vm291, %v3121, 0.0
        %v3803 = vadd.f32 %v3801, %v3802
        %v3804 = vsel %vm291, %v3136, 0.0
        %v3805 = vadd.f32 %v3803, %v3804
        %v3806 = vsel %vm291, %v3151, 0.0
        %v3807 = vadd.f32 %v3805, %v3806
        %v3808 = vsel %vm291, %v3166, 0.0
        %v3809 = vadd.f32 %v3807, %v3808
        %v3810 = vsel %vm291, %v3181, 0.0
        %v3811 = vadd.f32 %v3809, %v3810
        %v3812 = vsel %vm291, %v3196, 0.0
        %v3813 = vadd.f32 %v3811, %v3812
        %v3814 = vsel %vm291, %v3211, 0.0
        %v3815 = vadd.f32 %v3813, %v3814
        %v3816 = vsel %vm291, %v3226, 0.0
        %v3817 = vadd.f32 %v3815, %v3816
        %v3818 = vsel %vm291, %v3241, 0.0
        %v3819 = vadd.f32 %v3817, %v3818
        %v3820 = vsel %vm291, %v3256, 0.0
        %v3821 = vadd.f32 %v3819, %v3820
        %v3822 = vsel %vm291, %v3271, 0.0
        %v3823 = vadd.f32 %v3821, %v3822
        %v3824 = vsel %vm291, %v3286, 0.0
        %v3825 = vadd.f32 %v3823, %v3824
        %v3826 = vsel %vm291, %v3301, 0.0
        %v3827 = vadd.f32 %v3825, %v3826
        %v3828 = vsel %vm291, %v3316, 0.0
        %v3829 = vadd.f32 %v3827, %v3828
        %v3830 = vsel %vm291, %v3331, 0.0
        %v3831 = vadd.f32 %v3829, %v3830
        %v3832 = vsel %vm291, %v3346, 0.0
        %v3833 = vadd.f32 %v3831, %v3832
        %v3834 = vsel %vm291, %v3361, 0.0
        %v3835 = vadd.f32 %v3833, %v3834
        %v3836 = vsel %vm291, %v3376, 0.0
        %v3837 = vadd.f32 %v3835, %v3836
        %v3838 = vsel %vm291, %v3391, 0.0
        %v3839 = vadd.f32 %v3837, %v3838
        %v3840 = vsel %vm291, %v3406, 0.0
        %v3841 = vadd.f32 %v3839, %v3840
        %v3842 = vsel %vm291, %v3421, 0.0
        %v3843 = vadd.f32 %v3841, %v3842
        %v3844 = vsel %vm291, %v3436, 0.0
        %v3845 = vadd.f32 %v3843, %v3844
        %v3846 = vsel %vm291, %v3451, 0.0
        %v3847 = vadd.f32 %v3845, %v3846
        %v3848 = vsel %vm291, %v3466, 0.0
        %v3849 = vadd.f32 %v3847, %v3848
        %v3850 = vrot.slane %v3849, 4
        %v3851 = vadd.f32 %v3849, %v3850
        %v3852 = vrot.slane %v3851, 2
        %v3853 = vadd.f32 %v3851, %v3852
        %v3854 = vrot.slane %v3853, 1
        %v3855 = vadd.f32 %v3853, %v3854
        %vm3856 = vcmask 57344
        %3857 = vst.msk [vmem:[%s269] sm:$0x1] %vm3856, %v3855
        %vm3858 = vcmask 130112
        %v3859 = vsel %vm3858, %v3001, 0.0
        %v3860 = vsel %vm3858, %v3016, 0.0
        %v3861 = vadd.f32 %v3859, %v3860
        %v3862 = vsel %vm3858, %v3031, 0.0
        %v3863 = vadd.f32 %v3861, %v3862
        %v3864 = vsel %vm3858, %v3046, 0.0
        %v3865 = vadd.f32 %v3863, %v3864
        %v3866 = vsel %vm3858, %v3061, 0.0
        %v3867 = vadd.f32 %v3865, %v3866
        %v3868 = vsel %vm3858, %v3076, 0.0
        %v3869 = vadd.f32 %v3867, %v3868
        %v3870 = vsel %vm3858, %v3091, 0.0
        %v3871 = vadd.f32 %v3869, %v3870
        %v3872 = vsel %vm3858, %v3106, 0.0
        %v3873 = vadd.f32 %v3871, %v3872
        %v3874 = vsel %vm3858, %v3121, 0.0
        %v3875 = vadd.f32 %v3873, %v3874
        %v3876 = vsel %vm3858, %v3136, 0.0
        %v3877 = vadd.f32 %v3875, %v3876
        %v3878 = vsel %vm3858, %v3151, 0.0
        %v3879 = vadd.f32 %v3877, %v3878
        %v3880 = vsel %vm3858, %v3166, 0.0
        %v3881 = vadd.f32 %v3879, %v3880
        %v3882 = vsel %vm3858, %v3181, 0.0
        %v3883 = vadd.f32 %v3881, %v3882
        %v3884 = vsel %vm3858, %v3196, 0.0
        %v3885 = vadd.f32 %v3883, %v3884
        %v3886 = vsel %vm3858, %v3211, 0.0
        %v3887 = vadd.f32 %v3885, %v3886
        %v3888 = vsel %vm3858, %v3226, 0.0
        %v3889 = vadd.f32 %v3887, %v3888
        %v3890 = vsel %vm3858, %v3241, 0.0
        %v3891 = vadd.f32 %v3889, %v3890
        %v3892 = vsel %vm3858, %v3256, 0.0
        %v3893 = vadd.f32 %v3891, %v3892
        %v3894 = vsel %vm3858, %v3271, 0.0
        %v3895 = vadd.f32 %v3893, %v3894
        %v3896 = vsel %vm3858, %v3286, 0.0
        %v3897 = vadd.f32 %v3895, %v3896
        %v3898 = vsel %vm3858, %v3301, 0.0
        %v3899 = vadd.f32 %v3897, %v3898
        %v3900 = vsel %vm3858, %v3316, 0.0
        %v3901 = vadd.f32 %v3899, %v3900
        %v3902 = vsel %vm3858, %v3331, 0.0
        %v3903 = vadd.f32 %v3901, %v3902
        %v3904 = vsel %vm3858, %v3346, 0.0
        %v3905 = vadd.f32 %v3903, %v3904
        %v3906 = vsel %vm3858, %v3361, 0.0
        %v3907 = vadd.f32 %v3905, %v3906
        %v3908 = vsel %vm3858, %v3376, 0.0
        %v3909 = vadd.f32 %v3907, %v3908
        %v3910 = vsel %vm3858, %v3391, 0.0
        %v3911 = vadd.f32 %v3909, %v3910
        %v3912 = vsel %vm3858, %v3406, 0.0
        %v3913 = vadd.f32 %v3911, %v3912
        %v3914 = vsel %vm3858, %v3421, 0.0
        %v3915 = vadd.f32 %v3913, %v3914
        %v3916 = vsel %vm3858, %v3436, 0.0
        %v3917 = vadd.f32 %v3915, %v3916
        %v3918 = vsel %vm3858, %v3451, 0.0
        %v3919 = vadd.f32 %v3917, %v3918
        %v3920 = vsel %vm3858, %v3466, 0.0
        %v3921 = vadd.f32 %v3919, %v3920
        %v3922 = vrot.slane %v3921, 4
        %v3923 = vadd.f32 %v3921, %v3922
        %v3924 = vrot.slane %v3923, 2
        %v3925 = vadd.f32 %v3923, %v3924
        %v3926 = vrot.slane %v3925, 1
        %v3927 = vadd.f32 %v3925, %v3926
        %3929 = vrot.lane.b32.xlu0 %v3927, 120
        %v3930 = vpop.permute.xlu0 %3929
        %3932 = vst.msk [vmem:[%s275] sm:$0x1] %vm3856, %v3930
        %p3933 = scmp.lt.s32.totalorder %s24, 1
        %s3934 = scalar_select %p3933, %s24, 1
        %s3935 = smul.addr %s3934, 32
        %s3936 = smul.addr %s3935, 8
        %s3937 = scalar_lea.vmem %s4, %s3936
        %s3938 = sand.u32 %s152, 1
        %s3939 = scalar_lea.sflag [#allocation4], %s3938
        %s3940 = sand.u32 %s152, 1
        %s3941 = scalar_lea.vmem [#allocation3], %s3940
        %s3942 = sand.u32 %s178, 1
        %s3943 = scalar_lea.sflag [#allocation6], %s3942
        %s3944 = sand.u32 %s178, 1
        %s3945 = scalar_lea.vmem [#allocation5], %s3944
        // Predicated region
        $region37: #{tpu_custom_call.1} parent=35 // pred_check
          %p3946 = pneg %p136
        $region38: #{tpu_custom_call.1} parent=35 // pred_check_branch
          %3948 = sbr.rel (%p3946) target = $region40
        $region39: #{tpu_custom_call.1} parent=35 // pred_region
          _
        $region40: #{tpu_custom_call.1} parent=35 // pred_fallthru
          _
        // Predicated region
        $region41: #{tpu_custom_call.1} parent=35 // pred_check
          %p3949 = pneg %p162
        $region42: #{tpu_custom_call.1} parent=35 // pred_check_branch
          %3951 = sbr.rel (%p3949) target = $region44
        $region43: #{tpu_custom_call.1} parent=35 // pred_region
          %3953 = vsyncadd %s3939, 0
          %s3954 = scalar_lea.hbm %s5, %s24
          %s3956 = sshll.u32 %s3941, 4
          %s3957 = int_to_ptr.vmem [resolvable:$true] %s3956
          %s3958 = sshll.u32 %s3954, 4
          %s3959 = int_to_ptr.hbm [resolvable:$true] %s3958
          %3961 = dma.vmem_to_hbm [thread:$0]  %s3957, 16, %s3959, %s3939
        $region44: #{tpu_custom_call.1} parent=35 // pred_fallthru
          _
        // Predicated region
        $region45: #{tpu_custom_call.1} parent=35 // pred_check
          %p3962 = pneg %p188
        $region46: #{tpu_custom_call.1} parent=35 // pred_check_branch
          %3964 = sbr.rel (%p3962) target = $region48
        $region47: #{tpu_custom_call.1} parent=35 // pred_region
          %3966 = vsyncadd %s3943, 0
          %s3967 = scalar_lea.hbm %s6, %s24
          %s3969 = sshll.u32 %s3945, 4
          %s3970 = int_to_ptr.vmem [resolvable:$true] %s3969
          %s3971 = sshll.u32 %s3967, 4
          %s3972 = int_to_ptr.hbm [resolvable:$true] %s3971
          %3974 = dma.vmem_to_hbm [thread:$0]  %s3970, 16, %s3972, %s3943
        $region48: #{tpu_custom_call.1} parent=35 // pred_fallthru
          _
      $region36: #{tpu_custom_call.1} parent=5 // pred_fallthru
        _
      %p3975 = scmp.le.s32.totalorder 2, %s19
      // Predicated region
      $region49: #{tpu_custom_call.1} parent=5 // pred_check
        %p3976 = pneg %p3975
      $region50: #{tpu_custom_call.1} parent=5 // pred_check_branch
        %3978 = sbr.rel (%p3976) target = $region52
      $region51: #{tpu_custom_call.1} parent=5 // pred_region
        %s3979 = ssub.s32 %s19, 2
        // Predicated region
        $region53: #{tpu_custom_call.1} parent=51 // pred_check
          %p3980 = pneg %p142
        $region54: #{tpu_custom_call.1} parent=51 // pred_check_branch
          %3982 = sbr.rel (%p3980) target = $region56
        $region55: #{tpu_custom_call.1} parent=51 // pred_region
          %p3983 = scmp.lt.s32.totalorder %s25, 1
          %s3984 = scalar_select %p3983, %s25, 1
          %s3985 = smul.addr %s3984, 32
          %s3986 = smul.addr %s3985, 8
          %s3987 = scalar_lea.vmem %s4, %s3986
        $region56: #{tpu_custom_call.1} parent=51 // pred_fallthru
          _
        // Predicated region
        $region57: #{tpu_custom_call.1} parent=51 // pred_check
          %p3988 = pneg %p168
        $region58: #{tpu_custom_call.1} parent=51 // pred_check_branch
          %3990 = sbr.rel (%p3988) target = $region60
        $region59: #{tpu_custom_call.1} parent=51 // pred_region
          %s3991 = sand.u32 %s153, 1
          %s3992 = scalar_lea.sflag [#allocation4], %s3991
          %s3993 = sand.u32 %s153, 1
          %s3994 = scalar_lea.vmem [#allocation3], %s3993
          %3996 = dma.done %s3992, 16
        $region60: #{tpu_custom_call.1} parent=51 // pred_fallthru
          _
        // Predicated region
        $region61: #{tpu_custom_call.1} parent=51 // pred_check
          %p3997 = pneg %p194
        $region62: #{tpu_custom_call.1} parent=51 // pred_check_branch
          %3999 = sbr.rel (%p3997) target = $region64
        $region63: #{tpu_custom_call.1} parent=51 // pred_region
          %s4000 = sand.u32 %s179, 1
          %s4001 = scalar_lea.sflag [#allocation6], %s4000
          %s4002 = sand.u32 %s179, 1
          %s4003 = scalar_lea.vmem [#allocation5], %s4002
          %4005 = dma.done %s4001, 16
        $region64: #{tpu_custom_call.1} parent=51 // pred_fallthru
          _
      $region52: #{tpu_custom_call.1} parent=5 // pred_fallthru
        _
    $region6: #{tpu_custom_call.1} parent=1 // loop_footer
      %s23 = sadd.s32 1, %s19
    $region7: #{tpu_custom_call.1} parent=1 // loop_footer_branch
      %18 = sbr.rel target = $region3
    $region8: #{tpu_custom_call.1} parent=1 // loop_exit
      _
    %4006 = vsyncpa [#allocation4], 1
    %s4007 = scalar_lea.sflag [#allocation4], 1
    %4008 = vsyncpa %s4007, 1
    %4009 = vsyncpa [#allocation6], 1
    %s4010 = scalar_lea.sflag [#allocation6], 1
    %4011 = vsyncpa %s4010, 1

</llo_original>
